<compile_context>
chip_gen: v7x
topology: tpu7x:2x2x1
jax: 0.10.0
libtpu: 0.0.40
codegen_flags: <defaults>
</compile_context>

<pallas_src>
import functools

import jax
import jax.numpy as jnp
from jax.experimental import pallas as pl
from jax.experimental.pallas import tpu as pltpu


# ------------------------------ in-kernel helpers -----------------------------

def _conv_taps(x, mw_ref, base, W, HW, ksize):
    """'same' zero-padded conv of x:(C,HW) against a premasked tap table.

    mw_ref[base + t] is the (C, HW) per-channel tap weight with the zero-pad
    boundary mask already folded in on the host, so each tap is one static lane
    rotation (XLU) plus one multiply-add (VPU) -- nothing else.
    """
    r = ksize // 2
    acc = jnp.zeros(x.shape, jnp.float32)
    tap = 0
    for dy in range(-r, r + 1):
        for dx in range(-r, r + 1):
            s = dy * W + dx                                    # flat source offset
            shifted = x if s == 0 else pltpu.roll(x, shift=(-s) % HW, axis=1)
            acc = acc + shifted * mw_ref[base + tap]
            tap += 1
    return acc


# --------------------------------- fused kernel -------------------------------

def _cd_fused_kernel(*refs, H, W, use_x):
    HW = H * W
    if use_x:
        (x1_ref, x2_ref, x_ref, wa_ref, wb_ref, wc_ref, c1b_ref,
         dwmw_ref, dwb_ref, pww_ref, pwb_ref, mw7_ref, ctw_ref, ctb_ref,
         o_ref) = refs
    else:
        (x1_ref, x2_ref, wa_ref, wb_ref, c1b_ref,
         dwmw_ref, dwb_ref, pww_ref, pwb_ref, mw7_ref, ctw_ref, ctb_ref,
         o_ref) = refs
        x_ref = wc_ref = None

    x1 = x1_ref[0]                                             # (C, HW)
    x2 = x2_ref[0]

    # ---- cd_block1: Conv1x1(+BN)+ReLU -> dw3x3 -> pw1x1(+BN)+ReLU -> xl ----
    # (defaults to reduced-precision MXU passes; set precision=HIGHEST if
    #  bit-parity with torch is required)
    h = jnp.dot(wa_ref[...], x1, preferred_element_type=jnp.float32)
    h = h + jnp.dot(wb_ref[...], x2, preferred_element_type=jnp.float32)
    if use_x:
        h = h + jnp.dot(wc_ref[...], x_ref[0], preferred_element_type=jnp.float32)
    h = jnp.maximum(h + c1b_ref[...], 0.0)
    h = _conv_taps(h, dwmw_ref, 0, W, HW, 3) + dwb_ref[0]
    xl = jnp.dot(pww_ref[0], h, preferred_element_type=jnp.float32) + pwb_ref[0]
    xl = jnp.maximum(xl, 0.0)

    # ---- attention gates: pool1 -> 7x7 -> sigmoid (spatial), pool2 -> sigmoid (channel) ----
    v1 = jnp.abs(x1 - x2)
    v2 = x1 + x2
    v3 = x1 * x2

    def cmix(v):   # MixedPoolingChannel: 0.5*max_c + 0.5*mean_c over channels (sublanes)
        return 0.5 * jnp.max(v, axis=0, keepdims=True) + 0.5 * jnp.mean(v, axis=0, keepdims=True)

    pooled = jnp.concatenate(
        [cmix(v1), cmix(v2), cmix(v3), jnp.zeros((5, HW), jnp.float32)], axis=0)   # (8, HW)
    conv7 = _conv_taps(pooled, mw7_ref, 0, W, HW, 7)                                # (8, HW)
    gate_s = jax.nn.sigmoid(jnp.sum(conv7, axis=0, keepdims=True))                  # (1, HW)
    sl = xl * gate_s

    def smix(v):   # MixedPoolingSpatial: 0.5*global_max + 0.5*global_mean over HW (lanes)
        return 0.5 * jnp.max(v, axis=1, keepdims=True) + 0.5 * jnp.mean(v, axis=1, keepdims=True)

    gate_c = jax.nn.sigmoid(smix(v1) + smix(v2) + smix(v3))                          # (C, 1)
    cl = xl * gate_c

    # ---- BasicBlocks (BN folded into the pointwise 1x1 convs) ----
    def basic_block(xin, ci):
        hh = _conv_taps(xin, dwmw_ref, 9 * ci, W, HW, 3) + dwb_ref[ci]
        hh = jnp.dot(pww_ref[ci], hh, preferred_element_type=jnp.float32) + pwb_ref[ci]
        hh = jnp.maximum(hh, 0.0)
        hh = _conv_taps(hh, dwmw_ref, 9 * (ci + 1), W, HW, 3) + dwb_ref[ci + 1]
        out = (jnp.dot(pww_ref[ci + 1], hh, preferred_element_type=jnp.float32)
               + pwb_ref[ci + 1] + xin)
        return jnp.maximum(out, 0.0)

    s3 = basic_block(sl, 1)        # cd_block3
    c4 = basic_block(cl, 3)        # cd_block4
    sc = xl * (s3 + c4)            # sl = xl*bb3 ; cl = xl*bb4 ; sc = sl + cl
    sc = basic_block(sc, 5)        # cd_block5
    sc = xl + sc

    # ---- cd_block6: ConvTranspose2d(C,C,2,2) as a (4C,C)@(C,HW) matmul ----
    o_ref[0] = jnp.dot(ctw_ref[...], sc, preferred_element_type=jnp.float32) + ctb_ref[...]


# -------------------------------- call wrapper --------------------------------

def _img_spec(c, hw):
    return pl.BlockSpec((1, c, hw), lambda n: (n, 0, 0))


def _const_spec(a):
    nd = a.ndim
    return pl.BlockSpec(a.shape, lambda n: (0,) * nd)


def cd_block_forward(fused, x1, x2, x):
    N, C1, H, W = x1.shape
    HW = H * W
    use_x = 'c1_wc' in fused
    C = fused['pw_w'].shape[1]
    C4 = fused['ct_w'].shape[0]
    # channel-attention gate broadcasts (C,1) over xl; requires matching channels
    assert C1 == C, "channel attention requires x1/x2 channels == out_cha"

    imgs = [x1.reshape(N, C1, HW), x2.reshape(N, x2.shape[1], HW)]
    if use_x:
        imgs.append(x.reshape(N, x.shape[1], HW))
    weights = [fused['c1_wa'], fused['c1_wb']]
    if use_x:
        weights.append(fused['c1_wc'])
    weights += [fused['c1_b'], fused['dw_mw'], fused['dw_b'], fused['pw_w'],
                fused['pw_b'], fused['mw7'], fused['ct_w'], fused['ct_b']]

    y = pl.pallas_call(
        functools.partial(_cd_fused_kernel, H=H, W=W, use_x=use_x),
        out_shape=jax.ShapeDtypeStruct((N, C4, HW), jnp.float32),
        grid=(N,),
        in_specs=[_img_spec(a.shape[1], HW) for a in imgs]
                 + [_const_spec(a) for a in weights],
        out_specs=_img_spec(C4, HW),
        compiler_params=pltpu.CompilerParams(dimension_semantics=("parallel",)),
    )(*imgs, *weights)

    # stride-2 transposed-conv sub-pixel interleave (cheap host-side XLA op)
    out = (y.reshape(N, 2, 2, C, H, W)
           .transpose(0, 3, 4, 1, 5, 2)
           .reshape(N, C, 2 * H, 2 * W))                       # NCHW, like torch
    return out


# ----------------------- host-side parameter preparation ----------------------

def _boundary_masks(H, W, ksize):
    """(ksize*ksize, HW) f32 zero-pad validity masks, tap-ordered like torch."""
    HW = H * W
    r = ksize // 2
    idx = jnp.arange(HW, dtype=jnp.int32)
    row, col = idx // W, idx % W
    masks = []
    for dy in range(-r, r + 1):
        for dx in range(-r, r + 1):
            valid = ((row + dy >= 0) & (row + dy < H) &
                     (col + dx >= 0) & (col + dx < W))
            masks.append(valid.astype(jnp.float32))
    return jnp.stack(masks)


def prepare_params(p, H, W, c1, c2, cx, use_x):
    """Fold boundary masks + lane broadcasts into per-tap weight tables, stack
    all depthwise/pointwise weights, split the input 1x1 conv per input."""
    m3 = _boundary_masks(H, W, 3)                        # (9, HW)
    m7 = _boundary_masks(H, W, 7)                        # (49, HW)

    def masked(k, m):                                     # (C,T),(T,HW) -> (T,C,HW)
        return jnp.einsum('ct,tp->tcp', k, m)

    dw_tabs = [masked(p['dw_k'], m3)]
    dw_b, pw_w, pw_b = [p['dw_b']], [p['pw_w']], [p['pw_b']]
    for name in ('bb3', 'bb4', 'bb5'):
        d = p[name]
        dw_tabs += [masked(d['k1'], m3), masked(d['k2'], m3)]
        dw_b += [d['bd1'], d['bd2']]
        pw_w += [d['w1'], d['w2']]
        pw_b += [d['b1'], d['b2']]

    w7 = jnp.concatenate([p['w7'], jnp.zeros((5, 49), jnp.float32)], axis=0)  # pad 3 -> 8 rows

    fp = {
        'dw_mw': jnp.concatenate(dw_tabs, axis=0),        # (63, C, HW)
        'dw_b': jnp.stack(dw_b),                          # (7, C, 1)
        'pw_w': jnp.stack(pw_w),                          # (7, C, C)
        'pw_b': jnp.stack(pw_b),                          # (7, C, 1)
        'mw7': masked(w7, m7),                            # (49, 8, HW)
        'c1_wa': p['c1_w'][:, :c1],
        'c1_wb': p['c1_w'][:, c1:c1 + c2],
        'c1_b': p['c1_b'],
        'ct_w': p['ct_w'],
        'ct_b': p['ct_b'],
    }
    if use_x:
        fp['c1_wc'] = p['c1_w'][:, c1 + c2:c1 + c2 + cx]
    return fp


# ------------------------------- parameter init --------------------------------

def init_params(key, in_cha, out_cha):
    ks = iter(jax.random.split(key, 128))

    def nrm(shape, s=0.1):
        return (s * jax.random.normal(next(ks), shape)).astype(jnp.float32)

    def fold_bn(w, b, c):
        # eval-mode BN folded into the preceding 1x1 conv
        gamma = 1.0 + 0.1 * jax.random.normal(next(ks), (c,))
        beta = 0.1 * jax.random.normal(next(ks), (c,))
        mean = 0.1 * jax.random.normal(next(ks), (c,))
        var = 1.0 + 0.1 * jnp.abs(jax.random.normal(next(ks), (c,)))
        s = gamma / jnp.sqrt(var + 1e-5)
        t = beta - mean * s
        return (w * s[:, None]).astype(jnp.float32), ((s * b + t)[:, None]).astype(jnp.float32)

    C = out_cha
    p = {}
    # cd_block1 = Conv1x1(in_cha,C)+BN+ReLU -> DWConv(C,C)=dw3x3+pw1x1+BN+ReLU
    p['c1_w'], p['c1_b'] = fold_bn(nrm((C, in_cha)), nrm((C,)), C)
    p['dw_k'] = nrm((C, 9))
    p['dw_b'] = nrm((C, 1))
    p['pw_w'], p['pw_b'] = fold_bn(nrm((C, C)), nrm((C,)), C)
    # cd_block2: Conv2d(3, 1, 7, padding=3, bias=False)
    p['w7'] = nrm((3, 49))
    # BasicBlocks 3, 4, 5 (BN folded into the pointwise convs)
    for name in ('bb3', 'bb4', 'bb5'):
        d = {'k1': nrm((C, 9)), 'bd1': nrm((C, 1)),
             'k2': nrm((C, 9)), 'bd2': nrm((C, 1))}
        d['w1'], d['b1'] = fold_bn(nrm((C, C)), nrm((C,)), C)
        d['w2'], d['b2'] = fold_bn(nrm((C, C)), nrm((C,)), C)
        p[name] = d
    # cd_block6: ConvTranspose2d(C, C, 2, 2); torch weight (Cin, Cout, 2, 2)
    wt = nrm((C, C, 2, 2))
    p['ct_w'] = wt.transpose(2, 3, 1, 0).reshape(4 * C, C)    # rows ordered (dy, dx, co)
    p['ct_b'] = jnp.tile(nrm((C,)), 4)[:, None]               # (4C, 1)
    return p


# ------------------------------------ main --------------------------------------

if __name__ == "__main__":
    key = jax.random.PRNGKey(0)
    k1, k2, k3, kp = jax.random.split(key, 4)

    N, C, H, W = 2, 8, 16, 16                       # H*W = 256 lanes (lane-dense)
    x1 = jax.random.normal(k1, (N, C, H, W), jnp.float32)   # NCHW, like the reference
    x2 = jax.random.normal(k2, (N, C, H, W), jnp.float32)
    x = jax.random.normal(k3, (N, 2, H, W), jnp.float32)    # 2 channels -> first branch

    use_x = x.shape[1] != 2
    in_cha = x1.shape[1] + x2.shape[1] + (x.shape[1] if use_x else 0)
    params = init_params(kp, in_cha, C)
    fused = prepare_params(params, H, W, x1.shape[1], x2.shape[1], x.shape[1], use_x)

    fwd = jax.jit(cd_block_forward)
    out = fwd(fused, x1, x2, x)
    jax.block_until_ready(out)
    assert out.shape == (N, C, 2 * H, 2 * W)
    print("KERNEL_OK")
</pallas_src>

<mosaic_0001>
module attributes {stable_mosaic.version = 11 : i64} {
  func.func @_cd_fused_kernel(%arg0: i32, %arg1: memref<1x8x256xf32, #tpu.memory_space<vmem>>, %arg2: memref<1x8x256xf32, #tpu.memory_space<vmem>>, %arg3: memref<8x8xf32, #tpu.memory_space<vmem>>, %arg4: memref<8x8xf32, #tpu.memory_space<vmem>>, %arg5: memref<8x1xf32, #tpu.memory_space<vmem>>, %arg6: memref<63x8x256xf32, #tpu.memory_space<vmem>>, %arg7: memref<7x8x1xf32, #tpu.memory_space<vmem>>, %arg8: memref<7x8x8xf32, #tpu.memory_space<vmem>>, %arg9: memref<7x8x1xf32, #tpu.memory_space<vmem>>, %arg10: memref<49x8x256xf32, #tpu.memory_space<vmem>>, %arg11: memref<32x8xf32, #tpu.memory_space<vmem>>, %arg12: memref<32x1xf32, #tpu.memory_space<vmem>>, %arg13: memref<1x32x256xf32, #tpu.memory_space<vmem>>) attributes {dimension_semantics = [#tpu.dimension_semantics<parallel>], iteration_bounds = array<i64: 2>, scalar_prefetch = 0 : i64, scratch_operands = 0 : i64, tpu.core_type = #tpu.core_type<tc>, window_params = [{transform_indices = @transform_0, window_bounds = array<i64: 1, 8, 256>}, {transform_indices = @transform_1, window_bounds = array<i64: 1, 8, 256>}, {pipeline_mode = #tpu.pipeline_mode<synchronous>, transform_indices = @transform_2, window_bounds = array<i64: 8, 8>}, {pipeline_mode = #tpu.pipeline_mode<synchronous>, transform_indices = @transform_3, window_bounds = array<i64: 8, 8>}, {pipeline_mode = #tpu.pipeline_mode<synchronous>, transform_indices = @transform_4, window_bounds = array<i64: 8, 1>}, {pipeline_mode = #tpu.pipeline_mode<synchronous>, transform_indices = @transform_5, window_bounds = array<i64: 63, 8, 256>}, {pipeline_mode = #tpu.pipeline_mode<synchronous>, transform_indices = @transform_6, window_bounds = array<i64: 7, 8, 1>}, {pipeline_mode = #tpu.pipeline_mode<synchronous>, transform_indices = @transform_7, window_bounds = array<i64: 7, 8, 8>}, {pipeline_mode = #tpu.pipeline_mode<synchronous>, transform_indices = @transform_8, window_bounds = array<i64: 7, 8, 1>}, {pipeline_mode = #tpu.pipeline_mode<synchronous>, transform_indices = @transform_9, window_bounds = array<i64: 49, 8, 256>}, {pipeline_mode = #tpu.pipeline_mode<synchronous>, transform_indices = @transform_10, window_bounds = array<i64: 32, 8>}, {pipeline_mode = #tpu.pipeline_mode<synchronous>, transform_indices = @transform_11, window_bounds = array<i64: 32, 1>}, {transform_indices = @transform_12, window_bounds = array<i64: 1, 32, 256>}]} {
    %c0 = arith.constant 0 : index
    %c0_0 = arith.constant 0 : index
    %c0_1 = arith.constant 0 : index
    %0 = vector.load %arg1[%c0, %c0_0, %c0_1] : memref<1x8x256xf32, #tpu.memory_space<vmem>>, vector<1x8x256xf32>
    %1 = vector.shape_cast %0 : vector<1x8x256xf32> to vector<8x256xf32>
    %c0_2 = arith.constant 0 : index
    %c0_3 = arith.constant 0 : index
    %c0_4 = arith.constant 0 : index
    %2 = vector.load %arg2[%c0_2, %c0_3, %c0_4] : memref<1x8x256xf32, #tpu.memory_space<vmem>>, vector<1x8x256xf32>
    %3 = vector.shape_cast %2 : vector<1x8x256xf32> to vector<8x256xf32>
    %c0_5 = arith.constant 0 : index
    %c0_6 = arith.constant 0 : index
    %4 = vector.load %arg3[%c0_5, %c0_6] : memref<8x8xf32, #tpu.memory_space<vmem>>, vector<8x8xf32>
    %cst = arith.constant dense<0.000000e+00> : vector<8x256xf32>
    %5 = tpu.matmul %4, %1, %cst {dimension_numbers = #tpu.dot_dimension_numbers<[1], [0], [0], [1], [0, 0, 1, 1], [], []>} : vector<8x8xf32>, vector<8x256xf32>, vector<8x256xf32> -> vector<8x256xf32>
    %c0_7 = arith.constant 0 : index
    %c0_8 = arith.constant 0 : index
    %6 = vector.load %arg4[%c0_7, %c0_8] : memref<8x8xf32, #tpu.memory_space<vmem>>, vector<8x8xf32>
    %cst_9 = arith.constant dense<0.000000e+00> : vector<8x256xf32>
    %7 = tpu.matmul %6, %3, %cst_9 {dimension_numbers = #tpu.dot_dimension_numbers<[1], [0], [0], [1], [0, 0, 1, 1], [], []>} : vector<8x8xf32>, vector<8x256xf32>, vector<8x256xf32> -> vector<8x256xf32>
    %8 = arith.addf %5, %7 : vector<8x256xf32>
    %c0_10 = arith.constant 0 : index
    %c0_11 = arith.constant 0 : index
    %9 = vector.load %arg5[%c0_10, %c0_11] : memref<8x1xf32, #tpu.memory_space<vmem>>, vector<8x1xf32>
    %10 = vector.broadcast %9 : vector<8x1xf32> to vector<8x256xf32>
    %11 = arith.addf %8, %10 : vector<8x256xf32>
    %cst_12 = arith.constant 0.000000e+00 : f32
    %12 = vector.broadcast %cst_12 : f32 to vector<8x256xf32>
    %13 = arith.maximumf %11, %12 : vector<8x256xf32>
    %cst_13 = arith.constant 0.000000e+00 : f32
    %14 = vector.broadcast %cst_13 : f32 to vector<8x256xf32>
    %c17_i32 = arith.constant 17 : i32
    %15 = tpu.dynamic_rotate %13 by %c17_i32 dim 1 : vector<8x256xf32>, i32 -> vector<8x256xf32>
    %c0_14 = arith.constant 0 : index
    %c0_15 = arith.constant 0 : index
    %c0_16 = arith.constant 0 : index
    %16 = vector.load %arg6[%c0_14, %c0_15, %c0_16] : memref<63x8x256xf32, #tpu.memory_space<vmem>>, vector<1x8x256xf32>
    %17 = vector.shape_cast %16 : vector<1x8x256xf32> to vector<8x256xf32>
    %18 = arith.mulf %15, %17 : vector<8x256xf32>
    %19 = arith.addf %14, %18 : vector<8x256xf32>
    %c16_i32 = arith.constant 16 : i32
    %20 = tpu.dynamic_rotate %13 by %c16_i32 dim 1 : vector<8x256xf32>, i32 -> vector<8x256xf32>
    %c1 = arith.constant 1 : index
    %c0_17 = arith.constant 0 : index
    %c0_18 = arith.constant 0 : index
    %21 = vector.load %arg6[%c1, %c0_17, %c0_18] : memref<63x8x256xf32, #tpu.memory_space<vmem>>, vector<1x8x256xf32>
    %22 = vector.shape_cast %21 : vector<1x8x256xf32> to vector<8x256xf32>
    %23 = arith.mulf %20, %22 : vector<8x256xf32>
    %24 = arith.addf %19, %23 : vector<8x256xf32>
    %c15_i32 = arith.constant 15 : i32
    %25 = tpu.dynamic_rotate %13 by %c15_i32 dim 1 : vector<8x256xf32>, i32 -> vector<8x256xf32>
    %c2 = arith.constant 2 : index
    %c0_19 = arith.constant 0 : index
    %c0_20 = arith.constant 0 : index
    %26 = vector.load %arg6[%c2, %c0_19, %c0_20] : memref<63x8x256xf32, #tpu.memory_space<vmem>>, vector<1x8x256xf32>
    %27 = vector.shape_cast %26 : vector<1x8x256xf32> to vector<8x256xf32>
    %28 = arith.mulf %25, %27 : vector<8x256xf32>
    %29 = arith.addf %24, %28 : vector<8x256xf32>
    %c1_i32 = arith.constant 1 : i32
    %30 = tpu.dynamic_rotate %13 by %c1_i32 dim 1 : vector<8x256xf32>, i32 -> vector<8x256xf32>
    %c3 = arith.constant 3 : index
    %c0_21 = arith.constant 0 : index
    %c0_22 = arith.constant 0 : index
    %31 = vector.load %arg6[%c3, %c0_21, %c0_22] : memref<63x8x256xf32, #tpu.memory_space<vmem>>, vector<1x8x256xf32>
    %32 = vector.shape_cast %31 : vector<1x8x256xf32> to vector<8x256xf32>
    %33 = arith.mulf %30, %32 : vector<8x256xf32>
    %34 = arith.addf %29, %33 : vector<8x256xf32>
    %c4 = arith.constant 4 : index
    %c0_23 = arith.constant 0 : index
    %c0_24 = arith.constant 0 : index
    %35 = vector.load %arg6[%c4, %c0_23, %c0_24] : memref<63x8x256xf32, #tpu.memory_space<vmem>>, vector<1x8x256xf32>
    %36 = vector.shape_cast %35 : vector<1x8x256xf32> to vector<8x256xf32>
    %37 = arith.mulf %13, %36 : vector<8x256xf32>
    %38 = arith.addf %34, %37 : vector<8x256xf32>
    %c255_i32 = arith.constant 255 : i32
    %39 = tpu.dynamic_rotate %13 by %c255_i32 dim 1 : vector<8x256xf32>, i32 -> vector<8x256xf32>
    %c5 = arith.constant 5 : index
    %c0_25 = arith.constant 0 : index
    %c0_26 = arith.constant 0 : index
    %40 = vector.load %arg6[%c5, %c0_25, %c0_26] : memref<63x8x256xf32, #tpu.memory_space<vmem>>, vector<1x8x256xf32>
    %41 = vector.shape_cast %40 : vector<1x8x256xf32> to vector<8x256xf32>
    %42 = arith.mulf %39, %41 : vector<8x256xf32>
    %43 = arith.addf %38, %42 : vector<8x256xf32>
    %c241_i32 = arith.constant 241 : i32
    %44 = tpu.dynamic_rotate %13 by %c241_i32 dim 1 : vector<8x256xf32>, i32 -> vector<8x256xf32>
    %c6 = arith.constant 6 : index
    %c0_27 = arith.constant 0 : index
    %c0_28 = arith.constant 0 : index
    %45 = vector.load %arg6[%c6, %c0_27, %c0_28] : memref<63x8x256xf32, #tpu.memory_space<vmem>>, vector<1x8x256xf32>
    %46 = vector.shape_cast %45 : vector<1x8x256xf32> to vector<8x256xf32>
    %47 = arith.mulf %44, %46 : vector<8x256xf32>
    %48 = arith.addf %43, %47 : vector<8x256xf32>
    %c240_i32 = arith.constant 240 : i32
    %49 = tpu.dynamic_rotate %13 by %c240_i32 dim 1 : vector<8x256xf32>, i32 -> vector<8x256xf32>
    %c7 = arith.constant 7 : index
    %c0_29 = arith.constant 0 : index
    %c0_30 = arith.constant 0 : index
    %50 = vector.load %arg6[%c7, %c0_29, %c0_30] : memref<63x8x256xf32, #tpu.memory_space<vmem>>, vector<1x8x256xf32>
    %51 = vector.shape_cast %50 : vector<1x8x256xf32> to vector<8x256xf32>
    %52 = arith.mulf %49, %51 : vector<8x256xf32>
    %53 = arith.addf %48, %52 : vector<8x256xf32>
    %c239_i32 = arith.constant 239 : i32
    %54 = tpu.dynamic_rotate %13 by %c239_i32 dim 1 : vector<8x256xf32>, i32 -> vector<8x256xf32>
    %c8 = arith.constant 8 : index
    %c0_31 = arith.constant 0 : index
    %c0_32 = arith.constant 0 : index
    %55 = vector.load %arg6[%c8, %c0_31, %c0_32] : memref<63x8x256xf32, #tpu.memory_space<vmem>>, vector<1x8x256xf32>
    %56 = vector.shape_cast %55 : vector<1x8x256xf32> to vector<8x256xf32>
    %57 = arith.mulf %54, %56 : vector<8x256xf32>
    %58 = arith.addf %53, %57 : vector<8x256xf32>
    %c0_33 = arith.constant 0 : index
    %c0_34 = arith.constant 0 : index
    %c0_35 = arith.constant 0 : index
    %59 = vector.load %arg7[%c0_33, %c0_34, %c0_35] : memref<7x8x1xf32, #tpu.memory_space<vmem>>, vector<1x8x1xf32>
    %60 = vector.shape_cast %59 : vector<1x8x1xf32> to vector<8x1xf32>
    %61 = vector.broadcast %60 : vector<8x1xf32> to vector<8x256xf32>
    %62 = arith.addf %58, %61 : vector<8x256xf32>
    %c0_36 = arith.constant 0 : index
    %c0_37 = arith.constant 0 : index
    %c0_38 = arith.constant 0 : index
    %63 = vector.load %arg8[%c0_36, %c0_37, %c0_38] : memref<7x8x8xf32, #tpu.memory_space<vmem>>, vector<1x8x8xf32>
    %64 = vector.shape_cast %63 : vector<1x8x8xf32> to vector<8x8xf32>
    %cst_39 = arith.constant dense<0.000000e+00> : vector<8x256xf32>
    %65 = tpu.matmul %64, %62, %cst_39 {dimension_numbers = #tpu.dot_dimension_numbers<[1], [0], [0], [1], [0, 0, 1, 1], [], []>} : vector<8x8xf32>, vector<8x256xf32>, vector<8x256xf32> -> vector<8x256xf32>
    %c0_40 = arith.constant 0 : index
    %c0_41 = arith.constant 0 : index
    %c0_42 = arith.constant 0 : index
    %66 = vector.load %arg9[%c0_40, %c0_41, %c0_42] : memref<7x8x1xf32, #tpu.memory_space<vmem>>, vector<1x8x1xf32>
    %67 = vector.shape_cast %66 : vector<1x8x1xf32> to vector<8x1xf32>
    %68 = vector.broadcast %67 : vector<8x1xf32> to vector<8x256xf32>
    %69 = arith.addf %65, %68 : vector<8x256xf32>
    %cst_43 = arith.constant 0.000000e+00 : f32
    %70 = vector.broadcast %cst_43 : f32 to vector<8x256xf32>
    %71 = arith.maximumf %69, %70 : vector<8x256xf32>
    %72 = arith.subf %1, %3 : vector<8x256xf32>
    %73 = math.absf %72 : vector<8x256xf32>
    %74 = arith.addf %1, %3 : vector<8x256xf32>
    %75 = arith.mulf %1, %3 : vector<8x256xf32>
    %cst_44 = arith.constant dense<0xFF800000> : vector<256xf32>
    %76 = vector.multi_reduction <maximumf>, %73, %cst_44 [0] : vector<8x256xf32> to vector<256xf32>
    %77 = vector.shape_cast %76 : vector<256xf32> to vector<1x256xf32>
    %cst_45 = arith.constant 5.000000e-01 : f32
    %78 = vector.broadcast %cst_45 : f32 to vector<1x256xf32>
    %79 = arith.mulf %78, %77 : vector<1x256xf32>
    %cst_46 = arith.constant dense<0.000000e+00> : vector<256xf32>
    %80 = vector.multi_reduction <add>, %73, %cst_46 [0] : vector<8x256xf32> to vector<256xf32>
    %81 = vector.shape_cast %80 : vector<256xf32> to vector<1x256xf32>
    %cst_47 = arith.constant 8.000000e+00 : f32
    %82 = vector.broadcast %cst_47 : f32 to vector<1x256xf32>
    %83 = arith.divf %81, %82 : vector<1x256xf32>
    %cst_48 = arith.constant 5.000000e-01 : f32
    %84 = vector.broadcast %cst_48 : f32 to vector<1x256xf32>
    %85 = arith.mulf %84, %83 : vector<1x256xf32>
    %86 = arith.addf %79, %85 : vector<1x256xf32>
    %cst_49 = arith.constant dense<0xFF800000> : vector<256xf32>
    %87 = vector.multi_reduction <maximumf>, %74, %cst_49 [0] : vector<8x256xf32> to vector<256xf32>
    %88 = vector.shape_cast %87 : vector<256xf32> to vector<1x256xf32>
    %cst_50 = arith.constant 5.000000e-01 : f32
    %89 = vector.broadcast %cst_50 : f32 to vector<1x256xf32>
    %90 = arith.mulf %89, %88 : vector<1x256xf32>
    %cst_51 = arith.constant dense<0.000000e+00> : vector<256xf32>
    %91 = vector.multi_reduction <add>, %74, %cst_51 [0] : vector<8x256xf32> to vector<256xf32>
    %92 = vector.shape_cast %91 : vector<256xf32> to vector<1x256xf32>
    %cst_52 = arith.constant 8.000000e+00 : f32
    %93 = vector.broadcast %cst_52 : f32 to vector<1x256xf32>
    %94 = arith.divf %92, %93 : vector<1x256xf32>
    %cst_53 = arith.constant 5.000000e-01 : f32
    %95 = vector.broadcast %cst_53 : f32 to vector<1x256xf32>
    %96 = arith.mulf %95, %94 : vector<1x256xf32>
    %97 = arith.addf %90, %96 : vector<1x256xf32>
    %cst_54 = arith.constant dense<0xFF800000> : vector<256xf32>
    %98 = vector.multi_reduction <maximumf>, %75, %cst_54 [0] : vector<8x256xf32> to vector<256xf32>
    %99 = vector.shape_cast %98 : vector<256xf32> to vector<1x256xf32>
    %cst_55 = arith.constant 5.000000e-01 : f32
    %100 = vector.broadcast %cst_55 : f32 to vector<1x256xf32>
    %101 = arith.mulf %100, %99 : vector<1x256xf32>
    %cst_56 = arith.constant dense<0.000000e+00> : vector<256xf32>
    %102 = vector.multi_reduction <add>, %75, %cst_56 [0] : vector<8x256xf32> to vector<256xf32>
    %103 = vector.shape_cast %102 : vector<256xf32> to vector<1x256xf32>
    %cst_57 = arith.constant 8.000000e+00 : f32
    %104 = vector.broadcast %cst_57 : f32 to vector<1x256xf32>
    %105 = arith.divf %103, %104 : vector<1x256xf32>
    %cst_58 = arith.constant 5.000000e-01 : f32
    %106 = vector.broadcast %cst_58 : f32 to vector<1x256xf32>
    %107 = arith.mulf %106, %105 : vector<1x256xf32>
    %108 = arith.addf %101, %107 : vector<1x256xf32>
    %cst_59 = arith.constant 0.000000e+00 : f32
    %109 = vector.broadcast %cst_59 : f32 to vector<5x256xf32>
    %110 = tpu.concatenate %86, %97, %108, %109 in 0 : vector<1x256xf32>, vector<1x256xf32>, vector<1x256xf32>, vector<5x256xf32> -> vector<8x256xf32>
    %cst_60 = arith.constant 0.000000e+00 : f32
    %111 = vector.broadcast %cst_60 : f32 to vector<8x256xf32>
    %c51_i32 = arith.constant 51 : i32
    %112 = tpu.dynamic_rotate %110 by %c51_i32 dim 1 : vector<8x256xf32>, i32 -> vector<8x256xf32>
    %c0_61 = arith.constant 0 : index
    %c0_62 = arith.constant 0 : index
    %c0_63 = arith.constant 0 : index
    %113 = vector.load %arg10[%c0_61, %c0_62, %c0_63] : memref<49x8x256xf32, #tpu.memory_space<vmem>>, vector<1x8x256xf32>
    %114 = vector.shape_cast %113 : vector<1x8x256xf32> to vector<8x256xf32>
    %115 = arith.mulf %112, %114 : vector<8x256xf32>
    %116 = arith.addf %111, %115 : vector<8x256xf32>
    %c50_i32 = arith.constant 50 : i32
    %117 = tpu.dynamic_rotate %110 by %c50_i32 dim 1 : vector<8x256xf32>, i32 -> vector<8x256xf32>
    %c1_64 = arith.constant 1 : index
    %c0_65 = arith.constant 0 : index
    %c0_66 = arith.constant 0 : index
    %118 = vector.load %arg10[%c1_64, %c0_65, %c0_66] : memref<49x8x256xf32, #tpu.memory_space<vmem>>, vector<1x8x256xf32>
    %119 = vector.shape_cast %118 : vector<1x8x256xf32> to vector<8x256xf32>
    %120 = arith.mulf %117, %119 : vector<8x256xf32>
    %121 = arith.addf %116, %120 : vector<8x256xf32>
    %c49_i32 = arith.constant 49 : i32
    %122 = tpu.dynamic_rotate %110 by %c49_i32 dim 1 : vector<8x256xf32>, i32 -> vector<8x256xf32>
    %c2_67 = arith.constant 2 : index
    %c0_68 = arith.constant 0 : index
    %c0_69 = arith.constant 0 : index
    %123 = vector.load %arg10[%c2_67, %c0_68, %c0_69] : memref<49x8x256xf32, #tpu.memory_space<vmem>>, vector<1x8x256xf32>
    %124 = vector.shape_cast %123 : vector<1x8x256xf32> to vector<8x256xf32>
    %125 = arith.mulf %122, %124 : vector<8x256xf32>
    %126 = arith.addf %121, %125 : vector<8x256xf32>
    %c48_i32 = arith.constant 48 : i32
    %127 = tpu.dynamic_rotate %110 by %c48_i32 dim 1 : vector<8x256xf32>, i32 -> vector<8x256xf32>
    %c3_70 = arith.constant 3 : index
    %c0_71 = arith.constant 0 : index
    %c0_72 = arith.constant 0 : index
    %128 = vector.load %arg10[%c3_70, %c0_71, %c0_72] : memref<49x8x256xf32, #tpu.memory_space<vmem>>, vector<1x8x256xf32>
    %129 = vector.shape_cast %128 : vector<1x8x256xf32> to vector<8x256xf32>
    %130 = arith.mulf %127, %129 : vector<8x256xf32>
    %131 = arith.addf %126, %130 : vector<8x256xf32>
    %c47_i32 = arith.constant 47 : i32
    %132 = tpu.dynamic_rotate %110 by %c47_i32 dim 1 : vector<8x256xf32>, i32 -> vector<8x256xf32>
    %c4_73 = arith.constant 4 : index
    %c0_74 = arith.constant 0 : index
    %c0_75 = arith.constant 0 : index
    %133 = vector.load %arg10[%c4_73, %c0_74, %c0_75] : memref<49x8x256xf32, #tpu.memory_space<vmem>>, vector<1x8x256xf32>
    %134 = vector.shape_cast %133 : vector<1x8x256xf32> to vector<8x256xf32>
    %135 = arith.mulf %132, %134 : vector<8x256xf32>
    %136 = arith.addf %131, %135 : vector<8x256xf32>
    %c46_i32 = arith.constant 46 : i32
    %137 = tpu.dynamic_rotate %110 by %c46_i32 dim 1 : vector<8x256xf32>, i32 -> vector<8x256xf32>
    %c5_76 = arith.constant 5 : index
    %c0_77 = arith.constant 0 : index
    %c0_78 = arith.constant 0 : index
    %138 = vector.load %arg10[%c5_76, %c0_77, %c0_78] : memref<49x8x256xf32, #tpu.memory_space<vmem>>, vector<1x8x256xf32>
    %139 = vector.shape_cast %138 : vector<1x8x256xf32> to vector<8x256xf32>
    %140 = arith.mulf %137, %139 : vector<8x256xf32>
    %141 = arith.addf %136, %140 : vector<8x256xf32>
    %c45_i32 = arith.constant 45 : i32
    %142 = tpu.dynamic_rotate %110 by %c45_i32 dim 1 : vector<8x256xf32>, i32 -> vector<8x256xf32>
    %c6_79 = arith.constant 6 : index
    %c0_80 = arith.constant 0 : index
    %c0_81 = arith.constant 0 : index
    %143 = vector.load %arg10[%c6_79, %c0_80, %c0_81] : memref<49x8x256xf32, #tpu.memory_space<vmem>>, vector<1x8x256xf32>
    %144 = vector.shape_cast %143 : vector<1x8x256xf32> to vector<8x256xf32>
    %145 = arith.mulf %142, %144 : vector<8x256xf32>
    %146 = arith.addf %141, %145 : vector<8x256xf32>
    %c35_i32 = arith.constant 35 : i32
    %147 = tpu.dynamic_rotate %110 by %c35_i32 dim 1 : vector<8x256xf32>, i32 -> vector<8x256xf32>
    %c7_82 = arith.constant 7 : index
    %c0_83 = arith.constant 0 : index
    %c0_84 = arith.constant 0 : index
    %148 = vector.load %arg10[%c7_82, %c0_83, %c0_84] : memref<49x8x256xf32, #tpu.memory_space<vmem>>, vector<1x8x256xf32>
    %149 = vector.shape_cast %148 : vector<1x8x256xf32> to vector<8x256xf32>
    %150 = arith.mulf %147, %149 : vector<8x256xf32>
    %151 = arith.addf %146, %150 : vector<8x256xf32>
    %c34_i32 = arith.constant 34 : i32
    %152 = tpu.dynamic_rotate %110 by %c34_i32 dim 1 : vector<8x256xf32>, i32 -> vector<8x256xf32>
    %c8_85 = arith.constant 8 : index
    %c0_86 = arith.constant 0 : index
    %c0_87 = arith.constant 0 : index
    %153 = vector.load %arg10[%c8_85, %c0_86, %c0_87] : memref<49x8x256xf32, #tpu.memory_space<vmem>>, vector<1x8x256xf32>
    %154 = vector.shape_cast %153 : vector<1x8x256xf32> to vector<8x256xf32>
    %155 = arith.mulf %152, %154 : vector<8x256xf32>
    %156 = arith.addf %151, %155 : vector<8x256xf32>
    %c33_i32 = arith.constant 33 : i32
    %157 = tpu.dynamic_rotate %110 by %c33_i32 dim 1 : vector<8x256xf32>, i32 -> vector<8x256xf32>
    %c9 = arith.constant 9 : index
    %c0_88 = arith.constant 0 : index
    %c0_89 = arith.constant 0 : index
    %158 = vector.load %arg10[%c9, %c0_88, %c0_89] : memref<49x8x256xf32, #tpu.memory_space<vmem>>, vector<1x8x256xf32>
    %159 = vector.shape_cast %158 : vector<1x8x256xf32> to vector<8x256xf32>
    %160 = arith.mulf %157, %159 : vector<8x256xf32>
    %161 = arith.addf %156, %160 : vector<8x256xf32>
    %c32_i32 = arith.constant 32 : i32
    %162 = tpu.dynamic_rotate %110 by %c32_i32 dim 1 : vector<8x256xf32>, i32 -> vector<8x256xf32>
    %c10 = arith.constant 10 : index
    %c0_90 = arith.constant 0 : index
    %c0_91 = arith.constant 0 : index
    %163 = vector.load %arg10[%c10, %c0_90, %c0_91] : memref<49x8x256xf32, #tpu.memory_space<vmem>>, vector<1x8x256xf32>
    %164 = vector.shape_cast %163 : vector<1x8x256xf32> to vector<8x256xf32>
    %165 = arith.mulf %162, %164 : vector<8x256xf32>
    %166 = arith.addf %161, %165 : vector<8x256xf32>
    %c31_i32 = arith.constant 31 : i32
    %167 = tpu.dynamic_rotate %110 by %c31_i32 dim 1 : vector<8x256xf32>, i32 -> vector<8x256xf32>
    %c11 = arith.constant 11 : index
    %c0_92 = arith.constant 0 : index
    %c0_93 = arith.constant 0 : index
    %168 = vector.load %arg10[%c11, %c0_92, %c0_93] : memref<49x8x256xf32, #tpu.memory_space<vmem>>, vector<1x8x256xf32>
    %169 = vector.shape_cast %168 : vector<1x8x256xf32> to vector<8x256xf32>
    %170 = arith.mulf %167, %169 : vector<8x256xf32>
    %171 = arith.addf %166, %170 : vector<8x256xf32>
    %c30_i32 = arith.constant 30 : i32
    %172 = tpu.dynamic_rotate %110 by %c30_i32 dim 1 : vector<8x256xf32>, i32 -> vector<8x256xf32>
    %c12 = arith.constant 12 : index
    %c0_94 = arith.constant 0 : index
    %c0_95 = arith.constant 0 : index
    %173 = vector.load %arg10[%c12, %c0_94, %c0_95] : memref<49x8x256xf32, #tpu.memory_space<vmem>>, vector<1x8x256xf32>
    %174 = vector.shape_cast %173 : vector<1x8x256xf32> to vector<8x256xf32>
    %175 = arith.mulf %172, %174 : vector<8x256xf32>
    %176 = arith.addf %171, %175 : vector<8x256xf32>
    %c29_i32 = arith.constant 29 : i32
    %177 = tpu.dynamic_rotate %110 by %c29_i32 dim 1 : vector<8x256xf32>, i32 -> vector<8x256xf32>
    %c13 = arith.constant 13 : index
    %c0_96 = arith.constant 0 : index
    %c0_97 = arith.constant 0 : index
    %178 = vector.load %arg10[%c13, %c0_96, %c0_97] : memref<49x8x256xf32, #tpu.memory_space<vmem>>, vector<1x8x256xf32>
    %179 = vector.shape_cast %178 : vector<1x8x256xf32> to vector<8x256xf32>
    %180 = arith.mulf %177, %179 : vector<8x256xf32>
    %181 = arith.addf %176, %180 : vector<8x256xf32>
    %c19_i32 = arith.constant 19 : i32
    %182 = tpu.dynamic_rotate %110 by %c19_i32 dim 1 : vector<8x256xf32>, i32 -> vector<8x256xf32>
    %c14 = arith.constant 14 : index
    %c0_98 = arith.constant 0 : index
    %c0_99 = arith.constant 0 : index
    %183 = vector.load %arg10[%c14, %c0_98, %c0_99] : memref<49x8x256xf32, #tpu.memory_space<vmem>>, vector<1x8x256xf32>
    %184 = vector.shape_cast %183 : vector<1x8x256xf32> to vector<8x256xf32>
    %185 = arith.mulf %182, %184 : vector<8x256xf32>
    %186 = arith.addf %181, %185 : vector<8x256xf32>
    %c18_i32 = arith.constant 18 : i32
    %187 = tpu.dynamic_rotate %110 by %c18_i32 dim 1 : vector<8x256xf32>, i32 -> vector<8x256xf32>
    %c15 = arith.constant 15 : index
    %c0_100 = arith.constant 0 : index
    %c0_101 = arith.constant 0 : index
    %188 = vector.load %arg10[%c15, %c0_100, %c0_101] : memref<49x8x256xf32, #tpu.memory_space<vmem>>, vector<1x8x256xf32>
    %189 = vector.shape_cast %188 : vector<1x8x256xf32> to vector<8x256xf32>
    %190 = arith.mulf %187, %189 : vector<8x256xf32>
    %191 = arith.addf %186, %190 : vector<8x256xf32>
    %c17_i32_102 = arith.constant 17 : i32
    %192 = tpu.dynamic_rotate %110 by %c17_i32_102 dim 1 : vector<8x256xf32>, i32 -> vector<8x256xf32>
    %c16 = arith.constant 16 : index
    %c0_103 = arith.constant 0 : index
    %c0_104 = arith.constant 0 : index
    %193 = vector.load %arg10[%c16, %c0_103, %c0_104] : memref<49x8x256xf32, #tpu.memory_space<vmem>>, vector<1x8x256xf32>
    %194 = vector.shape_cast %193 : vector<1x8x256xf32> to vector<8x256xf32>
    %195 = arith.mulf %192, %194 : vector<8x256xf32>
    %196 = arith.addf %191, %195 : vector<8x256xf32>
    %c16_i32_105 = arith.constant 16 : i32
    %197 = tpu.dynamic_rotate %110 by %c16_i32_105 dim 1 : vector<8x256xf32>, i32 -> vector<8x256xf32>
    %c17 = arith.constant 17 : index
    %c0_106 = arith.constant 0 : index
    %c0_107 = arith.constant 0 : index
    %198 = vector.load %arg10[%c17, %c0_106, %c0_107] : memref<49x8x256xf32, #tpu.memory_space<vmem>>, vector<1x8x256xf32>
    %199 = vector.shape_cast %198 : vector<1x8x256xf32> to vector<8x256xf32>
    %200 = arith.mulf %197, %199 : vector<8x256xf32>
    %201 = arith.addf %196, %200 : vector<8x256xf32>
    %c15_i32_108 = arith.constant 15 : i32
    %202 = tpu.dynamic_rotate %110 by %c15_i32_108 dim 1 : vector<8x256xf32>, i32 -> vector<8x256xf32>
    %c18 = arith.constant 18 : index
    %c0_109 = arith.constant 0 : index
    %c0_110 = arith.constant 0 : index
    %203 = vector.load %arg10[%c18, %c0_109, %c0_110] : memref<49x8x256xf32, #tpu.memory_space<vmem>>, vector<1x8x256xf32>
    %204 = vector.shape_cast %203 : vector<1x8x256xf32> to vector<8x256xf32>
    %205 = arith.mulf %202, %204 : vector<8x256xf32>
    %206 = arith.addf %201, %205 : vector<8x256xf32>
    %c14_i32 = arith.constant 14 : i32
    %207 = tpu.dynamic_rotate %110 by %c14_i32 dim 1 : vector<8x256xf32>, i32 -> vector<8x256xf32>
    %c19 = arith.constant 19 : index
    %c0_111 = arith.constant 0 : index
    %c0_112 = arith.constant 0 : index
    %208 = vector.load %arg10[%c19, %c0_111, %c0_112] : memref<49x8x256xf32, #tpu.memory_space<vmem>>, vector<1x8x256xf32>
    %209 = vector.shape_cast %208 : vector<1x8x256xf32> to vector<8x256xf32>
    %210 = arith.mulf %207, %209 : vector<8x256xf32>
    %211 = arith.addf %206, %210 : vector<8x256xf32>
    %c13_i32 = arith.constant 13 : i32
    %212 = tpu.dynamic_rotate %110 by %c13_i32 dim 1 : vector<8x256xf32>, i32 -> vector<8x256xf32>
    %c20 = arith.constant 20 : index
    %c0_113 = arith.constant 0 : index
    %c0_114 = arith.constant 0 : index
    %213 = vector.load %arg10[%c20, %c0_113, %c0_114] : memref<49x8x256xf32, #tpu.memory_space<vmem>>, vector<1x8x256xf32>
    %214 = vector.shape_cast %213 : vector<1x8x256xf32> to vector<8x256xf32>
    %215 = arith.mulf %212, %214 : vector<8x256xf32>
    %216 = arith.addf %211, %215 : vector<8x256xf32>
    %c3_i32 = arith.constant 3 : i32
    %217 = tpu.dynamic_rotate %110 by %c3_i32 dim 1 : vector<8x256xf32>, i32 -> vector<8x256xf32>
    %c21 = arith.constant 21 : index
    %c0_115 = arith.constant 0 : index
    %c0_116 = arith.constant 0 : index
    %218 = vector.load %arg10[%c21, %c0_115, %c0_116] : memref<49x8x256xf32, #tpu.memory_space<vmem>>, vector<1x8x256xf32>
    %219 = vector.shape_cast %218 : vector<1x8x256xf32> to vector<8x256xf32>
    %220 = arith.mulf %217, %219 : vector<8x256xf32>
    %221 = arith.addf %216, %220 : vector<8x256xf32>
    %c2_i32 = arith.constant 2 : i32
    %222 = tpu.dynamic_rotate %110 by %c2_i32 dim 1 : vector<8x256xf32>, i32 -> vector<8x256xf32>
    %c22 = arith.constant 22 : index
    %c0_117 = arith.constant 0 : index
    %c0_118 = arith.constant 0 : index
    %223 = vector.load %arg10[%c22, %c0_117, %c0_118] : memref<49x8x256xf32, #tpu.memory_space<vmem>>, vector<1x8x256xf32>
    %224 = vector.shape_cast %223 : vector<1x8x256xf32> to vector<8x256xf32>
    %225 = arith.mulf %222, %224 : vector<8x256xf32>
    %226 = arith.addf %221, %225 : vector<8x256xf32>
    %c1_i32_119 = arith.constant 1 : i32
    %227 = tpu.dynamic_rotate %110 by %c1_i32_119 dim 1 : vector<8x256xf32>, i32 -> vector<8x256xf32>
    %c23 = arith.constant 23 : index
    %c0_120 = arith.constant 0 : index
    %c0_121 = arith.constant 0 : index
    %228 = vector.load %arg10[%c23, %c0_120, %c0_121] : memref<49x8x256xf32, #tpu.memory_space<vmem>>, vector<1x8x256xf32>
    %229 = vector.shape_cast %228 : vector<1x8x256xf32> to vector<8x256xf32>
    %230 = arith.mulf %227, %229 : vector<8x256xf32>
    %231 = arith.addf %226, %230 : vector<8x256xf32>
    %c24 = arith.constant 24 : index
    %c0_122 = arith.constant 0 : index
    %c0_123 = arith.constant 0 : index
    %232 = vector.load %arg10[%c24, %c0_122, %c0_123] : memref<49x8x256xf32, #tpu.memory_space<vmem>>, vector<1x8x256xf32>
    %233 = vector.shape_cast %232 : vector<1x8x256xf32> to vector<8x256xf32>
    %234 = arith.mulf %110, %233 : vector<8x256xf32>
    %235 = arith.addf %231, %234 : vector<8x256xf32>
    %c255_i32_124 = arith.constant 255 : i32
    %236 = tpu.dynamic_rotate %110 by %c255_i32_124 dim 1 : vector<8x256xf32>, i32 -> vector<8x256xf32>
    %c25 = arith.constant 25 : index
    %c0_125 = arith.constant 0 : index
    %c0_126 = arith.constant 0 : index
    %237 = vector.load %arg10[%c25, %c0_125, %c0_126] : memref<49x8x256xf32, #tpu.memory_space<vmem>>, vector<1x8x256xf32>
    %238 = vector.shape_cast %237 : vector<1x8x256xf32> to vector<8x256xf32>
    %239 = arith.mulf %236, %238 : vector<8x256xf32>
    %240 = arith.addf %235, %239 : vector<8x256xf32>
    %c254_i32 = arith.constant 254 : i32
    %241 = tpu.dynamic_rotate %110 by %c254_i32 dim 1 : vector<8x256xf32>, i32 -> vector<8x256xf32>
    %c26 = arith.constant 26 : index
    %c0_127 = arith.constant 0 : index
    %c0_128 = arith.constant 0 : index
    %242 = vector.load %arg10[%c26, %c0_127, %c0_128] : memref<49x8x256xf32, #tpu.memory_space<vmem>>, vector<1x8x256xf32>
    %243 = vector.shape_cast %242 : vector<1x8x256xf32> to vector<8x256xf32>
    %244 = arith.mulf %241, %243 : vector<8x256xf32>
    %245 = arith.addf %240, %244 : vector<8x256xf32>
    %c253_i32 = arith.constant 253 : i32
    %246 = tpu.dynamic_rotate %110 by %c253_i32 dim 1 : vector<8x256xf32>, i32 -> vector<8x256xf32>
    %c27 = arith.constant 27 : index
    %c0_129 = arith.constant 0 : index
    %c0_130 = arith.constant 0 : index
    %247 = vector.load %arg10[%c27, %c0_129, %c0_130] : memref<49x8x256xf32, #tpu.memory_space<vmem>>, vector<1x8x256xf32>
    %248 = vector.shape_cast %247 : vector<1x8x256xf32> to vector<8x256xf32>
    %249 = arith.mulf %246, %248 : vector<8x256xf32>
    %250 = arith.addf %245, %249 : vector<8x256xf32>
    %c243_i32 = arith.constant 243 : i32
    %251 = tpu.dynamic_rotate %110 by %c243_i32 dim 1 : vector<8x256xf32>, i32 -> vector<8x256xf32>
    %c28 = arith.constant 28 : index
    %c0_131 = arith.constant 0 : index
    %c0_132 = arith.constant 0 : index
    %252 = vector.load %arg10[%c28, %c0_131, %c0_132] : memref<49x8x256xf32, #tpu.memory_space<vmem>>, vector<1x8x256xf32>
    %253 = vector.shape_cast %252 : vector<1x8x256xf32> to vector<8x256xf32>
    %254 = arith.mulf %251, %253 : vector<8x256xf32>
    %255 = arith.addf %250, %254 : vector<8x256xf32>
    %c242_i32 = arith.constant 242 : i32
    %256 = tpu.dynamic_rotate %110 by %c242_i32 dim 1 : vector<8x256xf32>, i32 -> vector<8x256xf32>
    %c29 = arith.constant 29 : index
    %c0_133 = arith.constant 0 : index
    %c0_134 = arith.constant 0 : index
    %257 = vector.load %arg10[%c29, %c0_133, %c0_134] : memref<49x8x256xf32, #tpu.memory_space<vmem>>, vector<1x8x256xf32>
    %258 = vector.shape_cast %257 : vector<1x8x256xf32> to vector<8x256xf32>
    %259 = arith.mulf %256, %258 : vector<8x256xf32>
    %260 = arith.addf %255, %259 : vector<8x256xf32>
    %c241_i32_135 = arith.constant 241 : i32
    %261 = tpu.dynamic_rotate %110 by %c241_i32_135 dim 1 : vector<8x256xf32>, i32 -> vector<8x256xf32>
    %c30 = arith.constant 30 : index
    %c0_136 = arith.constant 0 : index
    %c0_137 = arith.constant 0 : index
    %262 = vector.load %arg10[%c30, %c0_136, %c0_137] : memref<49x8x256xf32, #tpu.memory_space<vmem>>, vector<1x8x256xf32>
    %263 = vector.shape_cast %262 : vector<1x8x256xf32> to vector<8x256xf32>
    %264 = arith.mulf %261, %263 : vector<8x256xf32>
    %265 = arith.addf %260, %264 : vector<8x256xf32>
    %c240_i32_138 = arith.constant 240 : i32
    %266 = tpu.dynamic_rotate %110 by %c240_i32_138 dim 1 : vector<8x256xf32>, i32 -> vector<8x256xf32>
    %c31 = arith.constant 31 : index
    %c0_139 = arith.constant 0 : index
    %c0_140 = arith.constant 0 : index
    %267 = vector.load %arg10[%c31, %c0_139, %c0_140] : memref<49x8x256xf32, #tpu.memory_space<vmem>>, vector<1x8x256xf32>
    %268 = vector.shape_cast %267 : vector<1x8x256xf32> to vector<8x256xf32>
    %269 = arith.mulf %266, %268 : vector<8x256xf32>
    %270 = arith.addf %265, %269 : vector<8x256xf32>
    %c239_i32_141 = arith.constant 239 : i32
    %271 = tpu.dynamic_rotate %110 by %c239_i32_141 dim 1 : vector<8x256xf32>, i32 -> vector<8x256xf32>
    %c32 = arith.constant 32 : index
    %c0_142 = arith.constant 0 : index
    %c0_143 = arith.constant 0 : index
    %272 = vector.load %arg10[%c32, %c0_142, %c0_143] : memref<49x8x256xf32, #tpu.memory_space<vmem>>, vector<1x8x256xf32>
    %273 = vector.shape_cast %272 : vector<1x8x256xf32> to vector<8x256xf32>
    %274 = arith.mulf %271, %273 : vector<8x256xf32>
    %275 = arith.addf %270, %274 : vector<8x256xf32>
    %c238_i32 = arith.constant 238 : i32
    %276 = tpu.dynamic_rotate %110 by %c238_i32 dim 1 : vector<8x256xf32>, i32 -> vector<8x256xf32>
    %c33 = arith.constant 33 : index
    %c0_144 = arith.constant 0 : index
    %c0_145 = arith.constant 0 : index
    %277 = vector.load %arg10[%c33, %c0_144, %c0_145] : memref<49x8x256xf32, #tpu.memory_space<vmem>>, vector<1x8x256xf32>
    %278 = vector.shape_cast %277 : vector<1x8x256xf32> to vector<8x256xf32>
    %279 = arith.mulf %276, %278 : vector<8x256xf32>
    %280 = arith.addf %275, %279 : vector<8x256xf32>
    %c237_i32 = arith.constant 237 : i32
    %281 = tpu.dynamic_rotate %110 by %c237_i32 dim 1 : vector<8x256xf32>, i32 -> vector<8x256xf32>
    %c34 = arith.constant 34 : index
    %c0_146 = arith.constant 0 : index
    %c0_147 = arith.constant 0 : index
    %282 = vector.load %arg10[%c34, %c0_146, %c0_147] : memref<49x8x256xf32, #tpu.memory_space<vmem>>, vector<1x8x256xf32>
    %283 = vector.shape_cast %282 : vector<1x8x256xf32> to vector<8x256xf32>
    %284 = arith.mulf %281, %283 : vector<8x256xf32>
    %285 = arith.addf %280, %284 : vector<8x256xf32>
    %c227_i32 = arith.constant 227 : i32
    %286 = tpu.dynamic_rotate %110 by %c227_i32 dim 1 : vector<8x256xf32>, i32 -> vector<8x256xf32>
    %c35 = arith.constant 35 : index
    %c0_148 = arith.constant 0 : index
    %c0_149 = arith.constant 0 : index
    %287 = vector.load %arg10[%c35, %c0_148, %c0_149] : memref<49x8x256xf32, #tpu.memory_space<vmem>>, vector<1x8x256xf32>
    %288 = vector.shape_cast %287 : vector<1x8x256xf32> to vector<8x256xf32>
    %289 = arith.mulf %286, %288 : vector<8x256xf32>
    %290 = arith.addf %285, %289 : vector<8x256xf32>
    %c226_i32 = arith.constant 226 : i32
    %291 = tpu.dynamic_rotate %110 by %c226_i32 dim 1 : vector<8x256xf32>, i32 -> vector<8x256xf32>
    %c36 = arith.constant 36 : index
    %c0_150 = arith.constant 0 : index
    %c0_151 = arith.constant 0 : index
    %292 = vector.load %arg10[%c36, %c0_150, %c0_151] : memref<49x8x256xf32, #tpu.memory_space<vmem>>, vector<1x8x256xf32>
    %293 = vector.shape_cast %292 : vector<1x8x256xf32> to vector<8x256xf32>
    %294 = arith.mulf %291, %293 : vector<8x256xf32>
    %295 = arith.addf %290, %294 : vector<8x256xf32>
    %c225_i32 = arith.constant 225 : i32
    %296 = tpu.dynamic_rotate %110 by %c225_i32 dim 1 : vector<8x256xf32>, i32 -> vector<8x256xf32>
    %c37 = arith.constant 37 : index
    %c0_152 = arith.constant 0 : index
    %c0_153 = arith.constant 0 : index
    %297 = vector.load %arg10[%c37, %c0_152, %c0_153] : memref<49x8x256xf32, #tpu.memory_space<vmem>>, vector<1x8x256xf32>
    %298 = vector.shape_cast %297 : vector<1x8x256xf32> to vector<8x256xf32>
    %299 = arith.mulf %296, %298 : vector<8x256xf32>
    %300 = arith.addf %295, %299 : vector<8x256xf32>
    %c224_i32 = arith.constant 224 : i32
    %301 = tpu.dynamic_rotate %110 by %c224_i32 dim 1 : vector<8x256xf32>, i32 -> vector<8x256xf32>
    %c38 = arith.constant 38 : index
    %c0_154 = arith.constant 0 : index
    %c0_155 = arith.constant 0 : index
    %302 = vector.load %arg10[%c38, %c0_154, %c0_155] : memref<49x8x256xf32, #tpu.memory_space<vmem>>, vector<1x8x256xf32>
    %303 = vector.shape_cast %302 : vector<1x8x256xf32> to vector<8x256xf32>
    %304 = arith.mulf %301, %303 : vector<8x256xf32>
    %305 = arith.addf %300, %304 : vector<8x256xf32>
    %c223_i32 = arith.constant 223 : i32
    %306 = tpu.dynamic_rotate %110 by %c223_i32 dim 1 : vector<8x256xf32>, i32 -> vector<8x256xf32>
    %c39 = arith.constant 39 : index
    %c0_156 = arith.constant 0 : index
    %c0_157 = arith.constant 0 : index
    %307 = vector.load %arg10[%c39, %c0_156, %c0_157] : memref<49x8x256xf32, #tpu.memory_space<vmem>>, vector<1x8x256xf32>
    %308 = vector.shape_cast %307 : vector<1x8x256xf32> to vector<8x256xf32>
    %309 = arith.mulf %306, %308 : vector<8x256xf32>
    %310 = arith.addf %305, %309 : vector<8x256xf32>
    %c222_i32 = arith.constant 222 : i32
    %311 = tpu.dynamic_rotate %110 by %c222_i32 dim 1 : vector<8x256xf32>, i32 -> vector<8x256xf32>
    %c40 = arith.constant 40 : index
    %c0_158 = arith.constant 0 : index
    %c0_159 = arith.constant 0 : index
    %312 = vector.load %arg10[%c40, %c0_158, %c0_159] : memref<49x8x256xf32, #tpu.memory_space<vmem>>, vector<1x8x256xf32>
    %313 = vector.shape_cast %312 : vector<1x8x256xf32> to vector<8x256xf32>
    %314 = arith.mulf %311, %313 : vector<8x256xf32>
    %315 = arith.addf %310, %314 : vector<8x256xf32>
    %c221_i32 = arith.constant 221 : i32
    %316 = tpu.dynamic_rotate %110 by %c221_i32 dim 1 : vector<8x256xf32>, i32 -> vector<8x256xf32>
    %c41 = arith.constant 41 : index
    %c0_160 = arith.constant 0 : index
    %c0_161 = arith.constant 0 : index
    %317 = vector.load %arg10[%c41, %c0_160, %c0_161] : memref<49x8x256xf32, #tpu.memory_space<vmem>>, vector<1x8x256xf32>
    %318 = vector.shape_cast %317 : vector<1x8x256xf32> to vector<8x256xf32>
    %319 = arith.mulf %316, %318 : vector<8x256xf32>
    %320 = arith.addf %315, %319 : vector<8x256xf32>
    %c211_i32 = arith.constant 211 : i32
    %321 = tpu.dynamic_rotate %110 by %c211_i32 dim 1 : vector<8x256xf32>, i32 -> vector<8x256xf32>
    %c42 = arith.constant 42 : index
    %c0_162 = arith.constant 0 : index
    %c0_163 = arith.constant 0 : index
    %322 = vector.load %arg10[%c42, %c0_162, %c0_163] : memref<49x8x256xf32, #tpu.memory_space<vmem>>, vector<1x8x256xf32>
    %323 = vector.shape_cast %322 : vector<1x8x256xf32> to vector<8x256xf32>
    %324 = arith.mulf %321, %323 : vector<8x256xf32>
    %325 = arith.addf %320, %324 : vector<8x256xf32>
    %c210_i32 = arith.constant 210 : i32
    %326 = tpu.dynamic_rotate %110 by %c210_i32 dim 1 : vector<8x256xf32>, i32 -> vector<8x256xf32>
    %c43 = arith.constant 43 : index
    %c0_164 = arith.constant 0 : index
    %c0_165 = arith.constant 0 : index
    %327 = vector.load %arg10[%c43, %c0_164, %c0_165] : memref<49x8x256xf32, #tpu.memory_space<vmem>>, vector<1x8x256xf32>
    %328 = vector.shape_cast %327 : vector<1x8x256xf32> to vector<8x256xf32>
    %329 = arith.mulf %326, %328 : vector<8x256xf32>
    %330 = arith.addf %325, %329 : vector<8x256xf32>
    %c209_i32 = arith.constant 209 : i32
    %331 = tpu.dynamic_rotate %110 by %c209_i32 dim 1 : vector<8x256xf32>, i32 -> vector<8x256xf32>
    %c44 = arith.constant 44 : index
    %c0_166 = arith.constant 0 : index
    %c0_167 = arith.constant 0 : index
    %332 = vector.load %arg10[%c44, %c0_166, %c0_167] : memref<49x8x256xf32, #tpu.memory_space<vmem>>, vector<1x8x256xf32>
    %333 = vector.shape_cast %332 : vector<1x8x256xf32> to vector<8x256xf32>
    %334 = arith.mulf %331, %333 : vector<8x256xf32>
    %335 = arith.addf %330, %334 : vector<8x256xf32>
    %c208_i32 = arith.constant 208 : i32
    %336 = tpu.dynamic_rotate %110 by %c208_i32 dim 1 : vector<8x256xf32>, i32 -> vector<8x256xf32>
    %c45 = arith.constant 45 : index
    %c0_168 = arith.constant 0 : index
    %c0_169 = arith.constant 0 : index
    %337 = vector.load %arg10[%c45, %c0_168, %c0_169] : memref<49x8x256xf32, #tpu.memory_space<vmem>>, vector<1x8x256xf32>
    %338 = vector.shape_cast %337 : vector<1x8x256xf32> to vector<8x256xf32>
    %339 = arith.mulf %336, %338 : vector<8x256xf32>
    %340 = arith.addf %335, %339 : vector<8x256xf32>
    %c207_i32 = arith.constant 207 : i32
    %341 = tpu.dynamic_rotate %110 by %c207_i32 dim 1 : vector<8x256xf32>, i32 -> vector<8x256xf32>
    %c46 = arith.constant 46 : index
    %c0_170 = arith.constant 0 : index
    %c0_171 = arith.constant 0 : index
    %342 = vector.load %arg10[%c46, %c0_170, %c0_171] : memref<49x8x256xf32, #tpu.memory_space<vmem>>, vector<1x8x256xf32>
    %343 = vector.shape_cast %342 : vector<1x8x256xf32> to vector<8x256xf32>
    %344 = arith.mulf %341, %343 : vector<8x256xf32>
    %345 = arith.addf %340, %344 : vector<8x256xf32>
    %c206_i32 = arith.constant 206 : i32
    %346 = tpu.dynamic_rotate %110 by %c206_i32 dim 1 : vector<8x256xf32>, i32 -> vector<8x256xf32>
    %c47 = arith.constant 47 : index
    %c0_172 = arith.constant 0 : index
    %c0_173 = arith.constant 0 : index
    %347 = vector.load %arg10[%c47, %c0_172, %c0_173] : memref<49x8x256xf32, #tpu.memory_space<vmem>>, vector<1x8x256xf32>
    %348 = vector.shape_cast %347 : vector<1x8x256xf32> to vector<8x256xf32>
    %349 = arith.mulf %346, %348 : vector<8x256xf32>
    %350 = arith.addf %345, %349 : vector<8x256xf32>
    %c205_i32 = arith.constant 205 : i32
    %351 = tpu.dynamic_rotate %110 by %c205_i32 dim 1 : vector<8x256xf32>, i32 -> vector<8x256xf32>
    %c48 = arith.constant 48 : index
    %c0_174 = arith.constant 0 : index
    %c0_175 = arith.constant 0 : index
    %352 = vector.load %arg10[%c48, %c0_174, %c0_175] : memref<49x8x256xf32, #tpu.memory_space<vmem>>, vector<1x8x256xf32>
    %353 = vector.shape_cast %352 : vector<1x8x256xf32> to vector<8x256xf32>
    %354 = arith.mulf %351, %353 : vector<8x256xf32>
    %355 = arith.addf %350, %354 : vector<8x256xf32>
    %cst_176 = arith.constant dense<0.000000e+00> : vector<256xf32>
    %356 = vector.multi_reduction <add>, %355, %cst_176 [0] : vector<8x256xf32> to vector<256xf32>
    %357 = vector.shape_cast %356 : vector<256xf32> to vector<1x256xf32>
    %358 = arith.negf %357 : vector<1x256xf32>
    %359 = math.exp %358 : vector<1x256xf32>
    %cst_177 = arith.constant 1.000000e+00 : f32
    %360 = vector.broadcast %cst_177 : f32 to vector<1x256xf32>
    %361 = arith.addf %360, %359 : vector<1x256xf32>
    %362 = arith.divf %360, %361 : vector<1x256xf32>
    %363 = vector.broadcast %362 : vector<1x256xf32> to vector<8x256xf32>
    %364 = arith.mulf %71, %363 : vector<8x256xf32>
    %cst_178 = arith.constant dense<0xFF800000> : vector<8xf32>
    %365 = vector.multi_reduction <maximumf>, %73, %cst_178 [1] : vector<8x256xf32> to vector<8xf32>
    %366 = vector.shape_cast %365 : vector<8xf32> to vector<8x1xf32>
    %cst_179 = arith.constant 5.000000e-01 : f32
    %367 = vector.broadcast %cst_179 : f32 to vector<8x1xf32>
    %368 = arith.mulf %367, %366 : vector<8x1xf32>
    %cst_180 = arith.constant dense<0.000000e+00> : vector<8xf32>
    %369 = vector.multi_reduction <add>, %73, %cst_180 [1] : vector<8x256xf32> to vector<8xf32>
    %370 = vector.shape_cast %369 : vector<8xf32> to vector<8x1xf32>
    %cst_181 = arith.constant 2.560000e+02 : f32
    %371 = vector.broadcast %cst_181 : f32 to vector<8x1xf32>
    %372 = arith.divf %370, %371 : vector<8x1xf32>
    %cst_182 = arith.constant 5.000000e-01 : f32
    %373 = vector.broadcast %cst_182 : f32 to vector<8x1xf32>
    %374 = arith.mulf %373, %372 : vector<8x1xf32>
    %375 = arith.addf %368, %374 : vector<8x1xf32>
    %cst_183 = arith.constant dense<0xFF800000> : vector<8xf32>
    %376 = vector.multi_reduction <maximumf>, %74, %cst_183 [1] : vector<8x256xf32> to vector<8xf32>
    %377 = vector.shape_cast %376 : vector<8xf32> to vector<8x1xf32>
    %cst_184 = arith.constant 5.000000e-01 : f32
    %378 = vector.broadcast %cst_184 : f32 to vector<8x1xf32>
    %379 = arith.mulf %378, %377 : vector<8x1xf32>
    %cst_185 = arith.constant dense<0.000000e+00> : vector<8xf32>
    %380 = vector.multi_reduction <add>, %74, %cst_185 [1] : vector<8x256xf32> to vector<8xf32>
    %381 = vector.shape_cast %380 : vector<8xf32> to vector<8x1xf32>
    %cst_186 = arith.constant 2.560000e+02 : f32
    %382 = vector.broadcast %cst_186 : f32 to vector<8x1xf32>
    %383 = arith.divf %381, %382 : vector<8x1xf32>
    %cst_187 = arith.constant 5.000000e-01 : f32
    %384 = vector.broadcast %cst_187 : f32 to vector<8x1xf32>
    %385 = arith.mulf %384, %383 : vector<8x1xf32>
    %386 = arith.addf %379, %385 : vector<8x1xf32>
    %387 = arith.addf %375, %386 : vector<8x1xf32>
    %cst_188 = arith.constant dense<0xFF800000> : vector<8xf32>
    %388 = vector.multi_reduction <maximumf>, %75, %cst_188 [1] : vector<8x256xf32> to vector<8xf32>
    %389 = vector.shape_cast %388 : vector<8xf32> to vector<8x1xf32>
    %cst_189 = arith.constant 5.000000e-01 : f32
    %390 = vector.broadcast %cst_189 : f32 to vector<8x1xf32>
    %391 = arith.mulf %390, %389 : vector<8x1xf32>
    %cst_190 = arith.constant dense<0.000000e+00> : vector<8xf32>
    %392 = vector.multi_reduction <add>, %75, %cst_190 [1] : vector<8x256xf32> to vector<8xf32>
    %393 = vector.shape_cast %392 : vector<8xf32> to vector<8x1xf32>
    %cst_191 = arith.constant 2.560000e+02 : f32
    %394 = vector.broadcast %cst_191 : f32 to vector<8x1xf32>
    %395 = arith.divf %393, %394 : vector<8x1xf32>
    %cst_192 = arith.constant 5.000000e-01 : f32
    %396 = vector.broadcast %cst_192 : f32 to vector<8x1xf32>
    %397 = arith.mulf %396, %395 : vector<8x1xf32>
    %398 = arith.addf %391, %397 : vector<8x1xf32>
    %399 = arith.addf %387, %398 : vector<8x1xf32>
    %400 = arith.negf %399 : vector<8x1xf32>
    %401 = math.exp %400 : vector<8x1xf32>
    %cst_193 = arith.constant 1.000000e+00 : f32
    %402 = vector.broadcast %cst_193 : f32 to vector<8x1xf32>
    %403 = arith.addf %402, %401 : vector<8x1xf32>
    %404 = arith.divf %402, %403 : vector<8x1xf32>
    %405 = vector.broadcast %404 : vector<8x1xf32> to vector<8x256xf32>
    %406 = arith.mulf %71, %405 : vector<8x256xf32>
    %cst_194 = arith.constant 0.000000e+00 : f32
    %407 = vector.broadcast %cst_194 : f32 to vector<8x256xf32>
    %c17_i32_195 = arith.constant 17 : i32
    %408 = tpu.dynamic_rotate %364 by %c17_i32_195 dim 1 : vector<8x256xf32>, i32 -> vector<8x256xf32>
    %c9_196 = arith.constant 9 : index
    %c0_197 = arith.constant 0 : index
    %c0_198 = arith.constant 0 : index
    %409 = vector.load %arg6[%c9_196, %c0_197, %c0_198] : memref<63x8x256xf32, #tpu.memory_space<vmem>>, vector<1x8x256xf32>
    %410 = vector.shape_cast %409 : vector<1x8x256xf32> to vector<8x256xf32>
    %411 = arith.mulf %408, %410 : vector<8x256xf32>
    %412 = arith.addf %407, %411 : vector<8x256xf32>
    %c16_i32_199 = arith.constant 16 : i32
    %413 = tpu.dynamic_rotate %364 by %c16_i32_199 dim 1 : vector<8x256xf32>, i32 -> vector<8x256xf32>
    %c10_200 = arith.constant 10 : index
    %c0_201 = arith.constant 0 : index
    %c0_202 = arith.constant 0 : index
    %414 = vector.load %arg6[%c10_200, %c0_201, %c0_202] : memref<63x8x256xf32, #tpu.memory_space<vmem>>, vector<1x8x256xf32>
    %415 = vector.shape_cast %414 : vector<1x8x256xf32> to vector<8x256xf32>
    %416 = arith.mulf %413, %415 : vector<8x256xf32>
    %417 = arith.addf %412, %416 : vector<8x256xf32>
    %c15_i32_203 = arith.constant 15 : i32
    %418 = tpu.dynamic_rotate %364 by %c15_i32_203 dim 1 : vector<8x256xf32>, i32 -> vector<8x256xf32>
    %c11_204 = arith.constant 11 : index
    %c0_205 = arith.constant 0 : index
    %c0_206 = arith.constant 0 : index
    %419 = vector.load %arg6[%c11_204, %c0_205, %c0_206] : memref<63x8x256xf32, #tpu.memory_space<vmem>>, vector<1x8x256xf32>
    %420 = vector.shape_cast %419 : vector<1x8x256xf32> to vector<8x256xf32>
    %421 = arith.mulf %418, %420 : vector<8x256xf32>
    %422 = arith.addf %417, %421 : vector<8x256xf32>
    %c1_i32_207 = arith.constant 1 : i32
    %423 = tpu.dynamic_rotate %364 by %c1_i32_207 dim 1 : vector<8x256xf32>, i32 -> vector<8x256xf32>
    %c12_208 = arith.constant 12 : index
    %c0_209 = arith.constant 0 : index
    %c0_210 = arith.constant 0 : index
    %424 = vector.load %arg6[%c12_208, %c0_209, %c0_210] : memref<63x8x256xf32, #tpu.memory_space<vmem>>, vector<1x8x256xf32>
    %425 = vector.shape_cast %424 : vector<1x8x256xf32> to vector<8x256xf32>
    %426 = arith.mulf %423, %425 : vector<8x256xf32>
    %427 = arith.addf %422, %426 : vector<8x256xf32>
    %c13_211 = arith.constant 13 : index
    %c0_212 = arith.constant 0 : index
    %c0_213 = arith.constant 0 : index
    %428 = vector.load %arg6[%c13_211, %c0_212, %c0_213] : memref<63x8x256xf32, #tpu.memory_space<vmem>>, vector<1x8x256xf32>
    %429 = vector.shape_cast %428 : vector<1x8x256xf32> to vector<8x256xf32>
    %430 = arith.mulf %364, %429 : vector<8x256xf32>
    %431 = arith.addf %427, %430 : vector<8x256xf32>
    %c255_i32_214 = arith.constant 255 : i32
    %432 = tpu.dynamic_rotate %364 by %c255_i32_214 dim 1 : vector<8x256xf32>, i32 -> vector<8x256xf32>
    %c14_215 = arith.constant 14 : index
    %c0_216 = arith.constant 0 : index
    %c0_217 = arith.constant 0 : index
    %433 = vector.load %arg6[%c14_215, %c0_216, %c0_217] : memref<63x8x256xf32, #tpu.memory_space<vmem>>, vector<1x8x256xf32>
    %434 = vector.shape_cast %433 : vector<1x8x256xf32> to vector<8x256xf32>
    %435 = arith.mulf %432, %434 : vector<8x256xf32>
    %436 = arith.addf %431, %435 : vector<8x256xf32>
    %c241_i32_218 = arith.constant 241 : i32
    %437 = tpu.dynamic_rotate %364 by %c241_i32_218 dim 1 : vector<8x256xf32>, i32 -> vector<8x256xf32>
    %c15_219 = arith.constant 15 : index
    %c0_220 = arith.constant 0 : index
    %c0_221 = arith.constant 0 : index
    %438 = vector.load %arg6[%c15_219, %c0_220, %c0_221] : memref<63x8x256xf32, #tpu.memory_space<vmem>>, vector<1x8x256xf32>
    %439 = vector.shape_cast %438 : vector<1x8x256xf32> to vector<8x256xf32>
    %440 = arith.mulf %437, %439 : vector<8x256xf32>
    %441 = arith.addf %436, %440 : vector<8x256xf32>
    %c240_i32_222 = arith.constant 240 : i32
    %442 = tpu.dynamic_rotate %364 by %c240_i32_222 dim 1 : vector<8x256xf32>, i32 -> vector<8x256xf32>
    %c16_223 = arith.constant 16 : index
    %c0_224 = arith.constant 0 : index
    %c0_225 = arith.constant 0 : index
    %443 = vector.load %arg6[%c16_223, %c0_224, %c0_225] : memref<63x8x256xf32, #tpu.memory_space<vmem>>, vector<1x8x256xf32>
    %444 = vector.shape_cast %443 : vector<1x8x256xf32> to vector<8x256xf32>
    %445 = arith.mulf %442, %444 : vector<8x256xf32>
    %446 = arith.addf %441, %445 : vector<8x256xf32>
    %c239_i32_226 = arith.constant 239 : i32
    %447 = tpu.dynamic_rotate %364 by %c239_i32_226 dim 1 : vector<8x256xf32>, i32 -> vector<8x256xf32>
    %c17_227 = arith.constant 17 : index
    %c0_228 = arith.constant 0 : index
    %c0_229 = arith.constant 0 : index
    %448 = vector.load %arg6[%c17_227, %c0_228, %c0_229] : memref<63x8x256xf32, #tpu.memory_space<vmem>>, vector<1x8x256xf32>
    %449 = vector.shape_cast %448 : vector<1x8x256xf32> to vector<8x256xf32>
    %450 = arith.mulf %447, %449 : vector<8x256xf32>
    %451 = arith.addf %446, %450 : vector<8x256xf32>
    %c1_230 = arith.constant 1 : index
    %c0_231 = arith.constant 0 : index
    %c0_232 = arith.constant 0 : index
    %452 = vector.load %arg7[%c1_230, %c0_231, %c0_232] : memref<7x8x1xf32, #tpu.memory_space<vmem>>, vector<1x8x1xf32>
    %453 = vector.shape_cast %452 : vector<1x8x1xf32> to vector<8x1xf32>
    %454 = vector.broadcast %453 : vector<8x1xf32> to vector<8x256xf32>
    %455 = arith.addf %451, %454 : vector<8x256xf32>
    %c1_233 = arith.constant 1 : index
    %c0_234 = arith.constant 0 : index
    %c0_235 = arith.constant 0 : index
    %456 = vector.load %arg8[%c1_233, %c0_234, %c0_235] : memref<7x8x8xf32, #tpu.memory_space<vmem>>, vector<1x8x8xf32>
    %457 = vector.shape_cast %456 : vector<1x8x8xf32> to vector<8x8xf32>
    %cst_236 = arith.constant dense<0.000000e+00> : vector<8x256xf32>
    %458 = tpu.matmul %457, %455, %cst_236 {dimension_numbers = #tpu.dot_dimension_numbers<[1], [0], [0], [1], [0, 0, 1, 1], [], []>} : vector<8x8xf32>, vector<8x256xf32>, vector<8x256xf32> -> vector<8x256xf32>
    %c1_237 = arith.constant 1 : index
    %c0_238 = arith.constant 0 : index
    %c0_239 = arith.constant 0 : index
    %459 = vector.load %arg9[%c1_237, %c0_238, %c0_239] : memref<7x8x1xf32, #tpu.memory_space<vmem>>, vector<1x8x1xf32>
    %460 = vector.shape_cast %459 : vector<1x8x1xf32> to vector<8x1xf32>
    %461 = vector.broadcast %460 : vector<8x1xf32> to vector<8x256xf32>
    %462 = arith.addf %458, %461 : vector<8x256xf32>
    %cst_240 = arith.constant 0.000000e+00 : f32
    %463 = vector.broadcast %cst_240 : f32 to vector<8x256xf32>
    %464 = arith.maximumf %462, %463 : vector<8x256xf32>
    %cst_241 = arith.constant 0.000000e+00 : f32
    %465 = vector.broadcast %cst_241 : f32 to vector<8x256xf32>
    %c17_i32_242 = arith.constant 17 : i32
    %466 = tpu.dynamic_rotate %464 by %c17_i32_242 dim 1 : vector<8x256xf32>, i32 -> vector<8x256xf32>
    %c18_243 = arith.constant 18 : index
    %c0_244 = arith.constant 0 : index
    %c0_245 = arith.constant 0 : index
    %467 = vector.load %arg6[%c18_243, %c0_244, %c0_245] : memref<63x8x256xf32, #tpu.memory_space<vmem>>, vector<1x8x256xf32>
    %468 = vector.shape_cast %467 : vector<1x8x256xf32> to vector<8x256xf32>
    %469 = arith.mulf %466, %468 : vector<8x256xf32>
    %470 = arith.addf %465, %469 : vector<8x256xf32>
    %c16_i32_246 = arith.constant 16 : i32
    %471 = tpu.dynamic_rotate %464 by %c16_i32_246 dim 1 : vector<8x256xf32>, i32 -> vector<8x256xf32>
    %c19_247 = arith.constant 19 : index
    %c0_248 = arith.constant 0 : index
    %c0_249 = arith.constant 0 : index
    %472 = vector.load %arg6[%c19_247, %c0_248, %c0_249] : memref<63x8x256xf32, #tpu.memory_space<vmem>>, vector<1x8x256xf32>
    %473 = vector.shape_cast %472 : vector<1x8x256xf32> to vector<8x256xf32>
    %474 = arith.mulf %471, %473 : vector<8x256xf32>
    %475 = arith.addf %470, %474 : vector<8x256xf32>
    %c15_i32_250 = arith.constant 15 : i32
    %476 = tpu.dynamic_rotate %464 by %c15_i32_250 dim 1 : vector<8x256xf32>, i32 -> vector<8x256xf32>
    %c20_251 = arith.constant 20 : index
    %c0_252 = arith.constant 0 : index
    %c0_253 = arith.constant 0 : index
    %477 = vector.load %arg6[%c20_251, %c0_252, %c0_253] : memref<63x8x256xf32, #tpu.memory_space<vmem>>, vector<1x8x256xf32>
    %478 = vector.shape_cast %477 : vector<1x8x256xf32> to vector<8x256xf32>
    %479 = arith.mulf %476, %478 : vector<8x256xf32>
    %480 = arith.addf %475, %479 : vector<8x256xf32>
    %c1_i32_254 = arith.constant 1 : i32
    %481 = tpu.dynamic_rotate %464 by %c1_i32_254 dim 1 : vector<8x256xf32>, i32 -> vector<8x256xf32>
    %c21_255 = arith.constant 21 : index
    %c0_256 = arith.constant 0 : index
    %c0_257 = arith.constant 0 : index
    %482 = vector.load %arg6[%c21_255, %c0_256, %c0_257] : memref<63x8x256xf32, #tpu.memory_space<vmem>>, vector<1x8x256xf32>
    %483 = vector.shape_cast %482 : vector<1x8x256xf32> to vector<8x256xf32>
    %484 = arith.mulf %481, %483 : vector<8x256xf32>
    %485 = arith.addf %480, %484 : vector<8x256xf32>
    %c22_258 = arith.constant 22 : index
    %c0_259 = arith.constant 0 : index
    %c0_260 = arith.constant 0 : index
    %486 = vector.load %arg6[%c22_258, %c0_259, %c0_260] : memref<63x8x256xf32, #tpu.memory_space<vmem>>, vector<1x8x256xf32>
    %487 = vector.shape_cast %486 : vector<1x8x256xf32> to vector<8x256xf32>
    %488 = arith.mulf %464, %487 : vector<8x256xf32>
    %489 = arith.addf %485, %488 : vector<8x256xf32>
    %c255_i32_261 = arith.constant 255 : i32
    %490 = tpu.dynamic_rotate %464 by %c255_i32_261 dim 1 : vector<8x256xf32>, i32 -> vector<8x256xf32>
    %c23_262 = arith.constant 23 : index
    %c0_263 = arith.constant 0 : index
    %c0_264 = arith.constant 0 : index
    %491 = vector.load %arg6[%c23_262, %c0_263, %c0_264] : memref<63x8x256xf32, #tpu.memory_space<vmem>>, vector<1x8x256xf32>
    %492 = vector.shape_cast %491 : vector<1x8x256xf32> to vector<8x256xf32>
    %493 = arith.mulf %490, %492 : vector<8x256xf32>
    %494 = arith.addf %489, %493 : vector<8x256xf32>
    %c241_i32_265 = arith.constant 241 : i32
    %495 = tpu.dynamic_rotate %464 by %c241_i32_265 dim 1 : vector<8x256xf32>, i32 -> vector<8x256xf32>
    %c24_266 = arith.constant 24 : index
    %c0_267 = arith.constant 0 : index
    %c0_268 = arith.constant 0 : index
    %496 = vector.load %arg6[%c24_266, %c0_267, %c0_268] : memref<63x8x256xf32, #tpu.memory_space<vmem>>, vector<1x8x256xf32>
    %497 = vector.shape_cast %496 : vector<1x8x256xf32> to vector<8x256xf32>
    %498 = arith.mulf %495, %497 : vector<8x256xf32>
    %499 = arith.addf %494, %498 : vector<8x256xf32>
    %c240_i32_269 = arith.constant 240 : i32
    %500 = tpu.dynamic_rotate %464 by %c240_i32_269 dim 1 : vector<8x256xf32>, i32 -> vector<8x256xf32>
    %c25_270 = arith.constant 25 : index
    %c0_271 = arith.constant 0 : index
    %c0_272 = arith.constant 0 : index
    %501 = vector.load %arg6[%c25_270, %c0_271, %c0_272] : memref<63x8x256xf32, #tpu.memory_space<vmem>>, vector<1x8x256xf32>
    %502 = vector.shape_cast %501 : vector<1x8x256xf32> to vector<8x256xf32>
    %503 = arith.mulf %500, %502 : vector<8x256xf32>
    %504 = arith.addf %499, %503 : vector<8x256xf32>
    %c239_i32_273 = arith.constant 239 : i32
    %505 = tpu.dynamic_rotate %464 by %c239_i32_273 dim 1 : vector<8x256xf32>, i32 -> vector<8x256xf32>
    %c26_274 = arith.constant 26 : index
    %c0_275 = arith.constant 0 : index
    %c0_276 = arith.constant 0 : index
    %506 = vector.load %arg6[%c26_274, %c0_275, %c0_276] : memref<63x8x256xf32, #tpu.memory_space<vmem>>, vector<1x8x256xf32>
    %507 = vector.shape_cast %506 : vector<1x8x256xf32> to vector<8x256xf32>
    %508 = arith.mulf %505, %507 : vector<8x256xf32>
    %509 = arith.addf %504, %508 : vector<8x256xf32>
    %c2_277 = arith.constant 2 : index
    %c0_278 = arith.constant 0 : index
    %c0_279 = arith.constant 0 : index
    %510 = vector.load %arg7[%c2_277, %c0_278, %c0_279] : memref<7x8x1xf32, #tpu.memory_space<vmem>>, vector<1x8x1xf32>
    %511 = vector.shape_cast %510 : vector<1x8x1xf32> to vector<8x1xf32>
    %512 = vector.broadcast %511 : vector<8x1xf32> to vector<8x256xf32>
    %513 = arith.addf %509, %512 : vector<8x256xf32>
    %c2_280 = arith.constant 2 : index
    %c0_281 = arith.constant 0 : index
    %c0_282 = arith.constant 0 : index
    %514 = vector.load %arg8[%c2_280, %c0_281, %c0_282] : memref<7x8x8xf32, #tpu.memory_space<vmem>>, vector<1x8x8xf32>
    %515 = vector.shape_cast %514 : vector<1x8x8xf32> to vector<8x8xf32>
    %cst_283 = arith.constant dense<0.000000e+00> : vector<8x256xf32>
    %516 = tpu.matmul %515, %513, %cst_283 {dimension_numbers = #tpu.dot_dimension_numbers<[1], [0], [0], [1], [0, 0, 1, 1], [], []>} : vector<8x8xf32>, vector<8x256xf32>, vector<8x256xf32> -> vector<8x256xf32>
    %c2_284 = arith.constant 2 : index
    %c0_285 = arith.constant 0 : index
    %c0_286 = arith.constant 0 : index
    %517 = vector.load %arg9[%c2_284, %c0_285, %c0_286] : memref<7x8x1xf32, #tpu.memory_space<vmem>>, vector<1x8x1xf32>
    %518 = vector.shape_cast %517 : vector<1x8x1xf32> to vector<8x1xf32>
    %519 = vector.broadcast %518 : vector<8x1xf32> to vector<8x256xf32>
    %520 = arith.addf %516, %519 : vector<8x256xf32>
    %521 = arith.addf %520, %364 : vector<8x256xf32>
    %cst_287 = arith.constant 0.000000e+00 : f32
    %522 = vector.broadcast %cst_287 : f32 to vector<8x256xf32>
    %523 = arith.maximumf %521, %522 : vector<8x256xf32>
    %cst_288 = arith.constant 0.000000e+00 : f32
    %524 = vector.broadcast %cst_288 : f32 to vector<8x256xf32>
    %c17_i32_289 = arith.constant 17 : i32
    %525 = tpu.dynamic_rotate %406 by %c17_i32_289 dim 1 : vector<8x256xf32>, i32 -> vector<8x256xf32>
    %c27_290 = arith.constant 27 : index
    %c0_291 = arith.constant 0 : index
    %c0_292 = arith.constant 0 : index
    %526 = vector.load %arg6[%c27_290, %c0_291, %c0_292] : memref<63x8x256xf32, #tpu.memory_space<vmem>>, vector<1x8x256xf32>
    %527 = vector.shape_cast %526 : vector<1x8x256xf32> to vector<8x256xf32>
    %528 = arith.mulf %525, %527 : vector<8x256xf32>
    %529 = arith.addf %524, %528 : vector<8x256xf32>
    %c16_i32_293 = arith.constant 16 : i32
    %530 = tpu.dynamic_rotate %406 by %c16_i32_293 dim 1 : vector<8x256xf32>, i32 -> vector<8x256xf32>
    %c28_294 = arith.constant 28 : index
    %c0_295 = arith.constant 0 : index
    %c0_296 = arith.constant 0 : index
    %531 = vector.load %arg6[%c28_294, %c0_295, %c0_296] : memref<63x8x256xf32, #tpu.memory_space<vmem>>, vector<1x8x256xf32>
    %532 = vector.shape_cast %531 : vector<1x8x256xf32> to vector<8x256xf32>
    %533 = arith.mulf %530, %532 : vector<8x256xf32>
    %534 = arith.addf %529, %533 : vector<8x256xf32>
    %c15_i32_297 = arith.constant 15 : i32
    %535 = tpu.dynamic_rotate %406 by %c15_i32_297 dim 1 : vector<8x256xf32>, i32 -> vector<8x256xf32>
    %c29_298 = arith.constant 29 : index
    %c0_299 = arith.constant 0 : index
    %c0_300 = arith.constant 0 : index
    %536 = vector.load %arg6[%c29_298, %c0_299, %c0_300] : memref<63x8x256xf32, #tpu.memory_space<vmem>>, vector<1x8x256xf32>
    %537 = vector.shape_cast %536 : vector<1x8x256xf32> to vector<8x256xf32>
    %538 = arith.mulf %535, %537 : vector<8x256xf32>
    %539 = arith.addf %534, %538 : vector<8x256xf32>
    %c1_i32_301 = arith.constant 1 : i32
    %540 = tpu.dynamic_rotate %406 by %c1_i32_301 dim 1 : vector<8x256xf32>, i32 -> vector<8x256xf32>
    %c30_302 = arith.constant 30 : index
    %c0_303 = arith.constant 0 : index
    %c0_304 = arith.constant 0 : index
    %541 = vector.load %arg6[%c30_302, %c0_303, %c0_304] : memref<63x8x256xf32, #tpu.memory_space<vmem>>, vector<1x8x256xf32>
    %542 = vector.shape_cast %541 : vector<1x8x256xf32> to vector<8x256xf32>
    %543 = arith.mulf %540, %542 : vector<8x256xf32>
    %544 = arith.addf %539, %543 : vector<8x256xf32>
    %c31_305 = arith.constant 31 : index
    %c0_306 = arith.constant 0 : index
    %c0_307 = arith.constant 0 : index
    %545 = vector.load %arg6[%c31_305, %c0_306, %c0_307] : memref<63x8x256xf32, #tpu.memory_space<vmem>>, vector<1x8x256xf32>
    %546 = vector.shape_cast %545 : vector<1x8x256xf32> to vector<8x256xf32>
    %547 = arith.mulf %406, %546 : vector<8x256xf32>
    %548 = arith.addf %544, %547 : vector<8x256xf32>
    %c255_i32_308 = arith.constant 255 : i32
    %549 = tpu.dynamic_rotate %406 by %c255_i32_308 dim 1 : vector<8x256xf32>, i32 -> vector<8x256xf32>
    %c32_309 = arith.constant 32 : index
    %c0_310 = arith.constant 0 : index
    %c0_311 = arith.constant 0 : index
    %550 = vector.load %arg6[%c32_309, %c0_310, %c0_311] : memref<63x8x256xf32, #tpu.memory_space<vmem>>, vector<1x8x256xf32>
    %551 = vector.shape_cast %550 : vector<1x8x256xf32> to vector<8x256xf32>
    %552 = arith.mulf %549, %551 : vector<8x256xf32>
    %553 = arith.addf %548, %552 : vector<8x256xf32>
    %c241_i32_312 = arith.constant 241 : i32
    %554 = tpu.dynamic_rotate %406 by %c241_i32_312 dim 1 : vector<8x256xf32>, i32 -> vector<8x256xf32>
    %c33_313 = arith.constant 33 : index
    %c0_314 = arith.constant 0 : index
    %c0_315 = arith.constant 0 : index
    %555 = vector.load %arg6[%c33_313, %c0_314, %c0_315] : memref<63x8x256xf32, #tpu.memory_space<vmem>>, vector<1x8x256xf32>
    %556 = vector.shape_cast %555 : vector<1x8x256xf32> to vector<8x256xf32>
    %557 = arith.mulf %554, %556 : vector<8x256xf32>
    %558 = arith.addf %553, %557 : vector<8x256xf32>
    %c240_i32_316 = arith.constant 240 : i32
    %559 = tpu.dynamic_rotate %406 by %c240_i32_316 dim 1 : vector<8x256xf32>, i32 -> vector<8x256xf32>
    %c34_317 = arith.constant 34 : index
    %c0_318 = arith.constant 0 : index
    %c0_319 = arith.constant 0 : index
    %560 = vector.load %arg6[%c34_317, %c0_318, %c0_319] : memref<63x8x256xf32, #tpu.memory_space<vmem>>, vector<1x8x256xf32>
    %561 = vector.shape_cast %560 : vector<1x8x256xf32> to vector<8x256xf32>
    %562 = arith.mulf %559, %561 : vector<8x256xf32>
    %563 = arith.addf %558, %562 : vector<8x256xf32>
    %c239_i32_320 = arith.constant 239 : i32
    %564 = tpu.dynamic_rotate %406 by %c239_i32_320 dim 1 : vector<8x256xf32>, i32 -> vector<8x256xf32>
    %c35_321 = arith.constant 35 : index
    %c0_322 = arith.constant 0 : index
    %c0_323 = arith.constant 0 : index
    %565 = vector.load %arg6[%c35_321, %c0_322, %c0_323] : memref<63x8x256xf32, #tpu.memory_space<vmem>>, vector<1x8x256xf32>
    %566 = vector.shape_cast %565 : vector<1x8x256xf32> to vector<8x256xf32>
    %567 = arith.mulf %564, %566 : vector<8x256xf32>
    %568 = arith.addf %563, %567 : vector<8x256xf32>
    %c3_324 = arith.constant 3 : index
    %c0_325 = arith.constant 0 : index
    %c0_326 = arith.constant 0 : index
    %569 = vector.load %arg7[%c3_324, %c0_325, %c0_326] : memref<7x8x1xf32, #tpu.memory_space<vmem>>, vector<1x8x1xf32>
    %570 = vector.shape_cast %569 : vector<1x8x1xf32> to vector<8x1xf32>
    %571 = vector.broadcast %570 : vector<8x1xf32> to vector<8x256xf32>
    %572 = arith.addf %568, %571 : vector<8x256xf32>
    %c3_327 = arith.constant 3 : index
    %c0_328 = arith.constant 0 : index
    %c0_329 = arith.constant 0 : index
    %573 = vector.load %arg8[%c3_327, %c0_328, %c0_329] : memref<7x8x8xf32, #tpu.memory_space<vmem>>, vector<1x8x8xf32>
    %574 = vector.shape_cast %573 : vector<1x8x8xf32> to vector<8x8xf32>
    %cst_330 = arith.constant dense<0.000000e+00> : vector<8x256xf32>
    %575 = tpu.matmul %574, %572, %cst_330 {dimension_numbers = #tpu.dot_dimension_numbers<[1], [0], [0], [1], [0, 0, 1, 1], [], []>} : vector<8x8xf32>, vector<8x256xf32>, vector<8x256xf32> -> vector<8x256xf32>
    %c3_331 = arith.constant 3 : index
    %c0_332 = arith.constant 0 : index
    %c0_333 = arith.constant 0 : index
    %576 = vector.load %arg9[%c3_331, %c0_332, %c0_333] : memref<7x8x1xf32, #tpu.memory_space<vmem>>, vector<1x8x1xf32>
    %577 = vector.shape_cast %576 : vector<1x8x1xf32> to vector<8x1xf32>
    %578 = vector.broadcast %577 : vector<8x1xf32> to vector<8x256xf32>
    %579 = arith.addf %575, %578 : vector<8x256xf32>
    %cst_334 = arith.constant 0.000000e+00 : f32
    %580 = vector.broadcast %cst_334 : f32 to vector<8x256xf32>
    %581 = arith.maximumf %579, %580 : vector<8x256xf32>
    %cst_335 = arith.constant 0.000000e+00 : f32
    %582 = vector.broadcast %cst_335 : f32 to vector<8x256xf32>
    %c17_i32_336 = arith.constant 17 : i32
    %583 = tpu.dynamic_rotate %581 by %c17_i32_336 dim 1 : vector<8x256xf32>, i32 -> vector<8x256xf32>
    %c36_337 = arith.constant 36 : index
    %c0_338 = arith.constant 0 : index
    %c0_339 = arith.constant 0 : index
    %584 = vector.load %arg6[%c36_337, %c0_338, %c0_339] : memref<63x8x256xf32, #tpu.memory_space<vmem>>, vector<1x8x256xf32>
    %585 = vector.shape_cast %584 : vector<1x8x256xf32> to vector<8x256xf32>
    %586 = arith.mulf %583, %585 : vector<8x256xf32>
    %587 = arith.addf %582, %586 : vector<8x256xf32>
    %c16_i32_340 = arith.constant 16 : i32
    %588 = tpu.dynamic_rotate %581 by %c16_i32_340 dim 1 : vector<8x256xf32>, i32 -> vector<8x256xf32>
    %c37_341 = arith.constant 37 : index
    %c0_342 = arith.constant 0 : index
    %c0_343 = arith.constant 0 : index
    %589 = vector.load %arg6[%c37_341, %c0_342, %c0_343] : memref<63x8x256xf32, #tpu.memory_space<vmem>>, vector<1x8x256xf32>
    %590 = vector.shape_cast %589 : vector<1x8x256xf32> to vector<8x256xf32>
    %591 = arith.mulf %588, %590 : vector<8x256xf32>
    %592 = arith.addf %587, %591 : vector<8x256xf32>
    %c15_i32_344 = arith.constant 15 : i32
    %593 = tpu.dynamic_rotate %581 by %c15_i32_344 dim 1 : vector<8x256xf32>, i32 -> vector<8x256xf32>
    %c38_345 = arith.constant 38 : index
    %c0_346 = arith.constant 0 : index
    %c0_347 = arith.constant 0 : index
    %594 = vector.load %arg6[%c38_345, %c0_346, %c0_347] : memref<63x8x256xf32, #tpu.memory_space<vmem>>, vector<1x8x256xf32>
    %595 = vector.shape_cast %594 : vector<1x8x256xf32> to vector<8x256xf32>
    %596 = arith.mulf %593, %595 : vector<8x256xf32>
    %597 = arith.addf %592, %596 : vector<8x256xf32>
    %c1_i32_348 = arith.constant 1 : i32
    %598 = tpu.dynamic_rotate %581 by %c1_i32_348 dim 1 : vector<8x256xf32>, i32 -> vector<8x256xf32>
    %c39_349 = arith.constant 39 : index
    %c0_350 = arith.constant 0 : index
    %c0_351 = arith.constant 0 : index
    %599 = vector.load %arg6[%c39_349, %c0_350, %c0_351] : memref<63x8x256xf32, #tpu.memory_space<vmem>>, vector<1x8x256xf32>
    %600 = vector.shape_cast %599 : vector<1x8x256xf32> to vector<8x256xf32>
    %601 = arith.mulf %598, %600 : vector<8x256xf32>
    %602 = arith.addf %597, %601 : vector<8x256xf32>
    %c40_352 = arith.constant 40 : index
    %c0_353 = arith.constant 0 : index
    %c0_354 = arith.constant 0 : index
    %603 = vector.load %arg6[%c40_352, %c0_353, %c0_354] : memref<63x8x256xf32, #tpu.memory_space<vmem>>, vector<1x8x256xf32>
    %604 = vector.shape_cast %603 : vector<1x8x256xf32> to vector<8x256xf32>
    %605 = arith.mulf %581, %604 : vector<8x256xf32>
    %606 = arith.addf %602, %605 : vector<8x256xf32>
    %c255_i32_355 = arith.constant 255 : i32
    %607 = tpu.dynamic_rotate %581 by %c255_i32_355 dim 1 : vector<8x256xf32>, i32 -> vector<8x256xf32>
    %c41_356 = arith.constant 41 : index
    %c0_357 = arith.constant 0 : index
    %c0_358 = arith.constant 0 : index
    %608 = vector.load %arg6[%c41_356, %c0_357, %c0_358] : memref<63x8x256xf32, #tpu.memory_space<vmem>>, vector<1x8x256xf32>
    %609 = vector.shape_cast %608 : vector<1x8x256xf32> to vector<8x256xf32>
    %610 = arith.mulf %607, %609 : vector<8x256xf32>
    %611 = arith.addf %606, %610 : vector<8x256xf32>
    %c241_i32_359 = arith.constant 241 : i32
    %612 = tpu.dynamic_rotate %581 by %c241_i32_359 dim 1 : vector<8x256xf32>, i32 -> vector<8x256xf32>
    %c42_360 = arith.constant 42 : index
    %c0_361 = arith.constant 0 : index
    %c0_362 = arith.constant 0 : index
    %613 = vector.load %arg6[%c42_360, %c0_361, %c0_362] : memref<63x8x256xf32, #tpu.memory_space<vmem>>, vector<1x8x256xf32>
    %614 = vector.shape_cast %613 : vector<1x8x256xf32> to vector<8x256xf32>
    %615 = arith.mulf %612, %614 : vector<8x256xf32>
    %616 = arith.addf %611, %615 : vector<8x256xf32>
    %c240_i32_363 = arith.constant 240 : i32
    %617 = tpu.dynamic_rotate %581 by %c240_i32_363 dim 1 : vector<8x256xf32>, i32 -> vector<8x256xf32>
    %c43_364 = arith.constant 43 : index
    %c0_365 = arith.constant 0 : index
    %c0_366 = arith.constant 0 : index
    %618 = vector.load %arg6[%c43_364, %c0_365, %c0_366] : memref<63x8x256xf32, #tpu.memory_space<vmem>>, vector<1x8x256xf32>
    %619 = vector.shape_cast %618 : vector<1x8x256xf32> to vector<8x256xf32>
    %620 = arith.mulf %617, %619 : vector<8x256xf32>
    %621 = arith.addf %616, %620 : vector<8x256xf32>
    %c239_i32_367 = arith.constant 239 : i32
    %622 = tpu.dynamic_rotate %581 by %c239_i32_367 dim 1 : vector<8x256xf32>, i32 -> vector<8x256xf32>
    %c44_368 = arith.constant 44 : index
    %c0_369 = arith.constant 0 : index
    %c0_370 = arith.constant 0 : index
    %623 = vector.load %arg6[%c44_368, %c0_369, %c0_370] : memref<63x8x256xf32, #tpu.memory_space<vmem>>, vector<1x8x256xf32>
    %624 = vector.shape_cast %623 : vector<1x8x256xf32> to vector<8x256xf32>
    %625 = arith.mulf %622, %624 : vector<8x256xf32>
    %626 = arith.addf %621, %625 : vector<8x256xf32>
    %c4_371 = arith.constant 4 : index
    %c0_372 = arith.constant 0 : index
    %c0_373 = arith.constant 0 : index
    %627 = vector.load %arg7[%c4_371, %c0_372, %c0_373] : memref<7x8x1xf32, #tpu.memory_space<vmem>>, vector<1x8x1xf32>
    %628 = vector.shape_cast %627 : vector<1x8x1xf32> to vector<8x1xf32>
    %629 = vector.broadcast %628 : vector<8x1xf32> to vector<8x256xf32>
    %630 = arith.addf %626, %629 : vector<8x256xf32>
    %c4_374 = arith.constant 4 : index
    %c0_375 = arith.constant 0 : index
    %c0_376 = arith.constant 0 : index
    %631 = vector.load %arg8[%c4_374, %c0_375, %c0_376] : memref<7x8x8xf32, #tpu.memory_space<vmem>>, vector<1x8x8xf32>
    %632 = vector.shape_cast %631 : vector<1x8x8xf32> to vector<8x8xf32>
    %cst_377 = arith.constant dense<0.000000e+00> : vector<8x256xf32>
    %633 = tpu.matmul %632, %630, %cst_377 {dimension_numbers = #tpu.dot_dimension_numbers<[1], [0], [0], [1], [0, 0, 1, 1], [], []>} : vector<8x8xf32>, vector<8x256xf32>, vector<8x256xf32> -> vector<8x256xf32>
    %c4_378 = arith.constant 4 : index
    %c0_379 = arith.constant 0 : index
    %c0_380 = arith.constant 0 : index
    %634 = vector.load %arg9[%c4_378, %c0_379, %c0_380] : memref<7x8x1xf32, #tpu.memory_space<vmem>>, vector<1x8x1xf32>
    %635 = vector.shape_cast %634 : vector<1x8x1xf32> to vector<8x1xf32>
    %636 = vector.broadcast %635 : vector<8x1xf32> to vector<8x256xf32>
    %637 = arith.addf %633, %636 : vector<8x256xf32>
    %638 = arith.addf %637, %406 : vector<8x256xf32>
    %cst_381 = arith.constant 0.000000e+00 : f32
    %639 = vector.broadcast %cst_381 : f32 to vector<8x256xf32>
    %640 = arith.maximumf %638, %639 : vector<8x256xf32>
    %641 = arith.addf %523, %640 : vector<8x256xf32>
    %642 = arith.mulf %71, %641 : vector<8x256xf32>
    %cst_382 = arith.constant 0.000000e+00 : f32
    %643 = vector.broadcast %cst_382 : f32 to vector<8x256xf32>
    %c17_i32_383 = arith.constant 17 : i32
    %644 = tpu.dynamic_rotate %642 by %c17_i32_383 dim 1 : vector<8x256xf32>, i32 -> vector<8x256xf32>
    %c45_384 = arith.constant 45 : index
    %c0_385 = arith.constant 0 : index
    %c0_386 = arith.constant 0 : index
    %645 = vector.load %arg6[%c45_384, %c0_385, %c0_386] : memref<63x8x256xf32, #tpu.memory_space<vmem>>, vector<1x8x256xf32>
    %646 = vector.shape_cast %645 : vector<1x8x256xf32> to vector<8x256xf32>
    %647 = arith.mulf %644, %646 : vector<8x256xf32>
    %648 = arith.addf %643, %647 : vector<8x256xf32>
    %c16_i32_387 = arith.constant 16 : i32
    %649 = tpu.dynamic_rotate %642 by %c16_i32_387 dim 1 : vector<8x256xf32>, i32 -> vector<8x256xf32>
    %c46_388 = arith.constant 46 : index
    %c0_389 = arith.constant 0 : index
    %c0_390 = arith.constant 0 : index
    %650 = vector.load %arg6[%c46_388, %c0_389, %c0_390] : memref<63x8x256xf32, #tpu.memory_space<vmem>>, vector<1x8x256xf32>
    %651 = vector.shape_cast %650 : vector<1x8x256xf32> to vector<8x256xf32>
    %652 = arith.mulf %649, %651 : vector<8x256xf32>
    %653 = arith.addf %648, %652 : vector<8x256xf32>
    %c15_i32_391 = arith.constant 15 : i32
    %654 = tpu.dynamic_rotate %642 by %c15_i32_391 dim 1 : vector<8x256xf32>, i32 -> vector<8x256xf32>
    %c47_392 = arith.constant 47 : index
    %c0_393 = arith.constant 0 : index
    %c0_394 = arith.constant 0 : index
    %655 = vector.load %arg6[%c47_392, %c0_393, %c0_394] : memref<63x8x256xf32, #tpu.memory_space<vmem>>, vector<1x8x256xf32>
    %656 = vector.shape_cast %655 : vector<1x8x256xf32> to vector<8x256xf32>
    %657 = arith.mulf %654, %656 : vector<8x256xf32>
    %658 = arith.addf %653, %657 : vector<8x256xf32>
    %c1_i32_395 = arith.constant 1 : i32
    %659 = tpu.dynamic_rotate %642 by %c1_i32_395 dim 1 : vector<8x256xf32>, i32 -> vector<8x256xf32>
    %c48_396 = arith.constant 48 : index
    %c0_397 = arith.constant 0 : index
    %c0_398 = arith.constant 0 : index
    %660 = vector.load %arg6[%c48_396, %c0_397, %c0_398] : memref<63x8x256xf32, #tpu.memory_space<vmem>>, vector<1x8x256xf32>
    %661 = vector.shape_cast %660 : vector<1x8x256xf32> to vector<8x256xf32>
    %662 = arith.mulf %659, %661 : vector<8x256xf32>
    %663 = arith.addf %658, %662 : vector<8x256xf32>
    %c49 = arith.constant 49 : index
    %c0_399 = arith.constant 0 : index
    %c0_400 = arith.constant 0 : index
    %664 = vector.load %arg6[%c49, %c0_399, %c0_400] : memref<63x8x256xf32, #tpu.memory_space<vmem>>, vector<1x8x256xf32>
    %665 = vector.shape_cast %664 : vector<1x8x256xf32> to vector<8x256xf32>
    %666 = arith.mulf %642, %665 : vector<8x256xf32>
    %667 = arith.addf %663, %666 : vector<8x256xf32>
    %c255_i32_401 = arith.constant 255 : i32
    %668 = tpu.dynamic_rotate %642 by %c255_i32_401 dim 1 : vector<8x256xf32>, i32 -> vector<8x256xf32>
    %c50 = arith.constant 50 : index
    %c0_402 = arith.constant 0 : index
    %c0_403 = arith.constant 0 : index
    %669 = vector.load %arg6[%c50, %c0_402, %c0_403] : memref<63x8x256xf32, #tpu.memory_space<vmem>>, vector<1x8x256xf32>
    %670 = vector.shape_cast %669 : vector<1x8x256xf32> to vector<8x256xf32>
    %671 = arith.mulf %668, %670 : vector<8x256xf32>
    %672 = arith.addf %667, %671 : vector<8x256xf32>
    %c241_i32_404 = arith.constant 241 : i32
    %673 = tpu.dynamic_rotate %642 by %c241_i32_404 dim 1 : vector<8x256xf32>, i32 -> vector<8x256xf32>
    %c51 = arith.constant 51 : index
    %c0_405 = arith.constant 0 : index
    %c0_406 = arith.constant 0 : index
    %674 = vector.load %arg6[%c51, %c0_405, %c0_406] : memref<63x8x256xf32, #tpu.memory_space<vmem>>, vector<1x8x256xf32>
    %675 = vector.shape_cast %674 : vector<1x8x256xf32> to vector<8x256xf32>
    %676 = arith.mulf %673, %675 : vector<8x256xf32>
    %677 = arith.addf %672, %676 : vector<8x256xf32>
    %c240_i32_407 = arith.constant 240 : i32
    %678 = tpu.dynamic_rotate %642 by %c240_i32_407 dim 1 : vector<8x256xf32>, i32 -> vector<8x256xf32>
    %c52 = arith.constant 52 : index
    %c0_408 = arith.constant 0 : index
    %c0_409 = arith.constant 0 : index
    %679 = vector.load %arg6[%c52, %c0_408, %c0_409] : memref<63x8x256xf32, #tpu.memory_space<vmem>>, vector<1x8x256xf32>
    %680 = vector.shape_cast %679 : vector<1x8x256xf32> to vector<8x256xf32>
    %681 = arith.mulf %678, %680 : vector<8x256xf32>
    %682 = arith.addf %677, %681 : vector<8x256xf32>
    %c239_i32_410 = arith.constant 239 : i32
    %683 = tpu.dynamic_rotate %642 by %c239_i32_410 dim 1 : vector<8x256xf32>, i32 -> vector<8x256xf32>
    %c53 = arith.constant 53 : index
    %c0_411 = arith.constant 0 : index
    %c0_412 = arith.constant 0 : index
    %684 = vector.load %arg6[%c53, %c0_411, %c0_412] : memref<63x8x256xf32, #tpu.memory_space<vmem>>, vector<1x8x256xf32>
    %685 = vector.shape_cast %684 : vector<1x8x256xf32> to vector<8x256xf32>
    %686 = arith.mulf %683, %685 : vector<8x256xf32>
    %687 = arith.addf %682, %686 : vector<8x256xf32>
    %c5_413 = arith.constant 5 : index
    %c0_414 = arith.constant 0 : index
    %c0_415 = arith.constant 0 : index
    %688 = vector.load %arg7[%c5_413, %c0_414, %c0_415] : memref<7x8x1xf32, #tpu.memory_space<vmem>>, vector<1x8x1xf32>
    %689 = vector.shape_cast %688 : vector<1x8x1xf32> to vector<8x1xf32>
    %690 = vector.broadcast %689 : vector<8x1xf32> to vector<8x256xf32>
    %691 = arith.addf %687, %690 : vector<8x256xf32>
    %c5_416 = arith.constant 5 : index
    %c0_417 = arith.constant 0 : index
    %c0_418 = arith.constant 0 : index
    %692 = vector.load %arg8[%c5_416, %c0_417, %c0_418] : memref<7x8x8xf32, #tpu.memory_space<vmem>>, vector<1x8x8xf32>
    %693 = vector.shape_cast %692 : vector<1x8x8xf32> to vector<8x8xf32>
    %cst_419 = arith.constant dense<0.000000e+00> : vector<8x256xf32>
    %694 = tpu.matmul %693, %691, %cst_419 {dimension_numbers = #tpu.dot_dimension_numbers<[1], [0], [0], [1], [0, 0, 1, 1], [], []>} : vector<8x8xf32>, vector<8x256xf32>, vector<8x256xf32> -> vector<8x256xf32>
    %c5_420 = arith.constant 5 : index
    %c0_421 = arith.constant 0 : index
    %c0_422 = arith.constant 0 : index
    %695 = vector.load %arg9[%c5_420, %c0_421, %c0_422] : memref<7x8x1xf32, #tpu.memory_space<vmem>>, vector<1x8x1xf32>
    %696 = vector.shape_cast %695 : vector<1x8x1xf32> to vector<8x1xf32>
    %697 = vector.broadcast %696 : vector<8x1xf32> to vector<8x256xf32>
    %698 = arith.addf %694, %697 : vector<8x256xf32>
    %cst_423 = arith.constant 0.000000e+00 : f32
    %699 = vector.broadcast %cst_423 : f32 to vector<8x256xf32>
    %700 = arith.maximumf %698, %699 : vector<8x256xf32>
    %cst_424 = arith.constant 0.000000e+00 : f32
    %701 = vector.broadcast %cst_424 : f32 to vector<8x256xf32>
    %c17_i32_425 = arith.constant 17 : i32
    %702 = tpu.dynamic_rotate %700 by %c17_i32_425 dim 1 : vector<8x256xf32>, i32 -> vector<8x256xf32>
    %c54 = arith.constant 54 : index
    %c0_426 = arith.constant 0 : index
    %c0_427 = arith.constant 0 : index
    %703 = vector.load %arg6[%c54, %c0_426, %c0_427] : memref<63x8x256xf32, #tpu.memory_space<vmem>>, vector<1x8x256xf32>
    %704 = vector.shape_cast %703 : vector<1x8x256xf32> to vector<8x256xf32>
    %705 = arith.mulf %702, %704 : vector<8x256xf32>
    %706 = arith.addf %701, %705 : vector<8x256xf32>
    %c16_i32_428 = arith.constant 16 : i32
    %707 = tpu.dynamic_rotate %700 by %c16_i32_428 dim 1 : vector<8x256xf32>, i32 -> vector<8x256xf32>
    %c55 = arith.constant 55 : index
    %c0_429 = arith.constant 0 : index
    %c0_430 = arith.constant 0 : index
    %708 = vector.load %arg6[%c55, %c0_429, %c0_430] : memref<63x8x256xf32, #tpu.memory_space<vmem>>, vector<1x8x256xf32>
    %709 = vector.shape_cast %708 : vector<1x8x256xf32> to vector<8x256xf32>
    %710 = arith.mulf %707, %709 : vector<8x256xf32>
    %711 = arith.addf %706, %710 : vector<8x256xf32>
    %c15_i32_431 = arith.constant 15 : i32
    %712 = tpu.dynamic_rotate %700 by %c15_i32_431 dim 1 : vector<8x256xf32>, i32 -> vector<8x256xf32>
    %c56 = arith.constant 56 : index
    %c0_432 = arith.constant 0 : index
    %c0_433 = arith.constant 0 : index
    %713 = vector.load %arg6[%c56, %c0_432, %c0_433] : memref<63x8x256xf32, #tpu.memory_space<vmem>>, vector<1x8x256xf32>
    %714 = vector.shape_cast %713 : vector<1x8x256xf32> to vector<8x256xf32>
    %715 = arith.mulf %712, %714 : vector<8x256xf32>
    %716 = arith.addf %711, %715 : vector<8x256xf32>
    %c1_i32_434 = arith.constant 1 : i32
    %717 = tpu.dynamic_rotate %700 by %c1_i32_434 dim 1 : vector<8x256xf32>, i32 -> vector<8x256xf32>
    %c57 = arith.constant 57 : index
    %c0_435 = arith.constant 0 : index
    %c0_436 = arith.constant 0 : index
    %718 = vector.load %arg6[%c57, %c0_435, %c0_436] : memref<63x8x256xf32, #tpu.memory_space<vmem>>, vector<1x8x256xf32>
    %719 = vector.shape_cast %718 : vector<1x8x256xf32> to vector<8x256xf32>
    %720 = arith.mulf %717, %719 : vector<8x256xf32>
    %721 = arith.addf %716, %720 : vector<8x256xf32>
    %c58 = arith.constant 58 : index
    %c0_437 = arith.constant 0 : index
    %c0_438 = arith.constant 0 : index
    %722 = vector.load %arg6[%c58, %c0_437, %c0_438] : memref<63x8x256xf32, #tpu.memory_space<vmem>>, vector<1x8x256xf32>
    %723 = vector.shape_cast %722 : vector<1x8x256xf32> to vector<8x256xf32>
    %724 = arith.mulf %700, %723 : vector<8x256xf32>
    %725 = arith.addf %721, %724 : vector<8x256xf32>
    %c255_i32_439 = arith.constant 255 : i32
    %726 = tpu.dynamic_rotate %700 by %c255_i32_439 dim 1 : vector<8x256xf32>, i32 -> vector<8x256xf32>
    %c59 = arith.constant 59 : index
    %c0_440 = arith.constant 0 : index
    %c0_441 = arith.constant 0 : index
    %727 = vector.load %arg6[%c59, %c0_440, %c0_441] : memref<63x8x256xf32, #tpu.memory_space<vmem>>, vector<1x8x256xf32>
    %728 = vector.shape_cast %727 : vector<1x8x256xf32> to vector<8x256xf32>
    %729 = arith.mulf %726, %728 : vector<8x256xf32>
    %730 = arith.addf %725, %729 : vector<8x256xf32>
    %c241_i32_442 = arith.constant 241 : i32
    %731 = tpu.dynamic_rotate %700 by %c241_i32_442 dim 1 : vector<8x256xf32>, i32 -> vector<8x256xf32>
    %c60 = arith.constant 60 : index
    %c0_443 = arith.constant 0 : index
    %c0_444 = arith.constant 0 : index
    %732 = vector.load %arg6[%c60, %c0_443, %c0_444] : memref<63x8x256xf32, #tpu.memory_space<vmem>>, vector<1x8x256xf32>
    %733 = vector.shape_cast %732 : vector<1x8x256xf32> to vector<8x256xf32>
    %734 = arith.mulf %731, %733 : vector<8x256xf32>
    %735 = arith.addf %730, %734 : vector<8x256xf32>
    %c240_i32_445 = arith.constant 240 : i32
    %736 = tpu.dynamic_rotate %700 by %c240_i32_445 dim 1 : vector<8x256xf32>, i32 -> vector<8x256xf32>
    %c61 = arith.constant 61 : index
    %c0_446 = arith.constant 0 : index
    %c0_447 = arith.constant 0 : index
    %737 = vector.load %arg6[%c61, %c0_446, %c0_447] : memref<63x8x256xf32, #tpu.memory_space<vmem>>, vector<1x8x256xf32>
    %738 = vector.shape_cast %737 : vector<1x8x256xf32> to vector<8x256xf32>
    %739 = arith.mulf %736, %738 : vector<8x256xf32>
    %740 = arith.addf %735, %739 : vector<8x256xf32>
    %c239_i32_448 = arith.constant 239 : i32
    %741 = tpu.dynamic_rotate %700 by %c239_i32_448 dim 1 : vector<8x256xf32>, i32 -> vector<8x256xf32>
    %c62 = arith.constant 62 : index
    %c0_449 = arith.constant 0 : index
    %c0_450 = arith.constant 0 : index
    %742 = vector.load %arg6[%c62, %c0_449, %c0_450] : memref<63x8x256xf32, #tpu.memory_space<vmem>>, vector<1x8x256xf32>
    %743 = vector.shape_cast %742 : vector<1x8x256xf32> to vector<8x256xf32>
    %744 = arith.mulf %741, %743 : vector<8x256xf32>
    %745 = arith.addf %740, %744 : vector<8x256xf32>
    %c6_451 = arith.constant 6 : index
    %c0_452 = arith.constant 0 : index
    %c0_453 = arith.constant 0 : index
    %746 = vector.load %arg7[%c6_451, %c0_452, %c0_453] : memref<7x8x1xf32, #tpu.memory_space<vmem>>, vector<1x8x1xf32>
    %747 = vector.shape_cast %746 : vector<1x8x1xf32> to vector<8x1xf32>
    %748 = vector.broadcast %747 : vector<8x1xf32> to vector<8x256xf32>
    %749 = arith.addf %745, %748 : vector<8x256xf32>
    %c6_454 = arith.constant 6 : index
    %c0_455 = arith.constant 0 : index
    %c0_456 = arith.constant 0 : index
    %750 = vector.load %arg8[%c6_454, %c0_455, %c0_456] : memref<7x8x8xf32, #tpu.memory_space<vmem>>, vector<1x8x8xf32>
    %751 = vector.shape_cast %750 : vector<1x8x8xf32> to vector<8x8xf32>
    %cst_457 = arith.constant dense<0.000000e+00> : vector<8x256xf32>
    %752 = tpu.matmul %751, %749, %cst_457 {dimension_numbers = #tpu.dot_dimension_numbers<[1], [0], [0], [1], [0, 0, 1, 1], [], []>} : vector<8x8xf32>, vector<8x256xf32>, vector<8x256xf32> -> vector<8x256xf32>
    %c6_458 = arith.constant 6 : index
    %c0_459 = arith.constant 0 : index
    %c0_460 = arith.constant 0 : index
    %753 = vector.load %arg9[%c6_458, %c0_459, %c0_460] : memref<7x8x1xf32, #tpu.memory_space<vmem>>, vector<1x8x1xf32>
    %754 = vector.shape_cast %753 : vector<1x8x1xf32> to vector<8x1xf32>
    %755 = vector.broadcast %754 : vector<8x1xf32> to vector<8x256xf32>
    %756 = arith.addf %752, %755 : vector<8x256xf32>
    %757 = arith.addf %756, %642 : vector<8x256xf32>
    %cst_461 = arith.constant 0.000000e+00 : f32
    %758 = vector.broadcast %cst_461 : f32 to vector<8x256xf32>
    %759 = arith.maximumf %757, %758 : vector<8x256xf32>
    %760 = arith.addf %71, %759 : vector<8x256xf32>
    %c0_462 = arith.constant 0 : index
    %c0_463 = arith.constant 0 : index
    %761 = vector.load %arg11[%c0_462, %c0_463] : memref<32x8xf32, #tpu.memory_space<vmem>>, vector<32x8xf32>
    %cst_464 = arith.constant dense<0.000000e+00> : vector<32x256xf32>
    %762 = tpu.matmul %761, %760, %cst_464 {dimension_numbers = #tpu.dot_dimension_numbers<[1], [0], [0], [1], [0, 0, 1, 1], [], []>} : vector<32x8xf32>, vector<8x256xf32>, vector<32x256xf32> -> vector<32x256xf32>
    %c0_465 = arith.constant 0 : index
    %c0_466 = arith.constant 0 : index
    %763 = vector.load %arg12[%c0_465, %c0_466] : memref<32x1xf32, #tpu.memory_space<vmem>>, vector<32x1xf32>
    %764 = vector.broadcast %763 : vector<32x1xf32> to vector<32x256xf32>
    %765 = arith.addf %762, %764 : vector<32x256xf32>
    %c0_467 = arith.constant 0 : index
    %c0_468 = arith.constant 0 : index
    %c0_469 = arith.constant 0 : index
    %766 = vector.load %arg13[%c0_467, %c0_468, %c0_469] : memref<1x32x256xf32, #tpu.memory_space<vmem>>, vector<1x32x256xf32>
    %767 = vector.shape_cast %766 : vector<1x32x256xf32> to vector<32x256xf32>
    %768 = vector.shape_cast %765 : vector<32x256xf32> to vector<1x32x256xf32>
    tpu.vector_store %arg13[%c0_467, %c0_468, %c0_469], %768 {strides = array<i32>} : memref<1x32x256xf32, #tpu.memory_space<vmem>>, vector<1x32x256xf32>,
    return
  }
  func.func @transform_0(%arg0: i32) -> (i32, i32, i32) {
    %c0_i32 = arith.constant 0 : i32
    %c0_i32_0 = arith.constant 0 : i32
    %c0_i32_1 = arith.constant 0 : i32
    return %arg0, %c0_i32, %c0_i32_0 : i32, i32, i32
  }
  func.func @transform_1(%arg0: i32) -> (i32, i32, i32) {
    %c0_i32 = arith.constant 0 : i32
    %c0_i32_0 = arith.constant 0 : i32
    %c0_i32_1 = arith.constant 0 : i32
    return %arg0, %c0_i32, %c0_i32_0 : i32, i32, i32
  }
  func.func @transform_2(%arg0: i32) -> (i32, i32) {
    %c0_i32 = arith.constant 0 : i32
    %c0_i32_0 = arith.constant 0 : i32
    %c0_i32_1 = arith.constant 0 : i32
    return %c0_i32, %c0_i32_0 : i32, i32
  }
  func.func @transform_3(%arg0: i32) -> (i32, i32) {
    %c0_i32 = arith.constant 0 : i32
    %c0_i32_0 = arith.constant 0 : i32
    %c0_i32_1 = arith.constant 0 : i32
    return %c0_i32, %c0_i32_0 : i32, i32
  }
  func.func @transform_4(%arg0: i32) -> (i32, i32) {
    %c0_i32 = arith.constant 0 : i32
    %c0_i32_0 = arith.constant 0 : i32
    %c0_i32_1 = arith.constant 0 : i32
    return %c0_i32, %c0_i32_0 : i32, i32
  }
  func.func @transform_5(%arg0: i32) -> (i32, i32, i32) {
    %c0_i32 = arith.constant 0 : i32
    %c0_i32_0 = arith.constant 0 : i32
    %c0_i32_1 = arith.constant 0 : i32
    %c0_i32_2 = arith.constant 0 : i32
    return %c0_i32, %c0_i32_0, %c0_i32_1 : i32, i32, i32
  }
  func.func @transform_6(%arg0: i32) -> (i32, i32, i32) {
    %c0_i32 = arith.constant 0 : i32
    %c0_i32_0 = arith.constant 0 : i32
    %c0_i32_1 = arith.constant 0 : i32
    %c0_i32_2 = arith.constant 0 : i32
    return %c0_i32, %c0_i32_0, %c0_i32_1 : i32, i32, i32
  }
  func.func @transform_7(%arg0: i32) -> (i32, i32, i32) {
    %c0_i32 = arith.constant 0 : i32
    %c0_i32_0 = arith.constant 0 : i32
    %c0_i32_1 = arith.constant 0 : i32
    %c0_i32_2 = arith.constant 0 : i32
    return %c0_i32, %c0_i32_0, %c0_i32_1 : i32, i32, i32
  }
  func.func @transform_8(%arg0: i32) -> (i32, i32, i32) {
    %c0_i32 = arith.constant 0 : i32
    %c0_i32_0 = arith.constant 0 : i32
    %c0_i32_1 = arith.constant 0 : i32
    %c0_i32_2 = arith.constant 0 : i32
    return %c0_i32, %c0_i32_0, %c0_i32_1 : i32, i32, i32
  }
  func.func @transform_9(%arg0: i32) -> (i32, i32, i32) {
    %c0_i32 = arith.constant 0 : i32
    %c0_i32_0 = arith.constant 0 : i32
    %c0_i32_1 = arith.constant 0 : i32
    %c0_i32_2 = arith.constant 0 : i32
    return %c0_i32, %c0_i32_0, %c0_i32_1 : i32, i32, i32
  }
  func.func @transform_10(%arg0: i32) -> (i32, i32) {
    %c0_i32 = arith.constant 0 : i32
    %c0_i32_0 = arith.constant 0 : i32
    %c0_i32_1 = arith.constant 0 : i32
    return %c0_i32, %c0_i32_0 : i32, i32
  }
  func.func @transform_11(%arg0: i32) -> (i32, i32) {
    %c0_i32 = arith.constant 0 : i32
    %c0_i32_0 = arith.constant 0 : i32
    %c0_i32_1 = arith.constant 0 : i32
    return %c0_i32, %c0_i32_0 : i32, i32
  }
  func.func @transform_12(%arg0: i32) -> (i32, i32, i32) {
    %c0_i32 = arith.constant 0 : i32
    %c0_i32_0 = arith.constant 0 : i32
    %c0_i32_1 = arith.constant 0 : i32
    return %arg0, %c0_i32, %c0_i32_0 : i32, i32, i32
  }
}

</mosaic_0001>

<llo_original>
// kernel: cd_block_forward.1
$region0: #{cd_block_forward.1}
  #allocation0 [shape = 'u32[]', space=smem, size = 0x4, offset = 0x4, fixed_abs, tag = 'smem constant byte address 0x4 - core index']
  #allocation1 [shape = 'u32[144,128]{1,0:T(1,128)}', space=vmem, size = 0x12000, scoped, tag = 'internal scratch']
  %s0 = inlined_call_operand.vmem [shape: f32[2,8,256], index: 0, kind: input, shape index: {}]
  %s1 = inlined_call_operand.vmem [shape: f32[2,8,256], index: 1, kind: input, shape index: {}]
  %s2 = inlined_call_operand.vmem [shape: f32[8,8], index: 2, kind: input, shape index: {}]
  %s3 = inlined_call_operand.vmem [shape: f32[8,8], index: 3, kind: input, shape index: {}]
  %s4 = inlined_call_operand.vmem [shape: f32[8,1], index: 4, kind: input, shape index: {}]
  %s5 = inlined_call_operand.hbm [shape: f32[63,8,256], index: 5, kind: input, shape index: {}]
  %s6 = inlined_call_operand.vmem [shape: f32[7,8,1], index: 6, kind: input, shape index: {}]
  %s7 = inlined_call_operand.hbm [shape: f32[7,8,8], index: 7, kind: input, shape index: {}]
  %s8 = inlined_call_operand.vmem [shape: f32[7,8,1], index: 8, kind: input, shape index: {}]
  %s9 = inlined_call_operand.vmem [shape: f32[49,8,256], index: 9, kind: input, shape index: {}]
  %s10 = inlined_call_operand.vmem [shape: f32[32,8], index: 10, kind: input, shape index: {}]
  %s11 = inlined_call_operand.vmem [shape: f32[32,1], index: 11, kind: input, shape index: {}]
  %s12 = inlined_call_operand.vmem [shape: f32[2,32,256], index: 12, kind: output, shape index: {}]
  %s13 = sld [smem:[#allocation0]]
  $region89: #{cd_block_forward.1} parent=0
    _
  %s15 = ssub.s32 1, %s13
  %s16 = scalar_select 0, %s15, %s13
  $region1: #{cd_block_forward.1} parent=0
    #allocation2 [shape = 'u8[516096]{0}', space=vmem, size = 0x7e000, scoped, tag = 'input window, operand 5, single buffered']
    #allocation3 [shape = 's32[2]{0}', space=sflag, size = 0x8, scoped, tag = 'scoped memory for cd_block_forward.1']
    #allocation4 [shape = 'u8[28672]{0}', space=vmem, size = 0x7000, scoped, tag = 'input window, operand 7, single buffered']
    #allocation5 [shape = 's32[1]{0}', space=sflag, size = 0x4, scoped, tag = 'scoped memory for cd_block_forward.1']
    %17 = vsyncpa [#allocation3], 0
    %18 = vsyncpa [#allocation5], 0
    loop: start=0, step=1, limit=4
    $region2: #{cd_block_forward.1} parent=1 // loop_pre_header
      _
    $region3: #{cd_block_forward.1} parent=1 // loop_header
      %s20 = sphi 0, %s24
      %p21 = scmp.ge.s32.totalorder %s20, 4
      %s30 = sphi 0, %s32
      %s33 = sphi 0, %s30
      %s34 = sphi 0, %s33
      %s50 = sphi 0, %s34
      %s56 = sphi 0, %s58
      %s59 = sphi 0, %s56
      %s60 = sphi 0, %s59
      %s76 = sphi 0, %s60
      %s80 = sphi 0, %s80
      %s82 = sphi 0, %s80
      %s83 = sphi 0, %s82
      %s97 = sphi 0, %s83
      %s101 = sphi 0, %s101
      %s103 = sphi 0, %s101
      %s104 = sphi 0, %s103
      %s118 = sphi 0, %s104
      %s122 = sphi 0, %s122
      %s124 = sphi 0, %s122
      %s125 = sphi 0, %s124
      %s139 = sphi 0, %s125
      %s143 = sphi 0, %s143
      %s145 = sphi 0, %s143
      %s146 = sphi 0, %s145
      %s160 = sphi 0, %s146
      %s164 = sphi 0, %s164
      %s166 = sphi 0, %s164
      %s167 = sphi 0, %s166
      %s181 = sphi 0, %s167
      %s185 = sphi 0, %s185
      %s187 = sphi 0, %s185
      %s188 = sphi 0, %s187
      %s202 = sphi 0, %s188
      %s206 = sphi 0, %s206
      %s208 = sphi 0, %s206
      %s209 = sphi 0, %s208
      %s223 = sphi 0, %s209
      %s227 = sphi 0, %s227
      %s229 = sphi 0, %s227
      %s230 = sphi 0, %s229
      %s244 = sphi 0, %s230
      %s248 = sphi 0, %s248
      %s250 = sphi 0, %s248
      %s251 = sphi 0, %s250
      %s265 = sphi 0, %s251
      %s269 = sphi 0, %s269
      %s271 = sphi 0, %s269
      %s272 = sphi 0, %s271
      %s286 = sphi 0, %s272
      %s292 = sphi 0, %s294
      %s295 = sphi 0, %s292
      %s296 = sphi 0, %s295
      %s312 = sphi 0, %s296
    $region4: #{cd_block_forward.1} parent=1 // loop_header_branch
      %23 = sbr.rel (%p21) target = $region8
    $region5: #{cd_block_forward.1} parent=1 // loop_body
      %s25 = ssub.s32 %s20, 1
      %s26 = ssub.s32 %s20, 2
      %s27 = sadd.s32 %s20, 1
      %s28 = ssub.s32 %s20, %s27
      %p29 = scmp.eq.s32.totalorder %s28, 0
      %s31 = sadd.s32 %s30, 1
      %s32 = scalar_select %p29, %s30, %s31
      %p35 = pneg %p29
      %p36 = scmp.eq.s32.totalorder %s20, 1
      %p37 = por %p35, %p36
      %p38 = scmp.ne.s32.totalorder %s30, %s33
      %p39 = scmp.eq.s32.totalorder %s20, 0
      %p40 = por %p38, %p39
      %p41 = scmp.ne.s32.totalorder %s30, %s33
      %p42 = scmp.eq.s32.totalorder %s25, 1
      %p43 = por %p41, %p42
      %p44 = scmp.ne.s32.totalorder %s33, %s34
      %p45 = scmp.eq.s32.totalorder %s25, 0
      %p46 = por %p44, %p45
      %p47 = scmp.ne.s32.totalorder %s33, %s34
      %p48 = scmp.eq.s32.totalorder %s26, 1
      %p49 = por %p47, %p48
      %p51 = scmp.ne.s32.totalorder %s34, %s50
      %p52 = scmp.eq.s32.totalorder %s26, 0
      %p53 = por %p51, %p52
      %s54 = ssub.s32 %s20, %s27
      %p55 = scmp.eq.s32.totalorder %s54, 0
      %s57 = sadd.s32 %s56, 1
      %s58 = scalar_select %p55, %s56, %s57
      %p61 = pneg %p55
      %p62 = scmp.eq.s32.totalorder %s20, 1
      %p63 = por %p61, %p62
      %p64 = scmp.ne.s32.totalorder %s56, %s59
      %p65 = scmp.eq.s32.totalorder %s20, 0
      %p66 = por %p64, %p65
      %p67 = scmp.ne.s32.totalorder %s56, %s59
      %p68 = scmp.eq.s32.totalorder %s25, 1
      %p69 = por %p67, %p68
      %p70 = scmp.ne.s32.totalorder %s59, %s60
      %p71 = scmp.eq.s32.totalorder %s25, 0
      %p72 = por %p70, %p71
      %p73 = scmp.ne.s32.totalorder %s59, %s60
      %p74 = scmp.eq.s32.totalorder %s26, 1
      %p75 = por %p73, %p74
      %p77 = scmp.ne.s32.totalorder %s60, %s76
      %p78 = scmp.eq.s32.totalorder %s26, 0
      %p79 = por %p77, %p78
      %s81 = sadd.s32 %s80, 1
      %p84 = scmp.eq.s32.totalorder %s20, 1
      %p85 = scmp.ne.s32.totalorder %s80, %s82
      %p86 = scmp.eq.s32.totalorder %s20, 0
      %p87 = por %p85, %p86
      %p88 = scmp.ne.s32.totalorder %s80, %s82
      %p89 = scmp.eq.s32.totalorder %s25, 1
      %p90 = por %p88, %p89
      %p91 = scmp.ne.s32.totalorder %s82, %s83
      %p92 = scmp.eq.s32.totalorder %s25, 0
      %p93 = por %p91, %p92
      %p94 = scmp.ne.s32.totalorder %s82, %s83
      %p95 = scmp.eq.s32.totalorder %s26, 1
      %p96 = por %p94, %p95
      %p98 = scmp.ne.s32.totalorder %s83, %s97
      %p99 = scmp.eq.s32.totalorder %s26, 0
      %p100 = por %p98, %p99
      %s102 = sadd.s32 %s101, 1
      %p105 = scmp.eq.s32.totalorder %s20, 1
      %p106 = scmp.ne.s32.totalorder %s101, %s103
      %p107 = scmp.eq.s32.totalorder %s20, 0
      %p108 = por %p106, %p107
      %p109 = scmp.ne.s32.totalorder %s101, %s103
      %p110 = scmp.eq.s32.totalorder %s25, 1
      %p111 = por %p109, %p110
      %p112 = scmp.ne.s32.totalorder %s103, %s104
      %p113 = scmp.eq.s32.totalorder %s25, 0
      %p114 = por %p112, %p113
      %p115 = scmp.ne.s32.totalorder %s103, %s104
      %p116 = scmp.eq.s32.totalorder %s26, 1
      %p117 = por %p115, %p116
      %p119 = scmp.ne.s32.totalorder %s104, %s118
      %p120 = scmp.eq.s32.totalorder %s26, 0
      %p121 = por %p119, %p120
      %s123 = sadd.s32 %s122, 1
      %p126 = scmp.eq.s32.totalorder %s20, 1
      %p127 = scmp.ne.s32.totalorder %s122, %s124
      %p128 = scmp.eq.s32.totalorder %s20, 0
      %p129 = por %p127, %p128
      %p130 = scmp.ne.s32.totalorder %s122, %s124
      %p131 = scmp.eq.s32.totalorder %s25, 1
      %p132 = por %p130, %p131
      %p133 = scmp.ne.s32.totalorder %s124, %s125
      %p134 = scmp.eq.s32.totalorder %s25, 0
      %p135 = por %p133, %p134
      %p136 = scmp.ne.s32.totalorder %s124, %s125
      %p137 = scmp.eq.s32.totalorder %s26, 1
      %p138 = por %p136, %p137
      %p140 = scmp.ne.s32.totalorder %s125, %s139
      %p141 = scmp.eq.s32.totalorder %s26, 0
      %p142 = por %p140, %p141
      %s144 = sadd.s32 %s143, 1
      %p147 = scmp.eq.s32.totalorder %s20, 1
      %p148 = scmp.ne.s32.totalorder %s143, %s145
      %p149 = scmp.eq.s32.totalorder %s20, 0
      %p150 = por %p148, %p149
      %p151 = scmp.ne.s32.totalorder %s143, %s145
      %p152 = scmp.eq.s32.totalorder %s25, 1
      %p153 = por %p151, %p152
      %p154 = scmp.ne.s32.totalorder %s145, %s146
      %p155 = scmp.eq.s32.totalorder %s25, 0
      %p156 = por %p154, %p155
      %p157 = scmp.ne.s32.totalorder %s145, %s146
      %p158 = scmp.eq.s32.totalorder %s26, 1
      %p159 = por %p157, %p158
      %p161 = scmp.ne.s32.totalorder %s146, %s160
      %p162 = scmp.eq.s32.totalorder %s26, 0
      %p163 = por %p161, %p162
      %s165 = sadd.s32 %s164, 1
      %p168 = scmp.eq.s32.totalorder %s20, 1
      %p169 = scmp.ne.s32.totalorder %s164, %s166
      %p170 = scmp.eq.s32.totalorder %s20, 0
      %p171 = por %p169, %p170
      %p172 = scmp.ne.s32.totalorder %s164, %s166
      %p173 = scmp.eq.s32.totalorder %s25, 1
      %p174 = por %p172, %p173
      %p175 = scmp.ne.s32.totalorder %s166, %s167
      %p176 = scmp.eq.s32.totalorder %s25, 0
      %p177 = por %p175, %p176
      %p178 = scmp.ne.s32.totalorder %s166, %s167
      %p179 = scmp.eq.s32.totalorder %s26, 1
      %p180 = por %p178, %p179
      %p182 = scmp.ne.s32.totalorder %s167, %s181
      %p183 = scmp.eq.s32.totalorder %s26, 0
      %p184 = por %p182, %p183
      %s186 = sadd.s32 %s185, 1
      %p189 = scmp.eq.s32.totalorder %s20, 1
      %p190 = scmp.ne.s32.totalorder %s185, %s187
      %p191 = scmp.eq.s32.totalorder %s20, 0
      %p192 = por %p190, %p191
      %p193 = scmp.ne.s32.totalorder %s185, %s187
      %p194 = scmp.eq.s32.totalorder %s25, 1
      %p195 = por %p193, %p194
      %p196 = scmp.ne.s32.totalorder %s187, %s188
      %p197 = scmp.eq.s32.totalorder %s25, 0
      %p198 = por %p196, %p197
      %p199 = scmp.ne.s32.totalorder %s187, %s188
      %p200 = scmp.eq.s32.totalorder %s26, 1
      %p201 = por %p199, %p200
      %p203 = scmp.ne.s32.totalorder %s188, %s202
      %p204 = scmp.eq.s32.totalorder %s26, 0
      %p205 = por %p203, %p204
      %s207 = sadd.s32 %s206, 1
      %p210 = scmp.eq.s32.totalorder %s20, 1
      %p211 = scmp.ne.s32.totalorder %s206, %s208
      %p212 = scmp.eq.s32.totalorder %s20, 0
      %p213 = por %p211, %p212
      %p214 = scmp.ne.s32.totalorder %s206, %s208
      %p215 = scmp.eq.s32.totalorder %s25, 1
      %p216 = por %p214, %p215
      %p217 = scmp.ne.s32.totalorder %s208, %s209
      %p218 = scmp.eq.s32.totalorder %s25, 0
      %p219 = por %p217, %p218
      %p220 = scmp.ne.s32.totalorder %s208, %s209
      %p221 = scmp.eq.s32.totalorder %s26, 1
      %p222 = por %p220, %p221
      %p224 = scmp.ne.s32.totalorder %s209, %s223
      %p225 = scmp.eq.s32.totalorder %s26, 0
      %p226 = por %p224, %p225
      %s228 = sadd.s32 %s227, 1
      %p231 = scmp.eq.s32.totalorder %s20, 1
      %p232 = scmp.ne.s32.totalorder %s227, %s229
      %p233 = scmp.eq.s32.totalorder %s20, 0
      %p234 = por %p232, %p233
      %p235 = scmp.ne.s32.totalorder %s227, %s229
      %p236 = scmp.eq.s32.totalorder %s25, 1
      %p237 = por %p235, %p236
      %p238 = scmp.ne.s32.totalorder %s229, %s230
      %p239 = scmp.eq.s32.totalorder %s25, 0
      %p240 = por %p238, %p239
      %p241 = scmp.ne.s32.totalorder %s229, %s230
      %p242 = scmp.eq.s32.totalorder %s26, 1
      %p243 = por %p241, %p242
      %p245 = scmp.ne.s32.totalorder %s230, %s244
      %p246 = scmp.eq.s32.totalorder %s26, 0
      %p247 = por %p245, %p246
      %s249 = sadd.s32 %s248, 1
      %p252 = scmp.eq.s32.totalorder %s20, 1
      %p253 = scmp.ne.s32.totalorder %s248, %s250
      %p254 = scmp.eq.s32.totalorder %s20, 0
      %p255 = por %p253, %p254
      %p256 = scmp.ne.s32.totalorder %s248, %s250
      %p257 = scmp.eq.s32.totalorder %s25, 1
      %p258 = por %p256, %p257
      %p259 = scmp.ne.s32.totalorder %s250, %s251
      %p260 = scmp.eq.s32.totalorder %s25, 0
      %p261 = por %p259, %p260
      %p262 = scmp.ne.s32.totalorder %s250, %s251
      %p263 = scmp.eq.s32.totalorder %s26, 1
      %p264 = por %p262, %p263
      %p266 = scmp.ne.s32.totalorder %s251, %s265
      %p267 = scmp.eq.s32.totalorder %s26, 0
      %p268 = por %p266, %p267
      %s270 = sadd.s32 %s269, 1
      %p273 = scmp.eq.s32.totalorder %s20, 1
      %p274 = scmp.ne.s32.totalorder %s269, %s271
      %p275 = scmp.eq.s32.totalorder %s20, 0
      %p276 = por %p274, %p275
      %p277 = scmp.ne.s32.totalorder %s269, %s271
      %p278 = scmp.eq.s32.totalorder %s25, 1
      %p279 = por %p277, %p278
      %p280 = scmp.ne.s32.totalorder %s271, %s272
      %p281 = scmp.eq.s32.totalorder %s25, 0
      %p282 = por %p280, %p281
      %p283 = scmp.ne.s32.totalorder %s271, %s272
      %p284 = scmp.eq.s32.totalorder %s26, 1
      %p285 = por %p283, %p284
      %p287 = scmp.ne.s32.totalorder %s272, %s286
      %p288 = scmp.eq.s32.totalorder %s26, 0
      %p289 = por %p287, %p288
      %s290 = ssub.s32 %s20, %s27
      %p291 = scmp.eq.s32.totalorder %s290, 0
      %s293 = sadd.s32 %s292, 1
      %s294 = scalar_select %p291, %s292, %s293
      %p297 = pneg %p291
      %p298 = scmp.eq.s32.totalorder %s20, 1
      %p299 = por %p297, %p298
      %p300 = scmp.ne.s32.totalorder %s292, %s295
      %p301 = scmp.eq.s32.totalorder %s20, 0
      %p302 = por %p300, %p301
      %p303 = scmp.ne.s32.totalorder %s292, %s295
      %p304 = scmp.eq.s32.totalorder %s25, 1
      %p305 = por %p303, %p304
      %p306 = scmp.ne.s32.totalorder %s295, %s296
      %p307 = scmp.eq.s32.totalorder %s25, 0
      %p308 = por %p306, %p307
      %p309 = scmp.ne.s32.totalorder %s295, %s296
      %p310 = scmp.eq.s32.totalorder %s26, 1
      %p311 = por %p309, %p310
      %p313 = scmp.ne.s32.totalorder %s296, %s312
      %p314 = scmp.eq.s32.totalorder %s26, 0
      %p315 = por %p313, %p314
      %p316 = scmp.le.s32.totalorder 1, %s20
      %p317 = scmp.lt.s32.totalorder %s20, 3
      %p318 = pnand %p316, %p317
      %p319 = pneg %p318
      // Predicated region
      $region9: #{cd_block_forward.1} parent=5 // pred_check
        _
      $region10: #{cd_block_forward.1} parent=5 // pred_check_branch
        %321 = sbr.rel (%p318) target = $region12
      $region11: #{cd_block_forward.1} parent=5 // pred_region
        %s322 = ssub.s32 %s20, 1
        // Predicated region
        $region13: #{cd_block_forward.1} parent=11 // pred_check
          %p323 = pneg %p93
        $region14: #{cd_block_forward.1} parent=11 // pred_check_branch
          %325 = sbr.rel (%p323) target = $region16
        $region15: #{cd_block_forward.1} parent=11 // pred_region
          _
        $region16: #{cd_block_forward.1} parent=11 // pred_fallthru
          _
        // Predicated region
        $region17: #{cd_block_forward.1} parent=11 // pred_check
          %p326 = pneg %p114
        $region18: #{cd_block_forward.1} parent=11 // pred_check_branch
          %328 = sbr.rel (%p326) target = $region20
        $region19: #{cd_block_forward.1} parent=11 // pred_region
          _
        $region20: #{cd_block_forward.1} parent=11 // pred_fallthru
          _
        // Predicated region
        $region21: #{cd_block_forward.1} parent=11 // pred_check
          %p329 = pneg %p135
        $region22: #{cd_block_forward.1} parent=11 // pred_check_branch
          %331 = sbr.rel (%p329) target = $region24
        $region23: #{cd_block_forward.1} parent=11 // pred_region
          _
        $region24: #{cd_block_forward.1} parent=11 // pred_fallthru
          _
        // Predicated region
        $region25: #{cd_block_forward.1} parent=11 // pred_check
          %p332 = pneg %p156
        $region26: #{cd_block_forward.1} parent=11 // pred_check_branch
          %334 = sbr.rel (%p332) target = $region28
        $region27: #{cd_block_forward.1} parent=11 // pred_region
          %s336 = ssub.s32 16128, 16128
          %337 = vsyncadd [#allocation3], %s336
          %s338 = sshll.u32 [#allocation2], 4
          %s339 = int_to_ptr.vmem [resolvable:$true] %s338
          %344 = dma.hbm_to_vmem [thread:$0]  %s5, 16128, %s339, [#allocation3], 256, 256, 16
        $region28: #{cd_block_forward.1} parent=11 // pred_fallthru
          _
        // Predicated region
        $region29: #{cd_block_forward.1} parent=11 // pred_check
          %p345 = pneg %p177
        $region30: #{cd_block_forward.1} parent=11 // pred_check_branch
          %347 = sbr.rel (%p345) target = $region32
        $region31: #{cd_block_forward.1} parent=11 // pred_region
          _
        $region32: #{cd_block_forward.1} parent=11 // pred_fallthru
          _
        // Predicated region
        $region33: #{cd_block_forward.1} parent=11 // pred_check
          %p348 = pneg %p198
        $region34: #{cd_block_forward.1} parent=11 // pred_check_branch
          %350 = sbr.rel (%p348) target = $region36
        $region35: #{cd_block_forward.1} parent=11 // pred_region
          %s352 = ssub.s32 896, 896
          %353 = vsyncadd [#allocation5], %s352
          %s354 = sshll.u32 [#allocation4], 4
          %s355 = int_to_ptr.vmem [resolvable:$true] %s354
          %360 = dma.hbm_to_vmem [thread:$0]  %s7, 896, %s355, [#allocation5], 128, 128, 8
        $region36: #{cd_block_forward.1} parent=11 // pred_fallthru
          _
        // Predicated region
        $region37: #{cd_block_forward.1} parent=11 // pred_check
          %p361 = pneg %p219
        $region38: #{cd_block_forward.1} parent=11 // pred_check_branch
          %363 = sbr.rel (%p361) target = $region40
        $region39: #{cd_block_forward.1} parent=11 // pred_region
          _
        $region40: #{cd_block_forward.1} parent=11 // pred_fallthru
          _
        // Predicated region
        $region41: #{cd_block_forward.1} parent=11 // pred_check
          %p364 = pneg %p240
        $region42: #{cd_block_forward.1} parent=11 // pred_check_branch
          %366 = sbr.rel (%p364) target = $region44
        $region43: #{cd_block_forward.1} parent=11 // pred_region
          _
        $region44: #{cd_block_forward.1} parent=11 // pred_fallthru
          _
        // Predicated region
        $region45: #{cd_block_forward.1} parent=11 // pred_check
          %p367 = pneg %p261
        $region46: #{cd_block_forward.1} parent=11 // pred_check_branch
          %369 = sbr.rel (%p367) target = $region48
        $region47: #{cd_block_forward.1} parent=11 // pred_region
          _
        $region48: #{cd_block_forward.1} parent=11 // pred_fallthru
          _
        // Predicated region
        $region49: #{cd_block_forward.1} parent=11 // pred_check
          %p370 = pneg %p282
        $region50: #{cd_block_forward.1} parent=11 // pred_check_branch
          %372 = sbr.rel (%p370) target = $region52
        $region51: #{cd_block_forward.1} parent=11 // pred_region
          _
        $region52: #{cd_block_forward.1} parent=11 // pred_fallthru
          _
      $region12: #{cd_block_forward.1} parent=5 // pred_fallthru
        _
      %p373 = scmp.lt.s32.totalorder %s20, 2
      // Predicated region
      $region53: #{cd_block_forward.1} parent=5 // pred_check
        %p374 = pneg %p373
      $region54: #{cd_block_forward.1} parent=5 // pred_check_branch
        %376 = sbr.rel (%p374) target = $region56
      $region55: #{cd_block_forward.1} parent=5 // pred_region
        // Predicated region
        $region57: #{cd_block_forward.1} parent=55 // pred_check
          %p377 = pneg %p40
        $region58: #{cd_block_forward.1} parent=55 // pred_check_branch
          %379 = sbr.rel (%p377) target = $region60
        $region59: #{cd_block_forward.1} parent=55 // pred_region
          %p380 = scmp.lt.s32.totalorder %s20, 1
          %s381 = scalar_select %p380, %s20, 1
          %s382 = smul.addr %s381, 2
          %s383 = smul.addr %s382, 8
          %s384 = scalar_lea.vmem %s0, %s383
        $region60: #{cd_block_forward.1} parent=55 // pred_fallthru
          _
        // Predicated region
        $region61: #{cd_block_forward.1} parent=55 // pred_check
          %p385 = pneg %p66
        $region62: #{cd_block_forward.1} parent=55 // pred_check_branch
          %387 = sbr.rel (%p385) target = $region64
        $region63: #{cd_block_forward.1} parent=55 // pred_region
          %p388 = scmp.lt.s32.totalorder %s20, 1
          %s389 = scalar_select %p388, %s20, 1
          %s390 = smul.addr %s389, 2
          %s391 = smul.addr %s390, 8
          %s392 = scalar_lea.vmem %s1, %s391
        $region64: #{cd_block_forward.1} parent=55 // pred_fallthru
          _
      $region56: #{cd_block_forward.1} parent=5 // pred_fallthru
        _
      %p393 = scmp.le.s32.totalorder 1, %s20
      %p394 = scmp.lt.s32.totalorder %s20, 3
      %p395 = pnand %p393, %p394
      %p396 = pneg %p395
      // Predicated region
      $region65: #{cd_block_forward.1} parent=5 // pred_check
        _
      $region66: #{cd_block_forward.1} parent=5 // pred_check_branch
        %398 = sbr.rel (%p395) target = $region68
      $region67: #{cd_block_forward.1} parent=5 // pred_region
        %s399 = ssub.s32 %s20, 1
        // Predicated region
        $region69: #{cd_block_forward.1} parent=67 // pred_check
          %p400 = pneg %p156
        $region70: #{cd_block_forward.1} parent=67 // pred_check_branch
          %402 = sbr.rel (%p400) target = $region72
        $region71: #{cd_block_forward.1} parent=67 // pred_region
          %403 = dma.done [#allocation3], 16128
        $region72: #{cd_block_forward.1} parent=67 // pred_fallthru
          _
        // Predicated region
        $region73: #{cd_block_forward.1} parent=67 // pred_check
          %p404 = pneg %p198
        $region74: #{cd_block_forward.1} parent=67 // pred_check_branch
          %406 = sbr.rel (%p404) target = $region76
        $region75: #{cd_block_forward.1} parent=67 // pred_region
          %407 = dma.done [#allocation5], 896
        $region76: #{cd_block_forward.1} parent=67 // pred_fallthru
          _
        %p408 = scmp.lt.s32.totalorder %s25, 1
        %s409 = scalar_select %p408, %s25, 1
        %s410 = smul.addr %s409, 2
        %s411 = smul.addr %s410, 8
        %s412 = scalar_lea.vmem %s0, %s411
        %p413 = pneg %p46
        %p414 = pneg %p43
        %p415 = scmp.lt.s32.totalorder %s25, 1
        %s416 = scalar_select %p415, %s25, 1
        %s417 = smul.addr %s416, 2
        %s418 = smul.addr %s417, 8
        %s419 = scalar_lea.vmem %s1, %s418
        %p420 = pneg %p72
        %p421 = pneg %p69
        %p422 = pneg %p93
        %p423 = pneg %p90
        %p424 = pneg %p114
        %p425 = pneg %p111
        %p426 = pneg %p135
        %p427 = pneg %p132
        %p428 = pneg %p156
        %p429 = pneg %p153
        %p430 = pneg %p177
        %p431 = pneg %p174
        %p432 = pneg %p198
        %p433 = pneg %p195
        %p434 = pneg %p219
        %p435 = pneg %p216
        %p436 = pneg %p240
        %p437 = pneg %p237
        %p438 = pneg %p261
        %p439 = pneg %p258
        %p440 = pneg %p282
        %p441 = pneg %p279
        %p442 = pneg %p308
        %p443 = pneg %p305
        %p444 = scmp.lt.s32.totalorder %s25, 1
        %s445 = scalar_select %p444, %s25, 1
        %s446 = smul.addr %s445, 8
        %s447 = smul.addr %s446, 8
        %s448 = scalar_lea.vmem %s12, %s447
        %p449 = scmp.lt.s32.totalorder %s25, 1
        %s450 = scalar_select %p449, %s25, 1
        %s451 = smul.addr %s450, 2
        %s452 = smul.addr %s451, 8
        %s453 = scalar_lea.vmem %s0, %s452
        %p454 = scmp.lt.s32.totalorder %s25, 1
        %s455 = scalar_select %p454, %s25, 1
        %s456 = smul.addr %s455, 2
        %s457 = smul.addr %s456, 8
        %s458 = scalar_lea.vmem %s1, %s457
        %p459 = scmp.lt.s32.totalorder %s25, 1
        %s460 = scalar_select %p459, %s25, 1
        %s461 = smul.addr %s460, 8
        %s462 = smul.addr %s461, 8
        %s463 = scalar_lea.vmem %s12, %s462
        %v464 = vld [vmem:[%s453] sm:$0xff]
        %v465 = vld [vmem:[%s453 + $0x8] sm:$0xff]
        %v466 = vld [vmem:[%s458] sm:$0xff]
        %v467 = vld [vmem:[%s458 + $0x8] sm:$0xff]
        %v468 = vld [vmem:[%s2] sm:$0xff]
        %v469 = vld [vmem:[%s3] sm:$0xff]
        %vm470 = vcmask 64512
        %v472 = vsel %vm470, %v469, 0
        %474 = vmatprep.subr.mxu0 %v467
        %475 = vmatpush1.msra.mxu0 %v466
        %476 = vmatprep.subr.mxu0 0.0
        %477 = vmatpush1.msra.mxu0 0.0
        %478 = vmatprep.subr.mxu0 0.0
        %479 = vmatpush1.msra.mxu0 0.0
        %480 = vmatprep.subr.mxu0 0.0
        %481 = vmatpush1.msra.mxu0 0.0
        %482 = vmatprep.subr.mxu0 0.0
        %483 = vmatpush1.msra.mxu0 0.0
        %484 = vmatprep.subr.mxu0 0.0
        %485 = vmatpush1.msra.mxu0 0.0
        %486 = vmatprep.subr.mxu0 0.0
        %487 = vmatpush1.msra.mxu0 0.0
        %488 = vmatprep.subr.mxu0 0.0
        %489 = vmatpush1.msra.mxu0 0.0
        %490 = vmatprep.subr.mxu0 0.0
        %491 = vmatpush1.msra.mxu0 0.0
        %492 = vmatprep.subr.mxu0 0.0
        %493 = vmatpush1.msra.mxu0 0.0
        %494 = vmatprep.subr.mxu0 0.0
        %495 = vmatpush1.msra.mxu0 0.0
        %496 = vmatprep.subr.mxu0 0.0
        %497 = vmatpush1.msra.mxu0 0.0
        %498 = vmatprep.subr.mxu0 0.0
        %499 = vmatpush1.msra.mxu0 0.0
        %500 = vmatprep.subr.mxu0 0.0
        %501 = vmatpush1.msra.mxu0 0.0
        %502 = vmatprep.subr.mxu0 0.0
        %503 = vmatpush1.msra.mxu0 0.0
        %504 = vmatprep.subr.mxu0 0.0
        %505 = vmatpush1.msra.mxu0 0.0
        %506 = vmatprep.subr.mxu0 0.0
        %507 = vmatpush1.msra.mxu0 0.0
        %508 = vmatprep.subr.mxu0 0.0
        %509 = vmatpush1.msra.mxu0 0.0
        %510 = vmatprep.subr.mxu0 0.0
        %511 = vmatpush1.msra.mxu0 0.0
        %512 = vmatprep.subr.mxu0 0.0
        %513 = vmatpush1.msra.mxu0 0.0
        %514 = vmatprep.subr.mxu0 0.0
        %515 = vmatpush1.msra.mxu0 0.0
        %516 = vmatprep.subr.mxu0 0.0
        %517 = vmatpush1.msra.mxu0 0.0
        %518 = vmatprep.subr.mxu0 0.0
        %519 = vmatpush1.msra.mxu0 0.0
        %520 = vmatprep.subr.mxu0 0.0
        %521 = vmatpush1.msra.mxu0 0.0
        %522 = vmatprep.subr.mxu0 0.0
        %523 = vmatpush1.msra.mxu0 0.0
        %524 = vmatprep.subr.mxu0 0.0
        %525 = vmatpush1.msra.mxu0 0.0
        %526 = vmatprep.subr.mxu0 0.0
        %527 = vmatpush1.msra.mxu0 0.0
        %528 = vmatprep.subr.mxu0 0.0
        %529 = vmatpush1.msra.mxu0 0.0
        %530 = vmatprep.subr.mxu0 0.0
        %531 = vmatpush1.msra.mxu0 0.0
        %532 = vmatprep.subr.mxu0 0.0
        %533 = vmatpush1.msra.mxu0 0.0
        %534 = vmatprep.subr.mxu0 0.0
        %535 = vmatpush1.msra.mxu0 0.0
        %536 = vmatprep.subr.mxu0 0.0
        %537 = vmatpush1.msra.mxu0 0.0
        %538 = vmatprep.mubr.f32.mxu0 0.0
        %539 = vmatmul.mubr.f32.gmra.mrb[0].mxu0 %v472
        %v540 = vpop.f32.mrb[0].mxu0
        %v541 = vadd.f32 0.0, %v540
        %v542 = vpop.f32.mrb[0].mxu0
        %v543 = vadd.f32 0.0, %v542
        %544 = vdwg.mxu0
        %v546 = vsel %vm470, %v468, 0
        %548 = vmatprep.subr.mxu0 %v465
        %549 = vmatpush1.msra.mxu0 %v464
        %550 = vmatprep.subr.mxu0 0.0
        %551 = vmatpush1.msra.mxu0 0.0
        %552 = vmatprep.subr.mxu0 0.0
        %553 = vmatpush1.msra.mxu0 0.0
        %554 = vmatprep.subr.mxu0 0.0
        %555 = vmatpush1.msra.mxu0 0.0
        %556 = vmatprep.subr.mxu0 0.0
        %557 = vmatpush1.msra.mxu0 0.0
        %558 = vmatprep.subr.mxu0 0.0
        %559 = vmatpush1.msra.mxu0 0.0
        %560 = vmatprep.subr.mxu0 0.0
        %561 = vmatpush1.msra.mxu0 0.0
        %562 = vmatprep.subr.mxu0 0.0
        %563 = vmatpush1.msra.mxu0 0.0
        %564 = vmatprep.subr.mxu0 0.0
        %565 = vmatpush1.msra.mxu0 0.0
        %566 = vmatprep.subr.mxu0 0.0
        %567 = vmatpush1.msra.mxu0 0.0
        %568 = vmatprep.subr.mxu0 0.0
        %569 = vmatpush1.msra.mxu0 0.0
        %570 = vmatprep.subr.mxu0 0.0
        %571 = vmatpush1.msra.mxu0 0.0
        %572 = vmatprep.subr.mxu0 0.0
        %573 = vmatpush1.msra.mxu0 0.0
        %574 = vmatprep.subr.mxu0 0.0
        %575 = vmatpush1.msra.mxu0 0.0
        %576 = vmatprep.subr.mxu0 0.0
        %577 = vmatpush1.msra.mxu0 0.0
        %578 = vmatprep.subr.mxu0 0.0
        %579 = vmatpush1.msra.mxu0 0.0
        %580 = vmatprep.subr.mxu0 0.0
        %581 = vmatpush1.msra.mxu0 0.0
        %582 = vmatprep.subr.mxu0 0.0
        %583 = vmatpush1.msra.mxu0 0.0
        %584 = vmatprep.subr.mxu0 0.0
        %585 = vmatpush1.msra.mxu0 0.0
        %586 = vmatprep.subr.mxu0 0.0
        %587 = vmatpush1.msra.mxu0 0.0
        %588 = vmatprep.subr.mxu0 0.0
        %589 = vmatpush1.msra.mxu0 0.0
        %590 = vmatprep.subr.mxu0 0.0
        %591 = vmatpush1.msra.mxu0 0.0
        %592 = vmatprep.subr.mxu0 0.0
        %593 = vmatpush1.msra.mxu0 0.0
        %594 = vmatprep.subr.mxu0 0.0
        %595 = vmatpush1.msra.mxu0 0.0
        %596 = vmatprep.subr.mxu0 0.0
        %597 = vmatpush1.msra.mxu0 0.0
        %598 = vmatprep.subr.mxu0 0.0
        %599 = vmatpush1.msra.mxu0 0.0
        %600 = vmatprep.subr.mxu0 0.0
        %601 = vmatpush1.msra.mxu0 0.0
        %602 = vmatprep.subr.mxu0 0.0
        %603 = vmatpush1.msra.mxu0 0.0
        %604 = vmatprep.subr.mxu0 0.0
        %605 = vmatpush1.msra.mxu0 0.0
        %606 = vmatprep.subr.mxu0 0.0
        %607 = vmatpush1.msra.mxu0 0.0
        %608 = vmatprep.subr.mxu0 0.0
        %609 = vmatpush1.msra.mxu0 0.0
        %610 = vmatprep.subr.mxu0 0.0
        %611 = vmatpush1.msra.mxu0 0.0
        %612 = vmatprep.mubr.f32.mxu0 0.0
        %613 = vmatmul.mubr.f32.gmra.mrb[0].mxu0 %v546
        %v614 = vpop.f32.mrb[0].mxu0
        %v615 = vadd.f32 %v541, %v614
        %v616 = vpop.f32.mrb[0].mxu0
        %v617 = vadd.f32 %v543, %v616
        %618 = vdwg.mxu0
        %v619 = vld [vmem:[%s4] sm:$0xff]
        %621 = vset.pattern.permute.xlu0 0
        %622 = vperm.xlu0 %621, %v619
        %v623 = vpop.permute.xlu0 %622
        %v625 = vadd.f32 %v615, %v623
        %v626 = vadd.f32 %v617, %v623
        %v627 = vmax.f32 %v625, 0.0
        %v628 = vmax.f32 %v626, 0.0
        %629 = vrot.lane.b32.xlu0 %v627, 17
        %v630 = vpop.permute.xlu0 %629
        %631 = vrot.lane.b32.xlu0 %v628, 17
        %v632 = vpop.permute.xlu0 %631
        %v633 = vlaneseq
        %v634 = vand.u32 %v633, 127
        %vm635 = vcmp.lt.s32.totalorder %v634, 17
        %v636 = vsel %vm635, %v630, %v632
        %v637 = vsel %vm635, %v632, %v630
        %v638 = vld [vmem:[#allocation2] sm:$0xff]
        %v639 = vld [vmem:[#allocation2 + $0x8] sm:$0xff]
        %v640 = vmul.f32 %v637, %v638
        %v641 = vmul.f32 %v636, %v639
        %v642 = vadd.f32 %v640, 0.0
        %v643 = vadd.f32 %v641, 0.0
        %644 = vrot.lane.b32.xlu0 %v627, 16
        %v645 = vpop.permute.xlu0 %644
        %646 = vrot.lane.b32.xlu0 %v628, 16
        %v647 = vpop.permute.xlu0 %646
        %vm648 = vcmp.lt.s32.totalorder %v634, 16
        %v649 = vsel %vm648, %v645, %v647
        %v650 = vsel %vm648, %v647, %v645
        %s651 = scalar_lea.vmem [#allocation2], 16
        %v652 = vld [vmem:[%s651] sm:$0xff]
        %v653 = vld [vmem:[%s651 + $0x8] sm:$0xff]
        %v654 = vmul.f32 %v650, %v652
        %v655 = vmul.f32 %v649, %v653
        %v656 = vadd.f32 %v642, %v654
        %v657 = vadd.f32 %v643, %v655
        %658 = vrot.lane.b32.xlu0 %v627, 15
        %v659 = vpop.permute.xlu0 %658
        %660 = vrot.lane.b32.xlu0 %v628, 15
        %v661 = vpop.permute.xlu0 %660
        %vm662 = vcmp.lt.s32.totalorder %v634, 15
        %v663 = vsel %vm662, %v659, %v661
        %v664 = vsel %vm662, %v661, %v659
        %s665 = scalar_lea.vmem [#allocation2], 32
        %v666 = vld [vmem:[%s665] sm:$0xff]
        %v667 = vld [vmem:[%s665 + $0x8] sm:$0xff]
        %v668 = vmul.f32 %v664, %v666
        %v669 = vmul.f32 %v663, %v667
        %v670 = vadd.f32 %v656, %v668
        %v671 = vadd.f32 %v657, %v669
        %672 = vrot.lane.b32.xlu0 %v627, 1
        %v673 = vpop.permute.xlu0 %672
        %674 = vrot.lane.b32.xlu0 %v628, 1
        %v675 = vpop.permute.xlu0 %674
        %vm676 = vcmp.lt.s32.totalorder %v634, 1
        %v677 = vsel %vm676, %v673, %v675
        %v678 = vsel %vm676, %v675, %v673
        %s679 = scalar_lea.vmem [#allocation2], 48
        %v680 = vld [vmem:[%s679] sm:$0xff]
        %v681 = vld [vmem:[%s679 + $0x8] sm:$0xff]
        %v682 = vmul.f32 %v678, %v680
        %v683 = vmul.f32 %v677, %v681
        %v684 = vadd.f32 %v670, %v682
        %v685 = vadd.f32 %v671, %v683
        %s686 = scalar_lea.vmem [#allocation2], 64
        %v687 = vld [vmem:[%s686] sm:$0xff]
        %v688 = vld [vmem:[%s686 + $0x8] sm:$0xff]
        %v689 = vmul.f32 %v627, %v687
        %v690 = vmul.f32 %v628, %v688
        %v691 = vadd.f32 %v684, %v689
        %v692 = vadd.f32 %v685, %v690
        %693 = vrot.lane.b32.xlu0 %v627, 127
        %v694 = vpop.permute.xlu0 %693
        %695 = vrot.lane.b32.xlu0 %v628, 127
        %v696 = vpop.permute.xlu0 %695
        %vm697 = vcmp.lt.s32.totalorder %v634, 127
        %v698 = vsel %vm697, %v694, %v696
        %v699 = vsel %vm697, %v696, %v694
        %s700 = scalar_lea.vmem [#allocation2], 80
        %v701 = vld [vmem:[%s700] sm:$0xff]
        %v702 = vld [vmem:[%s700 + $0x8] sm:$0xff]
        %v703 = vmul.f32 %v698, %v701
        %v704 = vmul.f32 %v699, %v702
        %v705 = vadd.f32 %v691, %v703
        %v706 = vadd.f32 %v692, %v704
        %707 = vrot.lane.b32.xlu0 %v627, 113
        %v708 = vpop.permute.xlu0 %707
        %709 = vrot.lane.b32.xlu0 %v628, 113
        %v710 = vpop.permute.xlu0 %709
        %vm711 = vcmp.lt.s32.totalorder %v634, 113
        %v712 = vsel %vm711, %v708, %v710
        %v713 = vsel %vm711, %v710, %v708
        %s714 = scalar_lea.vmem [#allocation2], 96
        %v715 = vld [vmem:[%s714] sm:$0xff]
        %v716 = vld [vmem:[%s714 + $0x8] sm:$0xff]
        %v717 = vmul.f32 %v712, %v715
        %v718 = vmul.f32 %v713, %v716
        %v719 = vadd.f32 %v705, %v717
        %v720 = vadd.f32 %v706, %v718
        %721 = vrot.lane.b32.xlu0 %v627, 112
        %v722 = vpop.permute.xlu0 %721
        %723 = vrot.lane.b32.xlu0 %v628, 112
        %v724 = vpop.permute.xlu0 %723
        %vm725 = vcmp.lt.s32.totalorder %v634, 112
        %v726 = vsel %vm725, %v722, %v724
        %v727 = vsel %vm725, %v724, %v722
        %s728 = scalar_lea.vmem [#allocation2], 112
        %v729 = vld [vmem:[%s728] sm:$0xff]
        %v730 = vld [vmem:[%s728 + $0x8] sm:$0xff]
        %v731 = vmul.f32 %v726, %v729
        %v732 = vmul.f32 %v727, %v730
        %v733 = vadd.f32 %v719, %v731
        %v734 = vadd.f32 %v720, %v732
        %735 = vrot.lane.b32.xlu0 %v627, 111
        %v736 = vpop.permute.xlu0 %735
        %737 = vrot.lane.b32.xlu0 %v628, 111
        %v738 = vpop.permute.xlu0 %737
        %vm739 = vcmp.lt.s32.totalorder %v634, 111
        %v740 = vsel %vm739, %v736, %v738
        %v741 = vsel %vm739, %v738, %v736
        %s742 = scalar_lea.vmem [#allocation2], 128
        %v743 = vld [vmem:[%s742] sm:$0xff]
        %v744 = vld [vmem:[%s742 + $0x8] sm:$0xff]
        %v745 = vmul.f32 %v740, %v743
        %v746 = vmul.f32 %v741, %v744
        %v747 = vadd.f32 %v733, %v745
        %v748 = vadd.f32 %v734, %v746
        %v749 = vld [vmem:[%s6] sm:$0xff]
        %751 = vset.pattern.permute.xlu0 0
        %752 = vperm.xlu0 %751, %v749
        %v753 = vpop.permute.xlu0 %752
        %v755 = vadd.f32 %v747, %v753
        %v756 = vadd.f32 %v748, %v753
        %v757 = vld [vmem:[#allocation4] sm:$0xff]
        %v758 = vld [vmem:[%s8] sm:$0xff]
        %760 = vset.pattern.permute.xlu0 0
        %761 = vperm.xlu0 %760, %v758
        %v762 = vpop.permute.xlu0 %761
        %v765 = vsel %vm470, %v757, 0
        %767 = vmatprep.subr.mxu0 %v756
        %768 = vmatpush1.msra.mxu0 %v755
        %769 = vmatprep.subr.mxu0 0.0
        %770 = vmatpush1.msra.mxu0 0.0
        %771 = vmatprep.subr.mxu0 0.0
        %772 = vmatpush1.msra.mxu0 0.0
        %773 = vmatprep.subr.mxu0 0.0
        %774 = vmatpush1.msra.mxu0 0.0
        %775 = vmatprep.subr.mxu0 0.0
        %776 = vmatpush1.msra.mxu0 0.0
        %777 = vmatprep.subr.mxu0 0.0
        %778 = vmatpush1.msra.mxu0 0.0
        %779 = vmatprep.subr.mxu0 0.0
        %780 = vmatpush1.msra.mxu0 0.0
        %781 = vmatprep.subr.mxu0 0.0
        %782 = vmatpush1.msra.mxu0 0.0
        %783 = vmatprep.subr.mxu0 0.0
        %784 = vmatpush1.msra.mxu0 0.0
        %785 = vmatprep.subr.mxu0 0.0
        %786 = vmatpush1.msra.mxu0 0.0
        %787 = vmatprep.subr.mxu0 0.0
        %788 = vmatpush1.msra.mxu0 0.0
        %789 = vmatprep.subr.mxu0 0.0
        %790 = vmatpush1.msra.mxu0 0.0
        %791 = vmatprep.subr.mxu0 0.0
        %792 = vmatpush1.msra.mxu0 0.0
        %793 = vmatprep.subr.mxu0 0.0
        %794 = vmatpush1.msra.mxu0 0.0
        %795 = vmatprep.subr.mxu0 0.0
        %796 = vmatpush1.msra.mxu0 0.0
        %797 = vmatprep.subr.mxu0 0.0
        %798 = vmatpush1.msra.mxu0 0.0
        %799 = vmatprep.subr.mxu0 0.0
        %800 = vmatpush1.msra.mxu0 0.0
        %801 = vmatprep.subr.mxu0 0.0
        %802 = vmatpush1.msra.mxu0 0.0
        %803 = vmatprep.subr.mxu0 0.0
        %804 = vmatpush1.msra.mxu0 0.0
        %805 = vmatprep.subr.mxu0 0.0
        %806 = vmatpush1.msra.mxu0 0.0
        %807 = vmatprep.subr.mxu0 0.0
        %808 = vmatpush1.msra.mxu0 0.0
        %809 = vmatprep.subr.mxu0 0.0
        %810 = vmatpush1.msra.mxu0 0.0
        %811 = vmatprep.subr.mxu0 0.0
        %812 = vmatpush1.msra.mxu0 0.0
        %813 = vmatprep.subr.mxu0 0.0
        %814 = vmatpush1.msra.mxu0 0.0
        %815 = vmatprep.subr.mxu0 0.0
        %816 = vmatpush1.msra.mxu0 0.0
        %817 = vmatprep.subr.mxu0 0.0
        %818 = vmatpush1.msra.mxu0 0.0
        %819 = vmatprep.subr.mxu0 0.0
        %820 = vmatpush1.msra.mxu0 0.0
        %821 = vmatprep.subr.mxu0 0.0
        %822 = vmatpush1.msra.mxu0 0.0
        %823 = vmatprep.subr.mxu0 0.0
        %824 = vmatpush1.msra.mxu0 0.0
        %825 = vmatprep.subr.mxu0 0.0
        %826 = vmatpush1.msra.mxu0 0.0
        %827 = vmatprep.subr.mxu0 0.0
        %828 = vmatpush1.msra.mxu0 0.0
        %829 = vmatprep.subr.mxu0 0.0
        %830 = vmatpush1.msra.mxu0 0.0
        %831 = vmatprep.mubr.f32.mxu0 0.0
        %832 = vmatmul.mubr.f32.gmra.mrb[0].mxu0 %v765
        %v833 = vpop.f32.mrb[0].mxu0
        %v834 = vadd.f32 %v762, %v833
        %v835 = vpop.f32.mrb[0].mxu0
        %v836 = vadd.f32 %v762, %v835
        %837 = vdwg.mxu0
        %v838 = vmax.f32 %v834, 0.0
        %v839 = vmax.f32 %v836, 0.0
        %v840 = vsub.f32 %v464, %v466
        %v841 = vsub.f32 %v465, %v467
        %v842 = vand.u32 2147483647, %v840
        %v843 = vand.u32 2147483647, %v841
        %v844 = vadd.f32 %v464, %v466
        %v845 = vadd.f32 %v465, %v467
        %v846 = vmul.f32 %v464, %v466
        %v847 = vmul.f32 %v465, %v467
        %v848 = vrot.slane %v842, 4
        %v849 = vmax.f32 %v842, %v848
        %v850 = vrot.slane %v849, 2
        %v851 = vmax.f32 %v849, %v850
        %v852 = vrot.slane %v851, 1
        %v853 = vmax.f32 %v851, %v852
        %v854 = vrot.slane %v843, 4
        %v855 = vmax.f32 %v843, %v854
        %v856 = vrot.slane %v855, 2
        %v857 = vmax.f32 %v855, %v856
        %v858 = vrot.slane %v857, 1
        %v859 = vmax.f32 %v857, %v858
        %v860 = vmul.f32 %v853, 0.5
        %v861 = vmul.f32 %v859, 0.5
        %v862 = vrot.slane %v842, 4
        %v863 = vadd.f32 %v842, %v862
        %v864 = vrot.slane %v863, 2
        %v865 = vadd.f32 %v863, %v864
        %v866 = vrot.slane %v865, 1
        %v867 = vadd.f32 %v865, %v866
        %v868 = vrot.slane %v843, 4
        %v869 = vadd.f32 %v843, %v868
        %v870 = vrot.slane %v869, 2
        %v871 = vadd.f32 %v869, %v870
        %v872 = vrot.slane %v871, 1
        %v873 = vadd.f32 %v871, %v872
        %v874 = vrcp.pop 8.0
        %v875 = vmul.f32 %v867, %v874
        %v876 = vmul.f32 %v873, %v874
        %v877 = vmul.f32 %v875, 0.5
        %v878 = vmul.f32 %v876, 0.5
        %v879 = vadd.f32 %v860, %v877
        %v880 = vadd.f32 %v861, %v878
        %v881 = vrot.slane %v844, 4
        %v882 = vmax.f32 %v844, %v881
        %v883 = vrot.slane %v882, 2
        %v884 = vmax.f32 %v882, %v883
        %v885 = vrot.slane %v884, 1
        %v886 = vmax.f32 %v884, %v885
        %v887 = vrot.slane %v845, 4
        %v888 = vmax.f32 %v845, %v887
        %v889 = vrot.slane %v888, 2
        %v890 = vmax.f32 %v888, %v889
        %v891 = vrot.slane %v890, 1
        %v892 = vmax.f32 %v890, %v891
        %v893 = vmul.f32 %v886, 0.5
        %v894 = vmul.f32 %v892, 0.5
        %v895 = vrot.slane %v844, 4
        %v896 = vadd.f32 %v844, %v895
        %v897 = vrot.slane %v896, 2
        %v898 = vadd.f32 %v896, %v897
        %v899 = vrot.slane %v898, 1
        %v900 = vadd.f32 %v898, %v899
        %v901 = vrot.slane %v845, 4
        %v902 = vadd.f32 %v845, %v901
        %v903 = vrot.slane %v902, 2
        %v904 = vadd.f32 %v902, %v903
        %v905 = vrot.slane %v904, 1
        %v906 = vadd.f32 %v904, %v905
        %v907 = vmul.f32 %v900, %v874
        %v908 = vmul.f32 %v906, %v874
        %v909 = vmul.f32 %v907, 0.5
        %v910 = vmul.f32 %v908, 0.5
        %v911 = vadd.f32 %v893, %v909
        %v912 = vadd.f32 %v894, %v910
        %v913 = vrot.slane %v846, 4
        %v914 = vmax.f32 %v846, %v913
        %v915 = vrot.slane %v914, 2
        %v916 = vmax.f32 %v914, %v915
        %v917 = vrot.slane %v916, 1
        %v918 = vmax.f32 %v916, %v917
        %v919 = vrot.slane %v847, 4
        %v920 = vmax.f32 %v847, %v919
        %v921 = vrot.slane %v920, 2
        %v922 = vmax.f32 %v920, %v921
        %v923 = vrot.slane %v922, 1
        %v924 = vmax.f32 %v922, %v923
        %v925 = vmul.f32 %v918, 0.5
        %v926 = vmul.f32 %v924, 0.5
        %v927 = vrot.slane %v846, 4
        %v928 = vadd.f32 %v846, %v927
        %v929 = vrot.slane %v928, 2
        %v930 = vadd.f32 %v928, %v929
        %v931 = vrot.slane %v930, 1
        %v932 = vadd.f32 %v930, %v931
        %v933 = vrot.slane %v847, 4
        %v934 = vadd.f32 %v847, %v933
        %v935 = vrot.slane %v934, 2
        %v936 = vadd.f32 %v934, %v935
        %v937 = vrot.slane %v936, 1
        %v938 = vadd.f32 %v936, %v937
        %v939 = vmul.f32 %v932, %v874
        %v940 = vmul.f32 %v938, %v874
        %v941 = vmul.f32 %v939, 0.5
        %v942 = vmul.f32 %v940, 0.5
        %v943 = vadd.f32 %v925, %v941
        %v944 = vadd.f32 %v926, %v942
        %vm945 = vcmask 1040384
        %v946 = vsel %vm945, %v879, %v911
        %v947 = vsel %vm945, %v880, %v912
        %vm948 = vcmask 1041408
        %v949 = vsel %vm948, %v946, %v943
        %v950 = vsel %vm948, %v947, %v944
        %vm951 = vcmask 1042432
        %v952 = vsel %vm951, %v949, 0.0
        %v953 = vsel %vm951, %v950, 0.0
        %954 = vrot.lane.b32.xlu0 %v952, 51
        %v955 = vpop.permute.xlu0 %954
        %956 = vrot.lane.b32.xlu0 %v953, 51
        %v957 = vpop.permute.xlu0 %956
        %vm958 = vcmp.lt.s32.totalorder %v634, 51
        %v959 = vsel %vm958, %v955, %v957
        %v960 = vsel %vm958, %v957, %v955
        %v961 = vld [vmem:[%s9] sm:$0xff]
        %v962 = vld [vmem:[%s9 + $0x8] sm:$0xff]
        %v963 = vmul.f32 %v960, %v961
        %v964 = vmul.f32 %v959, %v962
        %v965 = vadd.f32 %v963, 0.0
        %v966 = vadd.f32 %v964, 0.0
        %967 = vrot.lane.b32.xlu0 %v952, 50
        %v968 = vpop.permute.xlu0 %967
        %969 = vrot.lane.b32.xlu0 %v953, 50
        %v970 = vpop.permute.xlu0 %969
        %vm971 = vcmp.lt.s32.totalorder %v634, 50
        %v972 = vsel %vm971, %v968, %v970
        %v973 = vsel %vm971, %v970, %v968
        %s974 = scalar_lea.vmem %s9, 16
        %v975 = vld [vmem:[%s974] sm:$0xff]
        %v976 = vld [vmem:[%s974 + $0x8] sm:$0xff]
        %v977 = vmul.f32 %v973, %v975
        %v978 = vmul.f32 %v972, %v976
        %v979 = vadd.f32 %v965, %v977
        %v980 = vadd.f32 %v966, %v978
        %981 = vrot.lane.b32.xlu0 %v952, 49
        %v982 = vpop.permute.xlu0 %981
        %983 = vrot.lane.b32.xlu0 %v953, 49
        %v984 = vpop.permute.xlu0 %983
        %vm985 = vcmp.lt.s32.totalorder %v634, 49
        %v986 = vsel %vm985, %v982, %v984
        %v987 = vsel %vm985, %v984, %v982
        %s988 = scalar_lea.vmem %s9, 32
        %v989 = vld [vmem:[%s988] sm:$0xff]
        %v990 = vld [vmem:[%s988 + $0x8] sm:$0xff]
        %v991 = vmul.f32 %v987, %v989
        %v992 = vmul.f32 %v986, %v990
        %v993 = vadd.f32 %v979, %v991
        %v994 = vadd.f32 %v980, %v992
        %995 = vrot.lane.b32.xlu0 %v952, 48
        %v996 = vpop.permute.xlu0 %995
        %997 = vrot.lane.b32.xlu0 %v953, 48
        %v998 = vpop.permute.xlu0 %997
        %vm999 = vcmp.lt.s32.totalorder %v634, 48
        %v1000 = vsel %vm999, %v996, %v998
        %v1001 = vsel %vm999, %v998, %v996
        %s1002 = scalar_lea.vmem %s9, 48
        %v1003 = vld [vmem:[%s1002] sm:$0xff]
        %v1004 = vld [vmem:[%s1002 + $0x8] sm:$0xff]
        %v1005 = vmul.f32 %v1001, %v1003
        %v1006 = vmul.f32 %v1000, %v1004
        %v1007 = vadd.f32 %v993, %v1005
        %v1008 = vadd.f32 %v994, %v1006
        %1009 = vrot.lane.b32.xlu0 %v952, 47
        %v1010 = vpop.permute.xlu0 %1009
        %1011 = vrot.lane.b32.xlu0 %v953, 47
        %v1012 = vpop.permute.xlu0 %1011
        %vm1013 = vcmp.lt.s32.totalorder %v634, 47
        %v1014 = vsel %vm1013, %v1010, %v1012
        %v1015 = vsel %vm1013, %v1012, %v1010
        %s1016 = scalar_lea.vmem %s9, 64
        %v1017 = vld [vmem:[%s1016] sm:$0xff]
        %v1018 = vld [vmem:[%s1016 + $0x8] sm:$0xff]
        %v1019 = vmul.f32 %v1015, %v1017
        %v1020 = vmul.f32 %v1014, %v1018
        %v1021 = vadd.f32 %v1007, %v1019
        %v1022 = vadd.f32 %v1008, %v1020
        %1023 = vrot.lane.b32.xlu0 %v952, 46
        %v1024 = vpop.permute.xlu0 %1023
        %1025 = vrot.lane.b32.xlu0 %v953, 46
        %v1026 = vpop.permute.xlu0 %1025
        %vm1027 = vcmp.lt.s32.totalorder %v634, 46
        %v1028 = vsel %vm1027, %v1024, %v1026
        %v1029 = vsel %vm1027, %v1026, %v1024
        %s1030 = scalar_lea.vmem %s9, 80
        %v1031 = vld [vmem:[%s1030] sm:$0xff]
        %v1032 = vld [vmem:[%s1030 + $0x8] sm:$0xff]
        %v1033 = vmul.f32 %v1029, %v1031
        %v1034 = vmul.f32 %v1028, %v1032
        %v1035 = vadd.f32 %v1021, %v1033
        %v1036 = vadd.f32 %v1022, %v1034
        %1037 = vrot.lane.b32.xlu0 %v952, 45
        %v1038 = vpop.permute.xlu0 %1037
        %1039 = vrot.lane.b32.xlu0 %v953, 45
        %v1040 = vpop.permute.xlu0 %1039
        %vm1041 = vcmp.lt.s32.totalorder %v634, 45
        %v1042 = vsel %vm1041, %v1038, %v1040
        %v1043 = vsel %vm1041, %v1040, %v1038
        %s1044 = scalar_lea.vmem %s9, 96
        %v1045 = vld [vmem:[%s1044] sm:$0xff]
        %v1046 = vld [vmem:[%s1044 + $0x8] sm:$0xff]
        %v1047 = vmul.f32 %v1043, %v1045
        %v1048 = vmul.f32 %v1042, %v1046
        %v1049 = vadd.f32 %v1035, %v1047
        %v1050 = vadd.f32 %v1036, %v1048
        %1051 = vrot.lane.b32.xlu0 %v952, 35
        %v1052 = vpop.permute.xlu0 %1051
        %1053 = vrot.lane.b32.xlu0 %v953, 35
        %v1054 = vpop.permute.xlu0 %1053
        %vm1055 = vcmp.lt.s32.totalorder %v634, 35
        %v1056 = vsel %vm1055, %v1052, %v1054
        %v1057 = vsel %vm1055, %v1054, %v1052
        %s1058 = scalar_lea.vmem %s9, 112
        %v1059 = vld [vmem:[%s1058] sm:$0xff]
        %v1060 = vld [vmem:[%s1058 + $0x8] sm:$0xff]
        %v1061 = vmul.f32 %v1057, %v1059
        %v1062 = vmul.f32 %v1056, %v1060
        %v1063 = vadd.f32 %v1049, %v1061
        %v1064 = vadd.f32 %v1050, %v1062
        %1065 = vrot.lane.b32.xlu0 %v952, 34
        %v1066 = vpop.permute.xlu0 %1065
        %1067 = vrot.lane.b32.xlu0 %v953, 34
        %v1068 = vpop.permute.xlu0 %1067
        %vm1069 = vcmp.lt.s32.totalorder %v634, 34
        %v1070 = vsel %vm1069, %v1066, %v1068
        %v1071 = vsel %vm1069, %v1068, %v1066
        %s1072 = scalar_lea.vmem %s9, 128
        %v1073 = vld [vmem:[%s1072] sm:$0xff]
        %v1074 = vld [vmem:[%s1072 + $0x8] sm:$0xff]
        %v1075 = vmul.f32 %v1071, %v1073
        %v1076 = vmul.f32 %v1070, %v1074
        %v1077 = vadd.f32 %v1063, %v1075
        %v1078 = vadd.f32 %v1064, %v1076
        %1079 = vrot.lane.b32.xlu0 %v952, 33
        %v1080 = vpop.permute.xlu0 %1079
        %1081 = vrot.lane.b32.xlu0 %v953, 33
        %v1082 = vpop.permute.xlu0 %1081
        %vm1083 = vcmp.lt.s32.totalorder %v634, 33
        %v1084 = vsel %vm1083, %v1080, %v1082
        %v1085 = vsel %vm1083, %v1082, %v1080
        %s1086 = scalar_lea.vmem %s9, 144
        %v1087 = vld [vmem:[%s1086] sm:$0xff]
        %v1088 = vld [vmem:[%s1086 + $0x8] sm:$0xff]
        %v1089 = vmul.f32 %v1085, %v1087
        %v1090 = vmul.f32 %v1084, %v1088
        %v1091 = vadd.f32 %v1077, %v1089
        %v1092 = vadd.f32 %v1078, %v1090
        %1093 = vrot.lane.b32.xlu0 %v952, 32
        %v1094 = vpop.permute.xlu0 %1093
        %1095 = vrot.lane.b32.xlu0 %v953, 32
        %v1096 = vpop.permute.xlu0 %1095
        %vm1097 = vcmp.lt.s32.totalorder %v634, 32
        %v1098 = vsel %vm1097, %v1094, %v1096
        %v1099 = vsel %vm1097, %v1096, %v1094
        %s1100 = scalar_lea.vmem %s9, 160
        %v1101 = vld [vmem:[%s1100] sm:$0xff]
        %v1102 = vld [vmem:[%s1100 + $0x8] sm:$0xff]
        %v1103 = vmul.f32 %v1099, %v1101
        %v1104 = vmul.f32 %v1098, %v1102
        %v1105 = vadd.f32 %v1091, %v1103
        %v1106 = vadd.f32 %v1092, %v1104
        %1107 = vrot.lane.b32.xlu0 %v952, 31
        %v1108 = vpop.permute.xlu0 %1107
        %1109 = vrot.lane.b32.xlu0 %v953, 31
        %v1110 = vpop.permute.xlu0 %1109
        %vm1111 = vcmp.lt.s32.totalorder %v634, 31
        %v1112 = vsel %vm1111, %v1108, %v1110
        %v1113 = vsel %vm1111, %v1110, %v1108
        %s1114 = scalar_lea.vmem %s9, 176
        %v1115 = vld [vmem:[%s1114] sm:$0xff]
        %v1116 = vld [vmem:[%s1114 + $0x8] sm:$0xff]
        %v1117 = vmul.f32 %v1113, %v1115
        %v1118 = vmul.f32 %v1112, %v1116
        %v1119 = vadd.f32 %v1105, %v1117
        %v1120 = vadd.f32 %v1106, %v1118
        %1121 = vrot.lane.b32.xlu0 %v952, 30
        %v1122 = vpop.permute.xlu0 %1121
        %1123 = vrot.lane.b32.xlu0 %v953, 30
        %v1124 = vpop.permute.xlu0 %1123
        %vm1125 = vcmp.lt.s32.totalorder %v634, 30
        %v1126 = vsel %vm1125, %v1122, %v1124
        %v1127 = vsel %vm1125, %v1124, %v1122
        %s1128 = scalar_lea.vmem %s9, 192
        %v1129 = vld [vmem:[%s1128] sm:$0xff]
        %v1130 = vld [vmem:[%s1128 + $0x8] sm:$0xff]
        %v1131 = vmul.f32 %v1127, %v1129
        %v1132 = vmul.f32 %v1126, %v1130
        %v1133 = vadd.f32 %v1119, %v1131
        %v1134 = vadd.f32 %v1120, %v1132
        %1135 = vrot.lane.b32.xlu0 %v952, 29
        %v1136 = vpop.permute.xlu0 %1135
        %1137 = vrot.lane.b32.xlu0 %v953, 29
        %v1138 = vpop.permute.xlu0 %1137
        %vm1139 = vcmp.lt.s32.totalorder %v634, 29
        %v1140 = vsel %vm1139, %v1136, %v1138
        %v1141 = vsel %vm1139, %v1138, %v1136
        %s1142 = scalar_lea.vmem %s9, 208
        %v1143 = vld [vmem:[%s1142] sm:$0xff]
        %v1144 = vld [vmem:[%s1142 + $0x8] sm:$0xff]
        %v1145 = vmul.f32 %v1141, %v1143
        %v1146 = vmul.f32 %v1140, %v1144
        %v1147 = vadd.f32 %v1133, %v1145
        %v1148 = vadd.f32 %v1134, %v1146
        %1149 = vrot.lane.b32.xlu0 %v952, 19
        %v1150 = vpop.permute.xlu0 %1149
        %1151 = vrot.lane.b32.xlu0 %v953, 19
        %v1152 = vpop.permute.xlu0 %1151
        %vm1153 = vcmp.lt.s32.totalorder %v634, 19
        %v1154 = vsel %vm1153, %v1150, %v1152
        %v1155 = vsel %vm1153, %v1152, %v1150
        %s1156 = scalar_lea.vmem %s9, 224
        %v1157 = vld [vmem:[%s1156] sm:$0xff]
        %v1158 = vld [vmem:[%s1156 + $0x8] sm:$0xff]
        %v1159 = vmul.f32 %v1155, %v1157
        %v1160 = vmul.f32 %v1154, %v1158
        %v1161 = vadd.f32 %v1147, %v1159
        %v1162 = vadd.f32 %v1148, %v1160
        %1163 = vrot.lane.b32.xlu0 %v952, 18
        %v1164 = vpop.permute.xlu0 %1163
        %1165 = vrot.lane.b32.xlu0 %v953, 18
        %v1166 = vpop.permute.xlu0 %1165
        %vm1167 = vcmp.lt.s32.totalorder %v634, 18
        %v1168 = vsel %vm1167, %v1164, %v1166
        %v1169 = vsel %vm1167, %v1166, %v1164
        %s1170 = scalar_lea.vmem %s9, 240
        %v1171 = vld [vmem:[%s1170] sm:$0xff]
        %v1172 = vld [vmem:[%s1170 + $0x8] sm:$0xff]
        %v1173 = vmul.f32 %v1169, %v1171
        %v1174 = vmul.f32 %v1168, %v1172
        %v1175 = vadd.f32 %v1161, %v1173
        %v1176 = vadd.f32 %v1162, %v1174
        %1177 = vrot.lane.b32.xlu0 %v952, 17
        %v1178 = vpop.permute.xlu0 %1177
        %1179 = vrot.lane.b32.xlu0 %v953, 17
        %v1180 = vpop.permute.xlu0 %1179
        %v1181 = vsel %vm635, %v1178, %v1180
        %v1182 = vsel %vm635, %v1180, %v1178
        %s1183 = scalar_lea.vmem %s9, 256
        %v1184 = vld [vmem:[%s1183] sm:$0xff]
        %v1185 = vld [vmem:[%s1183 + $0x8] sm:$0xff]
        %v1186 = vmul.f32 %v1182, %v1184
        %v1187 = vmul.f32 %v1181, %v1185
        %v1188 = vadd.f32 %v1175, %v1186
        %v1189 = vadd.f32 %v1176, %v1187
        %1190 = vrot.lane.b32.xlu0 %v952, 16
        %v1191 = vpop.permute.xlu0 %1190
        %1192 = vrot.lane.b32.xlu0 %v953, 16
        %v1193 = vpop.permute.xlu0 %1192
        %v1194 = vsel %vm648, %v1191, %v1193
        %v1195 = vsel %vm648, %v1193, %v1191
        %s1196 = scalar_lea.vmem %s9, 272
        %v1197 = vld [vmem:[%s1196] sm:$0xff]
        %v1198 = vld [vmem:[%s1196 + $0x8] sm:$0xff]
        %v1199 = vmul.f32 %v1195, %v1197
        %v1200 = vmul.f32 %v1194, %v1198
        %v1201 = vadd.f32 %v1188, %v1199
        %v1202 = vadd.f32 %v1189, %v1200
        %1203 = vrot.lane.b32.xlu0 %v952, 15
        %v1204 = vpop.permute.xlu0 %1203
        %1205 = vrot.lane.b32.xlu0 %v953, 15
        %v1206 = vpop.permute.xlu0 %1205
        %v1207 = vsel %vm662, %v1204, %v1206
        %v1208 = vsel %vm662, %v1206, %v1204
        %s1209 = scalar_lea.vmem %s9, 288
        %v1210 = vld [vmem:[%s1209] sm:$0xff]
        %v1211 = vld [vmem:[%s1209 + $0x8] sm:$0xff]
        %v1212 = vmul.f32 %v1208, %v1210
        %v1213 = vmul.f32 %v1207, %v1211
        %v1214 = vadd.f32 %v1201, %v1212
        %v1215 = vadd.f32 %v1202, %v1213
        %1216 = vrot.lane.b32.xlu0 %v952, 14
        %v1217 = vpop.permute.xlu0 %1216
        %1218 = vrot.lane.b32.xlu0 %v953, 14
        %v1219 = vpop.permute.xlu0 %1218
        %vm1220 = vcmp.lt.s32.totalorder %v634, 14
        %v1221 = vsel %vm1220, %v1217, %v1219
        %v1222 = vsel %vm1220, %v1219, %v1217
        %s1223 = scalar_lea.vmem %s9, 304
        %v1224 = vld [vmem:[%s1223] sm:$0xff]
        %v1225 = vld [vmem:[%s1223 + $0x8] sm:$0xff]
        %v1226 = vmul.f32 %v1222, %v1224
        %v1227 = vmul.f32 %v1221, %v1225
        %v1228 = vadd.f32 %v1214, %v1226
        %v1229 = vadd.f32 %v1215, %v1227
        %1230 = vrot.lane.b32.xlu0 %v952, 13
        %v1231 = vpop.permute.xlu0 %1230
        %1232 = vrot.lane.b32.xlu0 %v953, 13
        %v1233 = vpop.permute.xlu0 %1232
        %vm1234 = vcmp.lt.s32.totalorder %v634, 13
        %v1235 = vsel %vm1234, %v1231, %v1233
        %v1236 = vsel %vm1234, %v1233, %v1231
        %s1237 = scalar_lea.vmem %s9, 320
        %v1238 = vld [vmem:[%s1237] sm:$0xff]
        %v1239 = vld [vmem:[%s1237 + $0x8] sm:$0xff]
        %v1240 = vmul.f32 %v1236, %v1238
        %v1241 = vmul.f32 %v1235, %v1239
        %v1242 = vadd.f32 %v1228, %v1240
        %v1243 = vadd.f32 %v1229, %v1241
        %1244 = vrot.lane.b32.xlu0 %v952, 3
        %v1245 = vpop.permute.xlu0 %1244
        %1246 = vrot.lane.b32.xlu0 %v953, 3
        %v1247 = vpop.permute.xlu0 %1246
        %vm1248 = vcmp.lt.s32.totalorder %v634, 3
        %v1249 = vsel %vm1248, %v1245, %v1247
        %v1250 = vsel %vm1248, %v1247, %v1245
        %s1251 = scalar_lea.vmem %s9, 336
        %v1252 = vld [vmem:[%s1251] sm:$0xff]
        %v1253 = vld [vmem:[%s1251 + $0x8] sm:$0xff]
        %v1254 = vmul.f32 %v1250, %v1252
        %v1255 = vmul.f32 %v1249, %v1253
        %v1256 = vadd.f32 %v1242, %v1254
        %v1257 = vadd.f32 %v1243, %v1255
        %1258 = vrot.lane.b32.xlu0 %v952, 2
        %v1259 = vpop.permute.xlu0 %1258
        %1260 = vrot.lane.b32.xlu0 %v953, 2
        %v1261 = vpop.permute.xlu0 %1260
        %vm1262 = vcmp.lt.s32.totalorder %v634, 2
        %v1263 = vsel %vm1262, %v1259, %v1261
        %v1264 = vsel %vm1262, %v1261, %v1259
        %s1265 = scalar_lea.vmem %s9, 352
        %v1266 = vld [vmem:[%s1265] sm:$0xff]
        %v1267 = vld [vmem:[%s1265 + $0x8] sm:$0xff]
        %v1268 = vmul.f32 %v1264, %v1266
        %v1269 = vmul.f32 %v1263, %v1267
        %v1270 = vadd.f32 %v1256, %v1268
        %v1271 = vadd.f32 %v1257, %v1269
        %1272 = vrot.lane.b32.xlu0 %v952, 1
        %v1273 = vpop.permute.xlu0 %1272
        %1274 = vrot.lane.b32.xlu0 %v953, 1
        %v1275 = vpop.permute.xlu0 %1274
        %v1276 = vsel %vm676, %v1273, %v1275
        %v1277 = vsel %vm676, %v1275, %v1273
        %s1278 = scalar_lea.vmem %s9, 368
        %v1279 = vld [vmem:[%s1278] sm:$0xff]
        %v1280 = vld [vmem:[%s1278 + $0x8] sm:$0xff]
        %v1281 = vmul.f32 %v1277, %v1279
        %v1282 = vmul.f32 %v1276, %v1280
        %v1283 = vadd.f32 %v1270, %v1281
        %v1284 = vadd.f32 %v1271, %v1282
        %s1285 = scalar_lea.vmem %s9, 384
        %v1286 = vld [vmem:[%s1285] sm:$0xff]
        %v1287 = vld [vmem:[%s1285 + $0x8] sm:$0xff]
        %v1288 = vmul.f32 %v952, %v1286
        %v1289 = vmul.f32 %v953, %v1287
        %v1290 = vadd.f32 %v1283, %v1288
        %v1291 = vadd.f32 %v1284, %v1289
        %1292 = vrot.lane.b32.xlu0 %v952, 127
        %v1293 = vpop.permute.xlu0 %1292
        %1294 = vrot.lane.b32.xlu0 %v953, 127
        %v1295 = vpop.permute.xlu0 %1294
        %v1296 = vsel %vm697, %v1293, %v1295
        %v1297 = vsel %vm697, %v1295, %v1293
        %s1298 = scalar_lea.vmem %s9, 400
        %v1299 = vld [vmem:[%s1298] sm:$0xff]
        %v1300 = vld [vmem:[%s1298 + $0x8] sm:$0xff]
        %v1301 = vmul.f32 %v1296, %v1299
        %v1302 = vmul.f32 %v1297, %v1300
        %v1303 = vadd.f32 %v1290, %v1301
        %v1304 = vadd.f32 %v1291, %v1302
        %1305 = vrot.lane.b32.xlu0 %v952, 126
        %v1306 = vpop.permute.xlu0 %1305
        %1307 = vrot.lane.b32.xlu0 %v953, 126
        %v1308 = vpop.permute.xlu0 %1307
        %vm1309 = vcmp.lt.s32.totalorder %v634, 126
        %v1310 = vsel %vm1309, %v1306, %v1308
        %v1311 = vsel %vm1309, %v1308, %v1306
        %s1312 = scalar_lea.vmem %s9, 416
        %v1313 = vld [vmem:[%s1312] sm:$0xff]
        %v1314 = vld [vmem:[%s1312 + $0x8] sm:$0xff]
        %v1315 = vmul.f32 %v1310, %v1313
        %v1316 = vmul.f32 %v1311, %v1314
        %v1317 = vadd.f32 %v1303, %v1315
        %v1318 = vadd.f32 %v1304, %v1316
        %1319 = vrot.lane.b32.xlu0 %v952, 125
        %v1320 = vpop.permute.xlu0 %1319
        %1321 = vrot.lane.b32.xlu0 %v953, 125
        %v1322 = vpop.permute.xlu0 %1321
        %vm1323 = vcmp.lt.s32.totalorder %v634, 125
        %v1324 = vsel %vm1323, %v1320, %v1322
        %v1325 = vsel %vm1323, %v1322, %v1320
        %s1326 = scalar_lea.vmem %s9, 432
        %v1327 = vld [vmem:[%s1326] sm:$0xff]
        %v1328 = vld [vmem:[%s1326 + $0x8] sm:$0xff]
        %v1329 = vmul.f32 %v1324, %v1327
        %v1330 = vmul.f32 %v1325, %v1328
        %v1331 = vadd.f32 %v1317, %v1329
        %v1332 = vadd.f32 %v1318, %v1330
        %1333 = vrot.lane.b32.xlu0 %v952, 115
        %v1334 = vpop.permute.xlu0 %1333
        %1335 = vrot.lane.b32.xlu0 %v953, 115
        %v1336 = vpop.permute.xlu0 %1335
        %vm1337 = vcmp.lt.s32.totalorder %v634, 115
        %v1338 = vsel %vm1337, %v1334, %v1336
        %v1339 = vsel %vm1337, %v1336, %v1334
        %s1340 = scalar_lea.vmem %s9, 448
        %v1341 = vld [vmem:[%s1340] sm:$0xff]
        %v1342 = vld [vmem:[%s1340 + $0x8] sm:$0xff]
        %v1343 = vmul.f32 %v1338, %v1341
        %v1344 = vmul.f32 %v1339, %v1342
        %v1345 = vadd.f32 %v1331, %v1343
        %v1346 = vadd.f32 %v1332, %v1344
        %1347 = vrot.lane.b32.xlu0 %v952, 114
        %v1348 = vpop.permute.xlu0 %1347
        %1349 = vrot.lane.b32.xlu0 %v953, 114
        %v1350 = vpop.permute.xlu0 %1349
        %vm1351 = vcmp.lt.s32.totalorder %v634, 114
        %v1352 = vsel %vm1351, %v1348, %v1350
        %v1353 = vsel %vm1351, %v1350, %v1348
        %s1354 = scalar_lea.vmem %s9, 464
        %v1355 = vld [vmem:[%s1354] sm:$0xff]
        %v1356 = vld [vmem:[%s1354 + $0x8] sm:$0xff]
        %v1357 = vmul.f32 %v1352, %v1355
        %v1358 = vmul.f32 %v1353, %v1356
        %v1359 = vadd.f32 %v1345, %v1357
        %v1360 = vadd.f32 %v1346, %v1358
        %1361 = vrot.lane.b32.xlu0 %v952, 113
        %v1362 = vpop.permute.xlu0 %1361
        %1363 = vrot.lane.b32.xlu0 %v953, 113
        %v1364 = vpop.permute.xlu0 %1363
        %v1365 = vsel %vm711, %v1362, %v1364
        %v1366 = vsel %vm711, %v1364, %v1362
        %s1367 = scalar_lea.vmem %s9, 480
        %v1368 = vld [vmem:[%s1367] sm:$0xff]
        %v1369 = vld [vmem:[%s1367 + $0x8] sm:$0xff]
        %v1370 = vmul.f32 %v1365, %v1368
        %v1371 = vmul.f32 %v1366, %v1369
        %v1372 = vadd.f32 %v1359, %v1370
        %v1373 = vadd.f32 %v1360, %v1371
        %1374 = vrot.lane.b32.xlu0 %v952, 112
        %v1375 = vpop.permute.xlu0 %1374
        %1376 = vrot.lane.b32.xlu0 %v953, 112
        %v1377 = vpop.permute.xlu0 %1376
        %v1378 = vsel %vm725, %v1375, %v1377
        %v1379 = vsel %vm725, %v1377, %v1375
        %s1380 = scalar_lea.vmem %s9, 496
        %v1381 = vld [vmem:[%s1380] sm:$0xff]
        %v1382 = vld [vmem:[%s1380 + $0x8] sm:$0xff]
        %v1383 = vmul.f32 %v1378, %v1381
        %v1384 = vmul.f32 %v1379, %v1382
        %v1385 = vadd.f32 %v1372, %v1383
        %v1386 = vadd.f32 %v1373, %v1384
        %1387 = vrot.lane.b32.xlu0 %v952, 111
        %v1388 = vpop.permute.xlu0 %1387
        %1389 = vrot.lane.b32.xlu0 %v953, 111
        %v1390 = vpop.permute.xlu0 %1389
        %v1391 = vsel %vm739, %v1388, %v1390
        %v1392 = vsel %vm739, %v1390, %v1388
        %s1393 = scalar_lea.vmem %s9, 512
        %v1394 = vld [vmem:[%s1393] sm:$0xff]
        %v1395 = vld [vmem:[%s1393 + $0x8] sm:$0xff]
        %v1396 = vmul.f32 %v1391, %v1394
        %v1397 = vmul.f32 %v1392, %v1395
        %v1398 = vadd.f32 %v1385, %v1396
        %v1399 = vadd.f32 %v1386, %v1397
        %1400 = vrot.lane.b32.xlu0 %v952, 110
        %v1401 = vpop.permute.xlu0 %1400
        %1402 = vrot.lane.b32.xlu0 %v953, 110
        %v1403 = vpop.permute.xlu0 %1402
        %vm1404 = vcmp.lt.s32.totalorder %v634, 110
        %v1405 = vsel %vm1404, %v1401, %v1403
        %v1406 = vsel %vm1404, %v1403, %v1401
        %s1407 = scalar_lea.vmem %s9, 528
        %v1408 = vld [vmem:[%s1407] sm:$0xff]
        %v1409 = vld [vmem:[%s1407 + $0x8] sm:$0xff]
        %v1410 = vmul.f32 %v1405, %v1408
        %v1411 = vmul.f32 %v1406, %v1409
        %v1412 = vadd.f32 %v1398, %v1410
        %v1413 = vadd.f32 %v1399, %v1411
        %1414 = vrot.lane.b32.xlu0 %v952, 109
        %v1415 = vpop.permute.xlu0 %1414
        %1416 = vrot.lane.b32.xlu0 %v953, 109
        %v1417 = vpop.permute.xlu0 %1416
        %vm1418 = vcmp.lt.s32.totalorder %v634, 109
        %v1419 = vsel %vm1418, %v1415, %v1417
        %v1420 = vsel %vm1418, %v1417, %v1415
        %s1421 = scalar_lea.vmem %s9, 544
        %v1422 = vld [vmem:[%s1421] sm:$0xff]
        %v1423 = vld [vmem:[%s1421 + $0x8] sm:$0xff]
        %v1424 = vmul.f32 %v1419, %v1422
        %v1425 = vmul.f32 %v1420, %v1423
        %v1426 = vadd.f32 %v1412, %v1424
        %v1427 = vadd.f32 %v1413, %v1425
        %1428 = vrot.lane.b32.xlu0 %v952, 99
        %v1429 = vpop.permute.xlu0 %1428
        %1430 = vrot.lane.b32.xlu0 %v953, 99
        %v1431 = vpop.permute.xlu0 %1430
        %vm1432 = vcmp.lt.s32.totalorder %v634, 99
        %v1433 = vsel %vm1432, %v1429, %v1431
        %v1434 = vsel %vm1432, %v1431, %v1429
        %s1435 = scalar_lea.vmem %s9, 560
        %v1436 = vld [vmem:[%s1435] sm:$0xff]
        %v1437 = vld [vmem:[%s1435 + $0x8] sm:$0xff]
        %v1438 = vmul.f32 %v1433, %v1436
        %v1439 = vmul.f32 %v1434, %v1437
        %v1440 = vadd.f32 %v1426, %v1438
        %v1441 = vadd.f32 %v1427, %v1439
        %1442 = vrot.lane.b32.xlu0 %v952, 98
        %v1443 = vpop.permute.xlu0 %1442
        %1444 = vrot.lane.b32.xlu0 %v953, 98
        %v1445 = vpop.permute.xlu0 %1444
        %vm1446 = vcmp.lt.s32.totalorder %v634, 98
        %v1447 = vsel %vm1446, %v1443, %v1445
        %v1448 = vsel %vm1446, %v1445, %v1443
        %s1449 = scalar_lea.vmem %s9, 576
        %v1450 = vld [vmem:[%s1449] sm:$0xff]
        %v1451 = vld [vmem:[%s1449 + $0x8] sm:$0xff]
        %v1452 = vmul.f32 %v1447, %v1450
        %v1453 = vmul.f32 %v1448, %v1451
        %v1454 = vadd.f32 %v1440, %v1452
        %v1455 = vadd.f32 %v1441, %v1453
        %1456 = vrot.lane.b32.xlu0 %v952, 97
        %v1457 = vpop.permute.xlu0 %1456
        %1458 = vrot.lane.b32.xlu0 %v953, 97
        %v1459 = vpop.permute.xlu0 %1458
        %vm1460 = vcmp.lt.s32.totalorder %v634, 97
        %v1461 = vsel %vm1460, %v1457, %v1459
        %v1462 = vsel %vm1460, %v1459, %v1457
        %s1463 = scalar_lea.vmem %s9, 592
        %v1464 = vld [vmem:[%s1463] sm:$0xff]
        %v1465 = vld [vmem:[%s1463 + $0x8] sm:$0xff]
        %v1466 = vmul.f32 %v1461, %v1464
        %v1467 = vmul.f32 %v1462, %v1465
        %v1468 = vadd.f32 %v1454, %v1466
        %v1469 = vadd.f32 %v1455, %v1467
        %1470 = vrot.lane.b32.xlu0 %v952, 96
        %v1471 = vpop.permute.xlu0 %1470
        %1472 = vrot.lane.b32.xlu0 %v953, 96
        %v1473 = vpop.permute.xlu0 %1472
        %vm1474 = vcmp.lt.s32.totalorder %v634, 96
        %v1475 = vsel %vm1474, %v1471, %v1473
        %v1476 = vsel %vm1474, %v1473, %v1471
        %s1477 = scalar_lea.vmem %s9, 608
        %v1478 = vld [vmem:[%s1477] sm:$0xff]
        %v1479 = vld [vmem:[%s1477 + $0x8] sm:$0xff]
        %v1480 = vmul.f32 %v1475, %v1478
        %v1481 = vmul.f32 %v1476, %v1479
        %v1482 = vadd.f32 %v1468, %v1480
        %v1483 = vadd.f32 %v1469, %v1481
        %1484 = vrot.lane.b32.xlu0 %v952, 95
        %v1485 = vpop.permute.xlu0 %1484
        %1486 = vrot.lane.b32.xlu0 %v953, 95
        %v1487 = vpop.permute.xlu0 %1486
        %vm1488 = vcmp.lt.s32.totalorder %v634, 95
        %v1489 = vsel %vm1488, %v1485, %v1487
        %v1490 = vsel %vm1488, %v1487, %v1485
        %s1491 = scalar_lea.vmem %s9, 624
        %v1492 = vld [vmem:[%s1491] sm:$0xff]
        %v1493 = vld [vmem:[%s1491 + $0x8] sm:$0xff]
        %v1494 = vmul.f32 %v1489, %v1492
        %v1495 = vmul.f32 %v1490, %v1493
        %v1496 = vadd.f32 %v1482, %v1494
        %v1497 = vadd.f32 %v1483, %v1495
        %1498 = vrot.lane.b32.xlu0 %v952, 94
        %v1499 = vpop.permute.xlu0 %1498
        %1500 = vrot.lane.b32.xlu0 %v953, 94
        %v1501 = vpop.permute.xlu0 %1500
        %vm1502 = vcmp.lt.s32.totalorder %v634, 94
        %v1503 = vsel %vm1502, %v1499, %v1501
        %v1504 = vsel %vm1502, %v1501, %v1499
        %s1505 = scalar_lea.vmem %s9, 640
        %v1506 = vld [vmem:[%s1505] sm:$0xff]
        %v1507 = vld [vmem:[%s1505 + $0x8] sm:$0xff]
        %v1508 = vmul.f32 %v1503, %v1506
        %v1509 = vmul.f32 %v1504, %v1507
        %v1510 = vadd.f32 %v1496, %v1508
        %v1511 = vadd.f32 %v1497, %v1509
        %1512 = vrot.lane.b32.xlu0 %v952, 93
        %v1513 = vpop.permute.xlu0 %1512
        %1514 = vrot.lane.b32.xlu0 %v953, 93
        %v1515 = vpop.permute.xlu0 %1514
        %vm1516 = vcmp.lt.s32.totalorder %v634, 93
        %v1517 = vsel %vm1516, %v1513, %v1515
        %v1518 = vsel %vm1516, %v1515, %v1513
        %s1519 = scalar_lea.vmem %s9, 656
        %v1520 = vld [vmem:[%s1519] sm:$0xff]
        %v1521 = vld [vmem:[%s1519 + $0x8] sm:$0xff]
        %v1522 = vmul.f32 %v1517, %v1520
        %v1523 = vmul.f32 %v1518, %v1521
        %v1524 = vadd.f32 %v1510, %v1522
        %v1525 = vadd.f32 %v1511, %v1523
        %1526 = vrot.lane.b32.xlu0 %v952, 83
        %v1527 = vpop.permute.xlu0 %1526
        %1528 = vrot.lane.b32.xlu0 %v953, 83
        %v1529 = vpop.permute.xlu0 %1528
        %vm1530 = vcmp.lt.s32.totalorder %v634, 83
        %v1531 = vsel %vm1530, %v1527, %v1529
        %v1532 = vsel %vm1530, %v1529, %v1527
        %s1533 = scalar_lea.vmem %s9, 672
        %v1534 = vld [vmem:[%s1533] sm:$0xff]
        %v1535 = vld [vmem:[%s1533 + $0x8] sm:$0xff]
        %v1536 = vmul.f32 %v1531, %v1534
        %v1537 = vmul.f32 %v1532, %v1535
        %v1538 = vadd.f32 %v1524, %v1536
        %v1539 = vadd.f32 %v1525, %v1537
        %1540 = vrot.lane.b32.xlu0 %v952, 82
        %v1541 = vpop.permute.xlu0 %1540
        %1542 = vrot.lane.b32.xlu0 %v953, 82
        %v1543 = vpop.permute.xlu0 %1542
        %vm1544 = vcmp.lt.s32.totalorder %v634, 82
        %v1545 = vsel %vm1544, %v1541, %v1543
        %v1546 = vsel %vm1544, %v1543, %v1541
        %s1547 = scalar_lea.vmem %s9, 688
        %v1548 = vld [vmem:[%s1547] sm:$0xff]
        %v1549 = vld [vmem:[%s1547 + $0x8] sm:$0xff]
        %v1550 = vmul.f32 %v1545, %v1548
        %v1551 = vmul.f32 %v1546, %v1549
        %v1552 = vadd.f32 %v1538, %v1550
        %v1553 = vadd.f32 %v1539, %v1551
        %1554 = vrot.lane.b32.xlu0 %v952, 81
        %v1555 = vpop.permute.xlu0 %1554
        %1556 = vrot.lane.b32.xlu0 %v953, 81
        %v1557 = vpop.permute.xlu0 %1556
        %vm1558 = vcmp.lt.s32.totalorder %v634, 81
        %v1559 = vsel %vm1558, %v1555, %v1557
        %v1560 = vsel %vm1558, %v1557, %v1555
        %s1561 = scalar_lea.vmem %s9, 704
        %v1562 = vld [vmem:[%s1561] sm:$0xff]
        %v1563 = vld [vmem:[%s1561 + $0x8] sm:$0xff]
        %v1564 = vmul.f32 %v1559, %v1562
        %v1565 = vmul.f32 %v1560, %v1563
        %v1566 = vadd.f32 %v1552, %v1564
        %v1567 = vadd.f32 %v1553, %v1565
        %1568 = vrot.lane.b32.xlu0 %v952, 80
        %v1569 = vpop.permute.xlu0 %1568
        %1570 = vrot.lane.b32.xlu0 %v953, 80
        %v1571 = vpop.permute.xlu0 %1570
        %vm1572 = vcmp.lt.s32.totalorder %v634, 80
        %v1573 = vsel %vm1572, %v1569, %v1571
        %v1574 = vsel %vm1572, %v1571, %v1569
        %s1575 = scalar_lea.vmem %s9, 720
        %v1576 = vld [vmem:[%s1575] sm:$0xff]
        %v1577 = vld [vmem:[%s1575 + $0x8] sm:$0xff]
        %v1578 = vmul.f32 %v1573, %v1576
        %v1579 = vmul.f32 %v1574, %v1577
        %v1580 = vadd.f32 %v1566, %v1578
        %v1581 = vadd.f32 %v1567, %v1579
        %1582 = vrot.lane.b32.xlu0 %v952, 79
        %v1583 = vpop.permute.xlu0 %1582
        %1584 = vrot.lane.b32.xlu0 %v953, 79
        %v1585 = vpop.permute.xlu0 %1584
        %vm1586 = vcmp.lt.s32.totalorder %v634, 79
        %v1587 = vsel %vm1586, %v1583, %v1585
        %v1588 = vsel %vm1586, %v1585, %v1583
        %s1589 = scalar_lea.vmem %s9, 736
        %v1590 = vld [vmem:[%s1589] sm:$0xff]
        %v1591 = vld [vmem:[%s1589 + $0x8] sm:$0xff]
        %v1592 = vmul.f32 %v1587, %v1590
        %v1593 = vmul.f32 %v1588, %v1591
        %v1594 = vadd.f32 %v1580, %v1592
        %v1595 = vadd.f32 %v1581, %v1593
        %1596 = vrot.lane.b32.xlu0 %v952, 78
        %v1597 = vpop.permute.xlu0 %1596
        %1598 = vrot.lane.b32.xlu0 %v953, 78
        %v1599 = vpop.permute.xlu0 %1598
        %vm1600 = vcmp.lt.s32.totalorder %v634, 78
        %v1601 = vsel %vm1600, %v1597, %v1599
        %v1602 = vsel %vm1600, %v1599, %v1597
        %s1603 = scalar_lea.vmem %s9, 752
        %v1604 = vld [vmem:[%s1603] sm:$0xff]
        %v1605 = vld [vmem:[%s1603 + $0x8] sm:$0xff]
        %v1606 = vmul.f32 %v1601, %v1604
        %v1607 = vmul.f32 %v1602, %v1605
        %v1608 = vadd.f32 %v1594, %v1606
        %v1609 = vadd.f32 %v1595, %v1607
        %1610 = vrot.lane.b32.xlu0 %v952, 77
        %v1611 = vpop.permute.xlu0 %1610
        %1612 = vrot.lane.b32.xlu0 %v953, 77
        %v1613 = vpop.permute.xlu0 %1612
        %vm1614 = vcmp.lt.s32.totalorder %v634, 77
        %v1615 = vsel %vm1614, %v1611, %v1613
        %v1616 = vsel %vm1614, %v1613, %v1611
        %s1617 = scalar_lea.vmem %s9, 768
        %v1618 = vld [vmem:[%s1617] sm:$0xff]
        %v1619 = vld [vmem:[%s1617 + $0x8] sm:$0xff]
        %v1620 = vmul.f32 %v1615, %v1618
        %v1621 = vmul.f32 %v1616, %v1619
        %v1622 = vadd.f32 %v1608, %v1620
        %v1623 = vadd.f32 %v1609, %v1621
        %v1624 = vrot.slane %v1622, 4
        %v1625 = vadd.f32 %v1622, %v1624
        %v1626 = vrot.slane %v1625, 2
        %v1627 = vadd.f32 %v1625, %v1626
        %v1628 = vrot.slane %v1627, 1
        %v1629 = vadd.f32 %v1627, %v1628
        %v1630 = vrot.slane %v1623, 4
        %v1631 = vadd.f32 %v1623, %v1630
        %v1632 = vrot.slane %v1631, 2
        %v1633 = vadd.f32 %v1631, %v1632
        %v1634 = vrot.slane %v1633, 1
        %v1635 = vadd.f32 %v1633, %v1634
        %v1636 = vxor.u32 %v1629, 2147483648
        %v1637 = vxor.u32 %v1635, 2147483648
        %v1638 = vmul.f32 %v1636, 1.442695
        %v1639 = vpow.pop %v1638
        %v1640 = vmul.f32 %v1637, 1.442695
        %v1641 = vpow.pop %v1640
        %v1642 = vadd.f32 %v1639, 1.0
        %v1643 = vadd.f32 %v1641, 1.0
        %v1644 = vrcp.pop %v1642
        %v1645 = vmul.f32 1.0, %v1644
        %v1646 = vrcp.pop %v1643
        %v1647 = vmul.f32 1.0, %v1646
        %v1648 = vmul.f32 %v838, %v1645
        %v1649 = vmul.f32 %v839, %v1647
        %v1650 = vmax.f32 %v842, %v843
        %1651 = vmax.xlane.f32.xlu0 %v1650
        %v1652 = vpop.xlane.xlu0 %1651
        %v1653 = vmul.f32 %v1652, 0.5
        %v1654 = vadd.f32 %v842, %v843
        %1655 = vadd.xlane.f32.xlu0 %v1654
        %v1656 = vpop.xlane.xlu0 %1655
        %v1657 = vrcp.pop 256.0
        %v1658 = vmul.f32 %v1656, %v1657
        %v1659 = vmul.f32 %v1658, 0.5
        %v1660 = vadd.f32 %v1653, %v1659
        %v1661 = vmax.f32 %v844, %v845
        %1662 = vmax.xlane.f32.xlu0 %v1661
        %v1663 = vpop.xlane.xlu0 %1662
        %v1664 = vmul.f32 %v1663, 0.5
        %v1665 = vadd.f32 %v844, %v845
        %1666 = vadd.xlane.f32.xlu0 %v1665
        %v1667 = vpop.xlane.xlu0 %1666
        %v1668 = vmul.f32 %v1667, %v1657
        %v1669 = vmul.f32 %v1668, 0.5
        %v1670 = vadd.f32 %v1664, %v1669
        %v1671 = vadd.f32 %v1660, %v1670
        %v1672 = vmax.f32 %v846, %v847
        %1673 = vmax.xlane.f32.xlu0 %v1672
        %v1674 = vpop.xlane.xlu0 %1673
        %v1675 = vmul.f32 %v1674, 0.5
        %v1676 = vadd.f32 %v846, %v847
        %1677 = vadd.xlane.f32.xlu0 %v1676
        %v1678 = vpop.xlane.xlu0 %1677
        %v1679 = vmul.f32 %v1678, %v1657
        %v1680 = vmul.f32 %v1679, 0.5
        %v1681 = vadd.f32 %v1675, %v1680
        %v1682 = vadd.f32 %v1671, %v1681
        %v1683 = vxor.u32 %v1682, 2147483648
        %v1684 = vmul.f32 %v1683, 1.442695
        %v1685 = vpow.pop %v1684
        %v1686 = vadd.f32 %v1685, 1.0
        %v1687 = vrcp.pop %v1686
        %v1688 = vmul.f32 1.0, %v1687
        %v1689 = vmul.f32 %v838, %v1688
        %v1690 = vmul.f32 %v839, %v1688
        %1691 = vrot.lane.b32.xlu0 %v1648, 17
        %v1692 = vpop.permute.xlu0 %1691
        %1693 = vrot.lane.b32.xlu0 %v1649, 17
        %v1694 = vpop.permute.xlu0 %1693
        %v1695 = vsel %vm635, %v1692, %v1694
        %v1696 = vsel %vm635, %v1694, %v1692
        %s1697 = scalar_lea.vmem [#allocation2], 144
        %v1698 = vld [vmem:[%s1697] sm:$0xff]
        %v1699 = vld [vmem:[%s1697 + $0x8] sm:$0xff]
        %v1700 = vmul.f32 %v1696, %v1698
        %v1701 = vmul.f32 %v1695, %v1699
        %v1702 = vadd.f32 %v1700, 0.0
        %v1703 = vadd.f32 %v1701, 0.0
        %1704 = vrot.lane.b32.xlu0 %v1648, 16
        %v1705 = vpop.permute.xlu0 %1704
        %1706 = vrot.lane.b32.xlu0 %v1649, 16
        %v1707 = vpop.permute.xlu0 %1706
        %v1708 = vsel %vm648, %v1705, %v1707
        %v1709 = vsel %vm648, %v1707, %v1705
        %s1710 = scalar_lea.vmem [#allocation2], 160
        %v1711 = vld [vmem:[%s1710] sm:$0xff]
        %v1712 = vld [vmem:[%s1710 + $0x8] sm:$0xff]
        %v1713 = vmul.f32 %v1709, %v1711
        %v1714 = vmul.f32 %v1708, %v1712
        %v1715 = vadd.f32 %v1702, %v1713
        %v1716 = vadd.f32 %v1703, %v1714
        %1717 = vrot.lane.b32.xlu0 %v1648, 15
        %v1718 = vpop.permute.xlu0 %1717
        %1719 = vrot.lane.b32.xlu0 %v1649, 15
        %v1720 = vpop.permute.xlu0 %1719
        %v1721 = vsel %vm662, %v1718, %v1720
        %v1722 = vsel %vm662, %v1720, %v1718
        %s1723 = scalar_lea.vmem [#allocation2], 176
        %v1724 = vld [vmem:[%s1723] sm:$0xff]
        %v1725 = vld [vmem:[%s1723 + $0x8] sm:$0xff]
        %v1726 = vmul.f32 %v1722, %v1724
        %v1727 = vmul.f32 %v1721, %v1725
        %v1728 = vadd.f32 %v1715, %v1726
        %v1729 = vadd.f32 %v1716, %v1727
        %1730 = vrot.lane.b32.xlu0 %v1648, 1
        %v1731 = vpop.permute.xlu0 %1730
        %1732 = vrot.lane.b32.xlu0 %v1649, 1
        %v1733 = vpop.permute.xlu0 %1732
        %v1734 = vsel %vm676, %v1731, %v1733
        %v1735 = vsel %vm676, %v1733, %v1731
        %s1736 = scalar_lea.vmem [#allocation2], 192
        %v1737 = vld [vmem:[%s1736] sm:$0xff]
        %v1738 = vld [vmem:[%s1736 + $0x8] sm:$0xff]
        %v1739 = vmul.f32 %v1735, %v1737
        %v1740 = vmul.f32 %v1734, %v1738
        %v1741 = vadd.f32 %v1728, %v1739
        %v1742 = vadd.f32 %v1729, %v1740
        %s1743 = scalar_lea.vmem [#allocation2], 208
        %v1744 = vld [vmem:[%s1743] sm:$0xff]
        %v1745 = vld [vmem:[%s1743 + $0x8] sm:$0xff]
        %v1746 = vmul.f32 %v1648, %v1744
        %v1747 = vmul.f32 %v1649, %v1745
        %v1748 = vadd.f32 %v1741, %v1746
        %v1749 = vadd.f32 %v1742, %v1747
        %1750 = vrot.lane.b32.xlu0 %v1648, 127
        %v1751 = vpop.permute.xlu0 %1750
        %1752 = vrot.lane.b32.xlu0 %v1649, 127
        %v1753 = vpop.permute.xlu0 %1752
        %v1754 = vsel %vm697, %v1751, %v1753
        %v1755 = vsel %vm697, %v1753, %v1751
        %s1756 = scalar_lea.vmem [#allocation2], 224
        %v1757 = vld [vmem:[%s1756] sm:$0xff]
        %v1758 = vld [vmem:[%s1756 + $0x8] sm:$0xff]
        %v1759 = vmul.f32 %v1754, %v1757
        %v1760 = vmul.f32 %v1755, %v1758
        %v1761 = vadd.f32 %v1748, %v1759
        %v1762 = vadd.f32 %v1749, %v1760
        %1763 = vrot.lane.b32.xlu0 %v1648, 113
        %v1764 = vpop.permute.xlu0 %1763
        %1765 = vrot.lane.b32.xlu0 %v1649, 113
        %v1766 = vpop.permute.xlu0 %1765
        %v1767 = vsel %vm711, %v1764, %v1766
        %v1768 = vsel %vm711, %v1766, %v1764
        %s1769 = scalar_lea.vmem [#allocation2], 240
        %v1770 = vld [vmem:[%s1769] sm:$0xff]
        %v1771 = vld [vmem:[%s1769 + $0x8] sm:$0xff]
        %v1772 = vmul.f32 %v1767, %v1770
        %v1773 = vmul.f32 %v1768, %v1771
        %v1774 = vadd.f32 %v1761, %v1772
        %v1775 = vadd.f32 %v1762, %v1773
        %1776 = vrot.lane.b32.xlu0 %v1648, 112
        %v1777 = vpop.permute.xlu0 %1776
        %1778 = vrot.lane.b32.xlu0 %v1649, 112
        %v1779 = vpop.permute.xlu0 %1778
        %v1780 = vsel %vm725, %v1777, %v1779
        %v1781 = vsel %vm725, %v1779, %v1777
        %s1782 = scalar_lea.vmem [#allocation2], 256
        %v1783 = vld [vmem:[%s1782] sm:$0xff]
        %v1784 = vld [vmem:[%s1782 + $0x8] sm:$0xff]
        %v1785 = vmul.f32 %v1780, %v1783
        %v1786 = vmul.f32 %v1781, %v1784
        %v1787 = vadd.f32 %v1774, %v1785
        %v1788 = vadd.f32 %v1775, %v1786
        %1789 = vrot.lane.b32.xlu0 %v1648, 111
        %v1790 = vpop.permute.xlu0 %1789
        %1791 = vrot.lane.b32.xlu0 %v1649, 111
        %v1792 = vpop.permute.xlu0 %1791
        %v1793 = vsel %vm739, %v1790, %v1792
        %v1794 = vsel %vm739, %v1792, %v1790
        %s1795 = scalar_lea.vmem [#allocation2], 272
        %v1796 = vld [vmem:[%s1795] sm:$0xff]
        %v1797 = vld [vmem:[%s1795 + $0x8] sm:$0xff]
        %v1798 = vmul.f32 %v1793, %v1796
        %v1799 = vmul.f32 %v1794, %v1797
        %v1800 = vadd.f32 %v1787, %v1798
        %v1801 = vadd.f32 %v1788, %v1799
        %s1802 = scalar_lea.vmem %s6, 8
        %v1803 = vld [vmem:[%s1802] sm:$0xff]
        %1805 = vset.pattern.permute.xlu0 0
        %1806 = vperm.xlu0 %1805, %v1803
        %v1807 = vpop.permute.xlu0 %1806
        %v1809 = vadd.f32 %v1800, %v1807
        %v1810 = vadd.f32 %v1801, %v1807
        %s1811 = scalar_lea.vmem [#allocation4], 8
        %v1812 = vld [vmem:[%s1811] sm:$0xff]
        %s1813 = scalar_lea.vmem %s8, 8
        %v1814 = vld [vmem:[%s1813] sm:$0xff]
        %1816 = vset.pattern.permute.xlu0 0
        %1817 = vperm.xlu0 %1816, %v1814
        %v1818 = vpop.permute.xlu0 %1817
        %v1821 = vsel %vm470, %v1812, 0
        %1823 = vmatprep.subr.mxu0 %v1810
        %1824 = vmatpush1.msra.mxu0 %v1809
        %1825 = vmatprep.subr.mxu0 0.0
        %1826 = vmatpush1.msra.mxu0 0.0
        %1827 = vmatprep.subr.mxu0 0.0
        %1828 = vmatpush1.msra.mxu0 0.0
        %1829 = vmatprep.subr.mxu0 0.0
        %1830 = vmatpush1.msra.mxu0 0.0
        %1831 = vmatprep.subr.mxu0 0.0
        %1832 = vmatpush1.msra.mxu0 0.0
        %1833 = vmatprep.subr.mxu0 0.0
        %1834 = vmatpush1.msra.mxu0 0.0
        %1835 = vmatprep.subr.mxu0 0.0
        %1836 = vmatpush1.msra.mxu0 0.0
        %1837 = vmatprep.subr.mxu0 0.0
        %1838 = vmatpush1.msra.mxu0 0.0
        %1839 = vmatprep.subr.mxu0 0.0
        %1840 = vmatpush1.msra.mxu0 0.0
        %1841 = vmatprep.subr.mxu0 0.0
        %1842 = vmatpush1.msra.mxu0 0.0
        %1843 = vmatprep.subr.mxu0 0.0
        %1844 = vmatpush1.msra.mxu0 0.0
        %1845 = vmatprep.subr.mxu0 0.0
        %1846 = vmatpush1.msra.mxu0 0.0
        %1847 = vmatprep.subr.mxu0 0.0
        %1848 = vmatpush1.msra.mxu0 0.0
        %1849 = vmatprep.subr.mxu0 0.0
        %1850 = vmatpush1.msra.mxu0 0.0
        %1851 = vmatprep.subr.mxu0 0.0
        %1852 = vmatpush1.msra.mxu0 0.0
        %1853 = vmatprep.subr.mxu0 0.0
        %1854 = vmatpush1.msra.mxu0 0.0
        %1855 = vmatprep.subr.mxu0 0.0
        %1856 = vmatpush1.msra.mxu0 0.0
        %1857 = vmatprep.subr.mxu0 0.0
        %1858 = vmatpush1.msra.mxu0 0.0
        %1859 = vmatprep.subr.mxu0 0.0
        %1860 = vmatpush1.msra.mxu0 0.0
        %1861 = vmatprep.subr.mxu0 0.0
        %1862 = vmatpush1.msra.mxu0 0.0
        %1863 = vmatprep.subr.mxu0 0.0
        %1864 = vmatpush1.msra.mxu0 0.0
        %1865 = vmatprep.subr.mxu0 0.0
        %1866 = vmatpush1.msra.mxu0 0.0
        %1867 = vmatprep.subr.mxu0 0.0
        %1868 = vmatpush1.msra.mxu0 0.0
        %1869 = vmatprep.subr.mxu0 0.0
        %1870 = vmatpush1.msra.mxu0 0.0
        %1871 = vmatprep.subr.mxu0 0.0
        %1872 = vmatpush1.msra.mxu0 0.0
        %1873 = vmatprep.subr.mxu0 0.0
        %1874 = vmatpush1.msra.mxu0 0.0
        %1875 = vmatprep.subr.mxu0 0.0
        %1876 = vmatpush1.msra.mxu0 0.0
        %1877 = vmatprep.subr.mxu0 0.0
        %1878 = vmatpush1.msra.mxu0 0.0
        %1879 = vmatprep.subr.mxu0 0.0
        %1880 = vmatpush1.msra.mxu0 0.0
        %1881 = vmatprep.subr.mxu0 0.0
        %1882 = vmatpush1.msra.mxu0 0.0
        %1883 = vmatprep.subr.mxu0 0.0
        %1884 = vmatpush1.msra.mxu0 0.0
        %1885 = vmatprep.subr.mxu0 0.0
        %1886 = vmatpush1.msra.mxu0 0.0
        %1887 = vmatprep.mubr.f32.mxu0 0.0
        %1888 = vmatmul.mubr.f32.gmra.mrb[0].mxu0 %v1821
        %v1889 = vpop.f32.mrb[0].mxu0
        %v1890 = vadd.f32 %v1818, %v1889
        %v1891 = vpop.f32.mrb[0].mxu0
        %v1892 = vadd.f32 %v1818, %v1891
        %1893 = vdwg.mxu0
        %v1894 = vmax.f32 %v1890, 0.0
        %v1895 = vmax.f32 %v1892, 0.0
        %1896 = vrot.lane.b32.xlu0 %v1894, 17
        %v1897 = vpop.permute.xlu0 %1896
        %1898 = vrot.lane.b32.xlu0 %v1895, 17
        %v1899 = vpop.permute.xlu0 %1898
        %v1900 = vsel %vm635, %v1897, %v1899
        %v1901 = vsel %vm635, %v1899, %v1897
        %s1902 = scalar_lea.vmem [#allocation2], 288
        %v1903 = vld [vmem:[%s1902] sm:$0xff]
        %v1904 = vld [vmem:[%s1902 + $0x8] sm:$0xff]
        %v1905 = vmul.f32 %v1901, %v1903
        %v1906 = vmul.f32 %v1900, %v1904
        %v1907 = vadd.f32 %v1905, 0.0
        %v1908 = vadd.f32 %v1906, 0.0
        %1909 = vrot.lane.b32.xlu0 %v1894, 16
        %v1910 = vpop.permute.xlu0 %1909
        %1911 = vrot.lane.b32.xlu0 %v1895, 16
        %v1912 = vpop.permute.xlu0 %1911
        %v1913 = vsel %vm648, %v1910, %v1912
        %v1914 = vsel %vm648, %v1912, %v1910
        %s1915 = scalar_lea.vmem [#allocation2], 304
        %v1916 = vld [vmem:[%s1915] sm:$0xff]
        %v1917 = vld [vmem:[%s1915 + $0x8] sm:$0xff]
        %v1918 = vmul.f32 %v1914, %v1916
        %v1919 = vmul.f32 %v1913, %v1917
        %v1920 = vadd.f32 %v1907, %v1918
        %v1921 = vadd.f32 %v1908, %v1919
        %1922 = vrot.lane.b32.xlu0 %v1894, 15
        %v1923 = vpop.permute.xlu0 %1922
        %1924 = vrot.lane.b32.xlu0 %v1895, 15
        %v1925 = vpop.permute.xlu0 %1924
        %v1926 = vsel %vm662, %v1923, %v1925
        %v1927 = vsel %vm662, %v1925, %v1923
        %s1928 = scalar_lea.vmem [#allocation2], 320
        %v1929 = vld [vmem:[%s1928] sm:$0xff]
        %v1930 = vld [vmem:[%s1928 + $0x8] sm:$0xff]
        %v1931 = vmul.f32 %v1927, %v1929
        %v1932 = vmul.f32 %v1926, %v1930
        %v1933 = vadd.f32 %v1920, %v1931
        %v1934 = vadd.f32 %v1921, %v1932
        %1935 = vrot.lane.b32.xlu0 %v1894, 1
        %v1936 = vpop.permute.xlu0 %1935
        %1937 = vrot.lane.b32.xlu0 %v1895, 1
        %v1938 = vpop.permute.xlu0 %1937
        %v1939 = vsel %vm676, %v1936, %v1938
        %v1940 = vsel %vm676, %v1938, %v1936
        %s1941 = scalar_lea.vmem [#allocation2], 336
        %v1942 = vld [vmem:[%s1941] sm:$0xff]
        %v1943 = vld [vmem:[%s1941 + $0x8] sm:$0xff]
        %v1944 = vmul.f32 %v1940, %v1942
        %v1945 = vmul.f32 %v1939, %v1943
        %v1946 = vadd.f32 %v1933, %v1944
        %v1947 = vadd.f32 %v1934, %v1945
        %s1948 = scalar_lea.vmem [#allocation2], 352
        %v1949 = vld [vmem:[%s1948] sm:$0xff]
        %v1950 = vld [vmem:[%s1948 + $0x8] sm:$0xff]
        %v1951 = vmul.f32 %v1894, %v1949
        %v1952 = vmul.f32 %v1895, %v1950
        %v1953 = vadd.f32 %v1946, %v1951
        %v1954 = vadd.f32 %v1947, %v1952
        %1955 = vrot.lane.b32.xlu0 %v1894, 127
        %v1956 = vpop.permute.xlu0 %1955
        %1957 = vrot.lane.b32.xlu0 %v1895, 127
        %v1958 = vpop.permute.xlu0 %1957
        %v1959 = vsel %vm697, %v1956, %v1958
        %v1960 = vsel %vm697, %v1958, %v1956
        %s1961 = scalar_lea.vmem [#allocation2], 368
        %v1962 = vld [vmem:[%s1961] sm:$0xff]
        %v1963 = vld [vmem:[%s1961 + $0x8] sm:$0xff]
        %v1964 = vmul.f32 %v1959, %v1962
        %v1965 = vmul.f32 %v1960, %v1963
        %v1966 = vadd.f32 %v1953, %v1964
        %v1967 = vadd.f32 %v1954, %v1965
        %1968 = vrot.lane.b32.xlu0 %v1894, 113
        %v1969 = vpop.permute.xlu0 %1968
        %1970 = vrot.lane.b32.xlu0 %v1895, 113
        %v1971 = vpop.permute.xlu0 %1970
        %v1972 = vsel %vm711, %v1969, %v1971
        %v1973 = vsel %vm711, %v1971, %v1969
        %s1974 = scalar_lea.vmem [#allocation2], 384
        %v1975 = vld [vmem:[%s1974] sm:$0xff]
        %v1976 = vld [vmem:[%s1974 + $0x8] sm:$0xff]
        %v1977 = vmul.f32 %v1972, %v1975
        %v1978 = vmul.f32 %v1973, %v1976
        %v1979 = vadd.f32 %v1966, %v1977
        %v1980 = vadd.f32 %v1967, %v1978
        %1981 = vrot.lane.b32.xlu0 %v1894, 112
        %v1982 = vpop.permute.xlu0 %1981
        %1983 = vrot.lane.b32.xlu0 %v1895, 112
        %v1984 = vpop.permute.xlu0 %1983
        %v1985 = vsel %vm725, %v1982, %v1984
        %v1986 = vsel %vm725, %v1984, %v1982
        %s1987 = scalar_lea.vmem [#allocation2], 400
        %v1988 = vld [vmem:[%s1987] sm:$0xff]
        %v1989 = vld [vmem:[%s1987 + $0x8] sm:$0xff]
        %v1990 = vmul.f32 %v1985, %v1988
        %v1991 = vmul.f32 %v1986, %v1989
        %v1992 = vadd.f32 %v1979, %v1990
        %v1993 = vadd.f32 %v1980, %v1991
        %1994 = vrot.lane.b32.xlu0 %v1894, 111
        %v1995 = vpop.permute.xlu0 %1994
        %1996 = vrot.lane.b32.xlu0 %v1895, 111
        %v1997 = vpop.permute.xlu0 %1996
        %v1998 = vsel %vm739, %v1995, %v1997
        %v1999 = vsel %vm739, %v1997, %v1995
        %s2000 = scalar_lea.vmem [#allocation2], 416
        %v2001 = vld [vmem:[%s2000] sm:$0xff]
        %v2002 = vld [vmem:[%s2000 + $0x8] sm:$0xff]
        %v2003 = vmul.f32 %v1998, %v2001
        %v2004 = vmul.f32 %v1999, %v2002
        %v2005 = vadd.f32 %v1992, %v2003
        %v2006 = vadd.f32 %v1993, %v2004
        %s2007 = scalar_lea.vmem %s6, 16
        %v2008 = vld [vmem:[%s2007] sm:$0xff]
        %2010 = vset.pattern.permute.xlu0 0
        %2011 = vperm.xlu0 %2010, %v2008
        %v2012 = vpop.permute.xlu0 %2011
        %v2014 = vadd.f32 %v2005, %v2012
        %v2015 = vadd.f32 %v2006, %v2012
        %s2016 = scalar_lea.vmem [#allocation4], 16
        %v2017 = vld [vmem:[%s2016] sm:$0xff]
        %s2018 = scalar_lea.vmem %s8, 16
        %v2019 = vld [vmem:[%s2018] sm:$0xff]
        %2021 = vset.pattern.permute.xlu0 0
        %2022 = vperm.xlu0 %2021, %v2019
        %v2023 = vpop.permute.xlu0 %2022
        %v2026 = vsel %vm470, %v2017, 0
        %2028 = vmatprep.subr.mxu0 %v2015
        %2029 = vmatpush1.msra.mxu0 %v2014
        %2030 = vmatprep.subr.mxu0 0.0
        %2031 = vmatpush1.msra.mxu0 0.0
        %2032 = vmatprep.subr.mxu0 0.0
        %2033 = vmatpush1.msra.mxu0 0.0
        %2034 = vmatprep.subr.mxu0 0.0
        %2035 = vmatpush1.msra.mxu0 0.0
        %2036 = vmatprep.subr.mxu0 0.0
        %2037 = vmatpush1.msra.mxu0 0.0
        %2038 = vmatprep.subr.mxu0 0.0
        %2039 = vmatpush1.msra.mxu0 0.0
        %2040 = vmatprep.subr.mxu0 0.0
        %2041 = vmatpush1.msra.mxu0 0.0
        %2042 = vmatprep.subr.mxu0 0.0
        %2043 = vmatpush1.msra.mxu0 0.0
        %2044 = vmatprep.subr.mxu0 0.0
        %2045 = vmatpush1.msra.mxu0 0.0
        %2046 = vmatprep.subr.mxu0 0.0
        %2047 = vmatpush1.msra.mxu0 0.0
        %2048 = vmatprep.subr.mxu0 0.0
        %2049 = vmatpush1.msra.mxu0 0.0
        %2050 = vmatprep.subr.mxu0 0.0
        %2051 = vmatpush1.msra.mxu0 0.0
        %2052 = vmatprep.subr.mxu0 0.0
        %2053 = vmatpush1.msra.mxu0 0.0
        %2054 = vmatprep.subr.mxu0 0.0
        %2055 = vmatpush1.msra.mxu0 0.0
        %2056 = vmatprep.subr.mxu0 0.0
        %2057 = vmatpush1.msra.mxu0 0.0
        %2058 = vmatprep.subr.mxu0 0.0
        %2059 = vmatpush1.msra.mxu0 0.0
        %2060 = vmatprep.subr.mxu0 0.0
        %2061 = vmatpush1.msra.mxu0 0.0
        %2062 = vmatprep.subr.mxu0 0.0
        %2063 = vmatpush1.msra.mxu0 0.0
        %2064 = vmatprep.subr.mxu0 0.0
        %2065 = vmatpush1.msra.mxu0 0.0
        %2066 = vmatprep.subr.mxu0 0.0
        %2067 = vmatpush1.msra.mxu0 0.0
        %2068 = vmatprep.subr.mxu0 0.0
        %2069 = vmatpush1.msra.mxu0 0.0
        %2070 = vmatprep.subr.mxu0 0.0
        %2071 = vmatpush1.msra.mxu0 0.0
        %2072 = vmatprep.subr.mxu0 0.0
        %2073 = vmatpush1.msra.mxu0 0.0
        %2074 = vmatprep.subr.mxu0 0.0
        %2075 = vmatpush1.msra.mxu0 0.0
        %2076 = vmatprep.subr.mxu0 0.0
        %2077 = vmatpush1.msra.mxu0 0.0
        %2078 = vmatprep.subr.mxu0 0.0
        %2079 = vmatpush1.msra.mxu0 0.0
        %2080 = vmatprep.subr.mxu0 0.0
        %2081 = vmatpush1.msra.mxu0 0.0
        %2082 = vmatprep.subr.mxu0 0.0
        %2083 = vmatpush1.msra.mxu0 0.0
        %2084 = vmatprep.subr.mxu0 0.0
        %2085 = vmatpush1.msra.mxu0 0.0
        %2086 = vmatprep.subr.mxu0 0.0
        %2087 = vmatpush1.msra.mxu0 0.0
        %2088 = vmatprep.subr.mxu0 0.0
        %2089 = vmatpush1.msra.mxu0 0.0
        %2090 = vmatprep.subr.mxu0 0.0
        %2091 = vmatpush1.msra.mxu0 0.0
        %2092 = vmatprep.mubr.f32.mxu0 0.0
        %2093 = vmatmul.mubr.f32.gmra.mrb[0].mxu0 %v2026
        %v2094 = vpop.f32.mrb[0].mxu0
        %v2095 = vadd.f32 %v2023, %v2094
        %v2096 = vpop.f32.mrb[0].mxu0
        %v2097 = vadd.f32 %v2023, %v2096
        %2098 = vdwg.mxu0
        %v2099 = vadd.f32 %v2095, %v1648
        %v2100 = vadd.f32 %v2097, %v1649
        %v2101 = vmax.f32 %v2099, 0.0
        %v2102 = vmax.f32 %v2100, 0.0
        %2103 = vrot.lane.b32.xlu0 %v1689, 17
        %v2104 = vpop.permute.xlu0 %2103
        %2105 = vrot.lane.b32.xlu0 %v1690, 17
        %v2106 = vpop.permute.xlu0 %2105
        %v2107 = vsel %vm635, %v2104, %v2106
        %v2108 = vsel %vm635, %v2106, %v2104
        %s2109 = scalar_lea.vmem [#allocation2], 432
        %v2110 = vld [vmem:[%s2109] sm:$0xff]
        %v2111 = vld [vmem:[%s2109 + $0x8] sm:$0xff]
        %v2112 = vmul.f32 %v2108, %v2110
        %v2113 = vmul.f32 %v2107, %v2111
        %v2114 = vadd.f32 %v2112, 0.0
        %v2115 = vadd.f32 %v2113, 0.0
        %2116 = vrot.lane.b32.xlu0 %v1689, 16
        %v2117 = vpop.permute.xlu0 %2116
        %2118 = vrot.lane.b32.xlu0 %v1690, 16
        %v2119 = vpop.permute.xlu0 %2118
        %v2120 = vsel %vm648, %v2117, %v2119
        %v2121 = vsel %vm648, %v2119, %v2117
        %s2122 = scalar_lea.vmem [#allocation2], 448
        %v2123 = vld [vmem:[%s2122] sm:$0xff]
        %v2124 = vld [vmem:[%s2122 + $0x8] sm:$0xff]
        %v2125 = vmul.f32 %v2121, %v2123
        %v2126 = vmul.f32 %v2120, %v2124
        %v2127 = vadd.f32 %v2114, %v2125
        %v2128 = vadd.f32 %v2115, %v2126
        %2129 = vrot.lane.b32.xlu0 %v1689, 15
        %v2130 = vpop.permute.xlu0 %2129
        %2131 = vrot.lane.b32.xlu0 %v1690, 15
        %v2132 = vpop.permute.xlu0 %2131
        %v2133 = vsel %vm662, %v2130, %v2132
        %v2134 = vsel %vm662, %v2132, %v2130
        %s2135 = scalar_lea.vmem [#allocation2], 464
        %v2136 = vld [vmem:[%s2135] sm:$0xff]
        %v2137 = vld [vmem:[%s2135 + $0x8] sm:$0xff]
        %v2138 = vmul.f32 %v2134, %v2136
        %v2139 = vmul.f32 %v2133, %v2137
        %v2140 = vadd.f32 %v2127, %v2138
        %v2141 = vadd.f32 %v2128, %v2139
        %2142 = vrot.lane.b32.xlu0 %v1689, 1
        %v2143 = vpop.permute.xlu0 %2142
        %2144 = vrot.lane.b32.xlu0 %v1690, 1
        %v2145 = vpop.permute.xlu0 %2144
        %v2146 = vsel %vm676, %v2143, %v2145
        %v2147 = vsel %vm676, %v2145, %v2143
        %s2148 = scalar_lea.vmem [#allocation2], 480
        %v2149 = vld [vmem:[%s2148] sm:$0xff]
        %v2150 = vld [vmem:[%s2148 + $0x8] sm:$0xff]
        %v2151 = vmul.f32 %v2147, %v2149
        %v2152 = vmul.f32 %v2146, %v2150
        %v2153 = vadd.f32 %v2140, %v2151
        %v2154 = vadd.f32 %v2141, %v2152
        %s2155 = scalar_lea.vmem [#allocation2], 496
        %v2156 = vld [vmem:[%s2155] sm:$0xff]
        %v2157 = vld [vmem:[%s2155 + $0x8] sm:$0xff]
        %v2158 = vmul.f32 %v1689, %v2156
        %v2159 = vmul.f32 %v1690, %v2157
        %v2160 = vadd.f32 %v2153, %v2158
        %v2161 = vadd.f32 %v2154, %v2159
        %2162 = vrot.lane.b32.xlu0 %v1689, 127
        %v2163 = vpop.permute.xlu0 %2162
        %2164 = vrot.lane.b32.xlu0 %v1690, 127
        %v2165 = vpop.permute.xlu0 %2164
        %v2166 = vsel %vm697, %v2163, %v2165
        %v2167 = vsel %vm697, %v2165, %v2163
        %s2168 = scalar_lea.vmem [#allocation2], 512
        %v2169 = vld [vmem:[%s2168] sm:$0xff]
        %v2170 = vld [vmem:[%s2168 + $0x8] sm:$0xff]
        %v2171 = vmul.f32 %v2166, %v2169
        %v2172 = vmul.f32 %v2167, %v2170
        %v2173 = vadd.f32 %v2160, %v2171
        %v2174 = vadd.f32 %v2161, %v2172
        %2175 = vrot.lane.b32.xlu0 %v1689, 113
        %v2176 = vpop.permute.xlu0 %2175
        %2177 = vrot.lane.b32.xlu0 %v1690, 113
        %v2178 = vpop.permute.xlu0 %2177
        %v2179 = vsel %vm711, %v2176, %v2178
        %v2180 = vsel %vm711, %v2178, %v2176
        %s2181 = scalar_lea.vmem [#allocation2], 528
        %v2182 = vld [vmem:[%s2181] sm:$0xff]
        %v2183 = vld [vmem:[%s2181 + $0x8] sm:$0xff]
        %v2184 = vmul.f32 %v2179, %v2182
        %v2185 = vmul.f32 %v2180, %v2183
        %v2186 = vadd.f32 %v2173, %v2184
        %v2187 = vadd.f32 %v2174, %v2185
        %2188 = vrot.lane.b32.xlu0 %v1689, 112
        %v2189 = vpop.permute.xlu0 %2188
        %2190 = vrot.lane.b32.xlu0 %v1690, 112
        %v2191 = vpop.permute.xlu0 %2190
        %v2192 = vsel %vm725, %v2189, %v2191
        %v2193 = vsel %vm725, %v2191, %v2189
        %s2194 = scalar_lea.vmem [#allocation2], 544
        %v2195 = vld [vmem:[%s2194] sm:$0xff]
        %v2196 = vld [vmem:[%s2194 + $0x8] sm:$0xff]
        %v2197 = vmul.f32 %v2192, %v2195
        %v2198 = vmul.f32 %v2193, %v2196
        %v2199 = vadd.f32 %v2186, %v2197
        %v2200 = vadd.f32 %v2187, %v2198
        %2201 = vrot.lane.b32.xlu0 %v1689, 111
        %v2202 = vpop.permute.xlu0 %2201
        %2203 = vrot.lane.b32.xlu0 %v1690, 111
        %v2204 = vpop.permute.xlu0 %2203
        %v2205 = vsel %vm739, %v2202, %v2204
        %v2206 = vsel %vm739, %v2204, %v2202
        %s2207 = scalar_lea.vmem [#allocation2], 560
        %v2208 = vld [vmem:[%s2207] sm:$0xff]
        %v2209 = vld [vmem:[%s2207 + $0x8] sm:$0xff]
        %v2210 = vmul.f32 %v2205, %v2208
        %v2211 = vmul.f32 %v2206, %v2209
        %v2212 = vadd.f32 %v2199, %v2210
        %v2213 = vadd.f32 %v2200, %v2211
        %s2214 = scalar_lea.vmem %s6, 24
        %v2215 = vld [vmem:[%s2214] sm:$0xff]
        %2217 = vset.pattern.permute.xlu0 0
        %2218 = vperm.xlu0 %2217, %v2215
        %v2219 = vpop.permute.xlu0 %2218
        %v2221 = vadd.f32 %v2212, %v2219
        %v2222 = vadd.f32 %v2213, %v2219
        %s2223 = scalar_lea.vmem [#allocation4], 24
        %v2224 = vld [vmem:[%s2223] sm:$0xff]
        %s2225 = scalar_lea.vmem %s8, 24
        %v2226 = vld [vmem:[%s2225] sm:$0xff]
        %2228 = vset.pattern.permute.xlu0 0
        %2229 = vperm.xlu0 %2228, %v2226
        %v2230 = vpop.permute.xlu0 %2229
        %v2233 = vsel %vm470, %v2224, 0
        %2235 = vmatprep.subr.mxu0 %v2222
        %2236 = vmatpush1.msra.mxu0 %v2221
        %2237 = vmatprep.subr.mxu0 0.0
        %2238 = vmatpush1.msra.mxu0 0.0
        %2239 = vmatprep.subr.mxu0 0.0
        %2240 = vmatpush1.msra.mxu0 0.0
        %2241 = vmatprep.subr.mxu0 0.0
        %2242 = vmatpush1.msra.mxu0 0.0
        %2243 = vmatprep.subr.mxu0 0.0
        %2244 = vmatpush1.msra.mxu0 0.0
        %2245 = vmatprep.subr.mxu0 0.0
        %2246 = vmatpush1.msra.mxu0 0.0
        %2247 = vmatprep.subr.mxu0 0.0
        %2248 = vmatpush1.msra.mxu0 0.0
        %2249 = vmatprep.subr.mxu0 0.0
        %2250 = vmatpush1.msra.mxu0 0.0
        %2251 = vmatprep.subr.mxu0 0.0
        %2252 = vmatpush1.msra.mxu0 0.0
        %2253 = vmatprep.subr.mxu0 0.0
        %2254 = vmatpush1.msra.mxu0 0.0
        %2255 = vmatprep.subr.mxu0 0.0
        %2256 = vmatpush1.msra.mxu0 0.0
        %2257 = vmatprep.subr.mxu0 0.0
        %2258 = vmatpush1.msra.mxu0 0.0
        %2259 = vmatprep.subr.mxu0 0.0
        %2260 = vmatpush1.msra.mxu0 0.0
        %2261 = vmatprep.subr.mxu0 0.0
        %2262 = vmatpush1.msra.mxu0 0.0
        %2263 = vmatprep.subr.mxu0 0.0
        %2264 = vmatpush1.msra.mxu0 0.0
        %2265 = vmatprep.subr.mxu0 0.0
        %2266 = vmatpush1.msra.mxu0 0.0
        %2267 = vmatprep.subr.mxu0 0.0
        %2268 = vmatpush1.msra.mxu0 0.0
        %2269 = vmatprep.subr.mxu0 0.0
        %2270 = vmatpush1.msra.mxu0 0.0
        %2271 = vmatprep.subr.mxu0 0.0
        %2272 = vmatpush1.msra.mxu0 0.0
        %2273 = vmatprep.subr.mxu0 0.0
        %2274 = vmatpush1.msra.mxu0 0.0
        %2275 = vmatprep.subr.mxu0 0.0
        %2276 = vmatpush1.msra.mxu0 0.0
        %2277 = vmatprep.subr.mxu0 0.0
        %2278 = vmatpush1.msra.mxu0 0.0
        %2279 = vmatprep.subr.mxu0 0.0
        %2280 = vmatpush1.msra.mxu0 0.0
        %2281 = vmatprep.subr.mxu0 0.0
        %2282 = vmatpush1.msra.mxu0 0.0
        %2283 = vmatprep.subr.mxu0 0.0
        %2284 = vmatpush1.msra.mxu0 0.0
        %2285 = vmatprep.subr.mxu0 0.0
        %2286 = vmatpush1.msra.mxu0 0.0
        %2287 = vmatprep.subr.mxu0 0.0
        %2288 = vmatpush1.msra.mxu0 0.0
        %2289 = vmatprep.subr.mxu0 0.0
        %2290 = vmatpush1.msra.mxu0 0.0
        %2291 = vmatprep.subr.mxu0 0.0
        %2292 = vmatpush1.msra.mxu0 0.0
        %2293 = vmatprep.subr.mxu0 0.0
        %2294 = vmatpush1.msra.mxu0 0.0
        %2295 = vmatprep.subr.mxu0 0.0
        %2296 = vmatpush1.msra.mxu0 0.0
        %2297 = vmatprep.subr.mxu0 0.0
        %2298 = vmatpush1.msra.mxu0 0.0
        %2299 = vmatprep.mubr.f32.mxu0 0.0
        %2300 = vmatmul.mubr.f32.gmra.mrb[0].mxu0 %v2233
        %v2301 = vpop.f32.mrb[0].mxu0
        %v2302 = vadd.f32 %v2230, %v2301
        %v2303 = vpop.f32.mrb[0].mxu0
        %v2304 = vadd.f32 %v2230, %v2303
        %2305 = vdwg.mxu0
        %v2306 = vmax.f32 %v2302, 0.0
        %v2307 = vmax.f32 %v2304, 0.0
        %2308 = vrot.lane.b32.xlu0 %v2306, 17
        %v2309 = vpop.permute.xlu0 %2308
        %2310 = vrot.lane.b32.xlu0 %v2307, 17
        %v2311 = vpop.permute.xlu0 %2310
        %v2312 = vsel %vm635, %v2309, %v2311
        %v2313 = vsel %vm635, %v2311, %v2309
        %s2314 = scalar_lea.vmem [#allocation2], 576
        %v2315 = vld [vmem:[%s2314] sm:$0xff]
        %v2316 = vld [vmem:[%s2314 + $0x8] sm:$0xff]
        %v2317 = vmul.f32 %v2313, %v2315
        %v2318 = vmul.f32 %v2312, %v2316
        %v2319 = vadd.f32 %v2317, 0.0
        %v2320 = vadd.f32 %v2318, 0.0
        %2321 = vrot.lane.b32.xlu0 %v2306, 16
        %v2322 = vpop.permute.xlu0 %2321
        %2323 = vrot.lane.b32.xlu0 %v2307, 16
        %v2324 = vpop.permute.xlu0 %2323
        %v2325 = vsel %vm648, %v2322, %v2324
        %v2326 = vsel %vm648, %v2324, %v2322
        %s2327 = scalar_lea.vmem [#allocation2], 592
        %v2328 = vld [vmem:[%s2327] sm:$0xff]
        %v2329 = vld [vmem:[%s2327 + $0x8] sm:$0xff]
        %v2330 = vmul.f32 %v2326, %v2328
        %v2331 = vmul.f32 %v2325, %v2329
        %v2332 = vadd.f32 %v2319, %v2330
        %v2333 = vadd.f32 %v2320, %v2331
        %2334 = vrot.lane.b32.xlu0 %v2306, 15
        %v2335 = vpop.permute.xlu0 %2334
        %2336 = vrot.lane.b32.xlu0 %v2307, 15
        %v2337 = vpop.permute.xlu0 %2336
        %v2338 = vsel %vm662, %v2335, %v2337
        %v2339 = vsel %vm662, %v2337, %v2335
        %s2340 = scalar_lea.vmem [#allocation2], 608
        %v2341 = vld [vmem:[%s2340] sm:$0xff]
        %v2342 = vld [vmem:[%s2340 + $0x8] sm:$0xff]
        %v2343 = vmul.f32 %v2339, %v2341
        %v2344 = vmul.f32 %v2338, %v2342
        %v2345 = vadd.f32 %v2332, %v2343
        %v2346 = vadd.f32 %v2333, %v2344
        %2347 = vrot.lane.b32.xlu0 %v2306, 1
        %v2348 = vpop.permute.xlu0 %2347
        %2349 = vrot.lane.b32.xlu0 %v2307, 1
        %v2350 = vpop.permute.xlu0 %2349
        %v2351 = vsel %vm676, %v2348, %v2350
        %v2352 = vsel %vm676, %v2350, %v2348
        %s2353 = scalar_lea.vmem [#allocation2], 624
        %v2354 = vld [vmem:[%s2353] sm:$0xff]
        %v2355 = vld [vmem:[%s2353 + $0x8] sm:$0xff]
        %v2356 = vmul.f32 %v2352, %v2354
        %v2357 = vmul.f32 %v2351, %v2355
        %v2358 = vadd.f32 %v2345, %v2356
        %v2359 = vadd.f32 %v2346, %v2357
        %s2360 = scalar_lea.vmem [#allocation2], 640
        %v2361 = vld [vmem:[%s2360] sm:$0xff]
        %v2362 = vld [vmem:[%s2360 + $0x8] sm:$0xff]
        %v2363 = vmul.f32 %v2306, %v2361
        %v2364 = vmul.f32 %v2307, %v2362
        %v2365 = vadd.f32 %v2358, %v2363
        %v2366 = vadd.f32 %v2359, %v2364
        %2367 = vrot.lane.b32.xlu0 %v2306, 127
        %v2368 = vpop.permute.xlu0 %2367
        %2369 = vrot.lane.b32.xlu0 %v2307, 127
        %v2370 = vpop.permute.xlu0 %2369
        %v2371 = vsel %vm697, %v2368, %v2370
        %v2372 = vsel %vm697, %v2370, %v2368
        %s2373 = scalar_lea.vmem [#allocation2], 656
        %v2374 = vld [vmem:[%s2373] sm:$0xff]
        %v2375 = vld [vmem:[%s2373 + $0x8] sm:$0xff]
        %v2376 = vmul.f32 %v2371, %v2374
        %v2377 = vmul.f32 %v2372, %v2375
        %v2378 = vadd.f32 %v2365, %v2376
        %v2379 = vadd.f32 %v2366, %v2377
        %2380 = vrot.lane.b32.xlu0 %v2306, 113
        %v2381 = vpop.permute.xlu0 %2380
        %2382 = vrot.lane.b32.xlu0 %v2307, 113
        %v2383 = vpop.permute.xlu0 %2382
        %v2384 = vsel %vm711, %v2381, %v2383
        %v2385 = vsel %vm711, %v2383, %v2381
        %s2386 = scalar_lea.vmem [#allocation2], 672
        %v2387 = vld [vmem:[%s2386] sm:$0xff]
        %v2388 = vld [vmem:[%s2386 + $0x8] sm:$0xff]
        %v2389 = vmul.f32 %v2384, %v2387
        %v2390 = vmul.f32 %v2385, %v2388
        %v2391 = vadd.f32 %v2378, %v2389
        %v2392 = vadd.f32 %v2379, %v2390
        %2393 = vrot.lane.b32.xlu0 %v2306, 112
        %v2394 = vpop.permute.xlu0 %2393
        %2395 = vrot.lane.b32.xlu0 %v2307, 112
        %v2396 = vpop.permute.xlu0 %2395
        %v2397 = vsel %vm725, %v2394, %v2396
        %v2398 = vsel %vm725, %v2396, %v2394
        %s2399 = scalar_lea.vmem [#allocation2], 688
        %v2400 = vld [vmem:[%s2399] sm:$0xff]
        %v2401 = vld [vmem:[%s2399 + $0x8] sm:$0xff]
        %v2402 = vmul.f32 %v2397, %v2400
        %v2403 = vmul.f32 %v2398, %v2401
        %v2404 = vadd.f32 %v2391, %v2402
        %v2405 = vadd.f32 %v2392, %v2403
        %2406 = vrot.lane.b32.xlu0 %v2306, 111
        %v2407 = vpop.permute.xlu0 %2406
        %2408 = vrot.lane.b32.xlu0 %v2307, 111
        %v2409 = vpop.permute.xlu0 %2408
        %v2410 = vsel %vm739, %v2407, %v2409
        %v2411 = vsel %vm739, %v2409, %v2407
        %s2412 = scalar_lea.vmem [#allocation2], 704
        %v2413 = vld [vmem:[%s2412] sm:$0xff]
        %v2414 = vld [vmem:[%s2412 + $0x8] sm:$0xff]
        %v2415 = vmul.f32 %v2410, %v2413
        %v2416 = vmul.f32 %v2411, %v2414
        %v2417 = vadd.f32 %v2404, %v2415
        %v2418 = vadd.f32 %v2405, %v2416
        %s2419 = scalar_lea.vmem %s6, 32
        %v2420 = vld [vmem:[%s2419] sm:$0xff]
        %2422 = vset.pattern.permute.xlu0 0
        %2423 = vperm.xlu0 %2422, %v2420
        %v2424 = vpop.permute.xlu0 %2423
        %v2426 = vadd.f32 %v2417, %v2424
        %v2427 = vadd.f32 %v2418, %v2424
        %s2428 = scalar_lea.vmem [#allocation4], 32
        %v2429 = vld [vmem:[%s2428] sm:$0xff]
        %s2430 = scalar_lea.vmem %s8, 32
        %v2431 = vld [vmem:[%s2430] sm:$0xff]
        %2433 = vset.pattern.permute.xlu0 0
        %2434 = vperm.xlu0 %2433, %v2431
        %v2435 = vpop.permute.xlu0 %2434
        %v2438 = vsel %vm470, %v2429, 0
        %2440 = vmatprep.subr.mxu0 %v2427
        %2441 = vmatpush1.msra.mxu0 %v2426
        %2442 = vmatprep.subr.mxu0 0.0
        %2443 = vmatpush1.msra.mxu0 0.0
        %2444 = vmatprep.subr.mxu0 0.0
        %2445 = vmatpush1.msra.mxu0 0.0
        %2446 = vmatprep.subr.mxu0 0.0
        %2447 = vmatpush1.msra.mxu0 0.0
        %2448 = vmatprep.subr.mxu0 0.0
        %2449 = vmatpush1.msra.mxu0 0.0
        %2450 = vmatprep.subr.mxu0 0.0
        %2451 = vmatpush1.msra.mxu0 0.0
        %2452 = vmatprep.subr.mxu0 0.0
        %2453 = vmatpush1.msra.mxu0 0.0
        %2454 = vmatprep.subr.mxu0 0.0
        %2455 = vmatpush1.msra.mxu0 0.0
        %2456 = vmatprep.subr.mxu0 0.0
        %2457 = vmatpush1.msra.mxu0 0.0
        %2458 = vmatprep.subr.mxu0 0.0
        %2459 = vmatpush1.msra.mxu0 0.0
        %2460 = vmatprep.subr.mxu0 0.0
        %2461 = vmatpush1.msra.mxu0 0.0
        %2462 = vmatprep.subr.mxu0 0.0
        %2463 = vmatpush1.msra.mxu0 0.0
        %2464 = vmatprep.subr.mxu0 0.0
        %2465 = vmatpush1.msra.mxu0 0.0
        %2466 = vmatprep.subr.mxu0 0.0
        %2467 = vmatpush1.msra.mxu0 0.0
        %2468 = vmatprep.subr.mxu0 0.0
        %2469 = vmatpush1.msra.mxu0 0.0
        %2470 = vmatprep.subr.mxu0 0.0
        %2471 = vmatpush1.msra.mxu0 0.0
        %2472 = vmatprep.subr.mxu0 0.0
        %2473 = vmatpush1.msra.mxu0 0.0
        %2474 = vmatprep.subr.mxu0 0.0
        %2475 = vmatpush1.msra.mxu0 0.0
        %2476 = vmatprep.subr.mxu0 0.0
        %2477 = vmatpush1.msra.mxu0 0.0
        %2478 = vmatprep.subr.mxu0 0.0
        %2479 = vmatpush1.msra.mxu0 0.0
        %2480 = vmatprep.subr.mxu0 0.0
        %2481 = vmatpush1.msra.mxu0 0.0
        %2482 = vmatprep.subr.mxu0 0.0
        %2483 = vmatpush1.msra.mxu0 0.0
        %2484 = vmatprep.subr.mxu0 0.0
        %2485 = vmatpush1.msra.mxu0 0.0
        %2486 = vmatprep.subr.mxu0 0.0
        %2487 = vmatpush1.msra.mxu0 0.0
        %2488 = vmatprep.subr.mxu0 0.0
        %2489 = vmatpush1.msra.mxu0 0.0
        %2490 = vmatprep.subr.mxu0 0.0
        %2491 = vmatpush1.msra.mxu0 0.0
        %2492 = vmatprep.subr.mxu0 0.0
        %2493 = vmatpush1.msra.mxu0 0.0
        %2494 = vmatprep.subr.mxu0 0.0
        %2495 = vmatpush1.msra.mxu0 0.0
        %2496 = vmatprep.subr.mxu0 0.0
        %2497 = vmatpush1.msra.mxu0 0.0
        %2498 = vmatprep.subr.mxu0 0.0
        %2499 = vmatpush1.msra.mxu0 0.0
        %2500 = vmatprep.subr.mxu0 0.0
        %2501 = vmatpush1.msra.mxu0 0.0
        %2502 = vmatprep.subr.mxu0 0.0
        %2503 = vmatpush1.msra.mxu0 0.0
        %2504 = vmatprep.mubr.f32.mxu0 0.0
        %2505 = vmatmul.mubr.f32.gmra.mrb[0].mxu0 %v2438
        %v2506 = vpop.f32.mrb[0].mxu0
        %v2507 = vadd.f32 %v2435, %v2506
        %v2508 = vpop.f32.mrb[0].mxu0
        %v2509 = vadd.f32 %v2435, %v2508
        %2510 = vdwg.mxu0
        %v2511 = vadd.f32 %v2507, %v1689
        %v2512 = vadd.f32 %v2509, %v1690
        %v2513 = vmax.f32 %v2511, 0.0
        %v2514 = vmax.f32 %v2512, 0.0
        %v2515 = vadd.f32 %v2101, %v2513
        %v2516 = vadd.f32 %v2102, %v2514
        %v2517 = vmul.f32 %v838, %v2515
        %v2518 = vmul.f32 %v839, %v2516
        %2519 = vrot.lane.b32.xlu0 %v2517, 17
        %v2520 = vpop.permute.xlu0 %2519
        %2521 = vrot.lane.b32.xlu0 %v2518, 17
        %v2522 = vpop.permute.xlu0 %2521
        %v2523 = vsel %vm635, %v2520, %v2522
        %v2524 = vsel %vm635, %v2522, %v2520
        %s2525 = scalar_lea.vmem [#allocation2], 720
        %v2526 = vld [vmem:[%s2525] sm:$0xff]
        %v2527 = vld [vmem:[%s2525 + $0x8] sm:$0xff]
        %v2528 = vmul.f32 %v2524, %v2526
        %v2529 = vmul.f32 %v2523, %v2527
        %v2530 = vadd.f32 %v2528, 0.0
        %v2531 = vadd.f32 %v2529, 0.0
        %2532 = vrot.lane.b32.xlu0 %v2517, 16
        %v2533 = vpop.permute.xlu0 %2532
        %2534 = vrot.lane.b32.xlu0 %v2518, 16
        %v2535 = vpop.permute.xlu0 %2534
        %v2536 = vsel %vm648, %v2533, %v2535
        %v2537 = vsel %vm648, %v2535, %v2533
        %s2538 = scalar_lea.vmem [#allocation2], 736
        %v2539 = vld [vmem:[%s2538] sm:$0xff]
        %v2540 = vld [vmem:[%s2538 + $0x8] sm:$0xff]
        %v2541 = vmul.f32 %v2537, %v2539
        %v2542 = vmul.f32 %v2536, %v2540
        %v2543 = vadd.f32 %v2530, %v2541
        %v2544 = vadd.f32 %v2531, %v2542
        %2545 = vrot.lane.b32.xlu0 %v2517, 15
        %v2546 = vpop.permute.xlu0 %2545
        %2547 = vrot.lane.b32.xlu0 %v2518, 15
        %v2548 = vpop.permute.xlu0 %2547
        %v2549 = vsel %vm662, %v2546, %v2548
        %v2550 = vsel %vm662, %v2548, %v2546
        %s2551 = scalar_lea.vmem [#allocation2], 752
        %v2552 = vld [vmem:[%s2551] sm:$0xff]
        %v2553 = vld [vmem:[%s2551 + $0x8] sm:$0xff]
        %v2554 = vmul.f32 %v2550, %v2552
        %v2555 = vmul.f32 %v2549, %v2553
        %v2556 = vadd.f32 %v2543, %v2554
        %v2557 = vadd.f32 %v2544, %v2555
        %2558 = vrot.lane.b32.xlu0 %v2517, 1
        %v2559 = vpop.permute.xlu0 %2558
        %2560 = vrot.lane.b32.xlu0 %v2518, 1
        %v2561 = vpop.permute.xlu0 %2560
        %v2562 = vsel %vm676, %v2559, %v2561
        %v2563 = vsel %vm676, %v2561, %v2559
        %s2564 = scalar_lea.vmem [#allocation2], 768
        %v2565 = vld [vmem:[%s2564] sm:$0xff]
        %v2566 = vld [vmem:[%s2564 + $0x8] sm:$0xff]
        %v2567 = vmul.f32 %v2563, %v2565
        %v2568 = vmul.f32 %v2562, %v2566
        %v2569 = vadd.f32 %v2556, %v2567
        %v2570 = vadd.f32 %v2557, %v2568
        %s2571 = scalar_lea.vmem [#allocation2], 784
        %v2572 = vld [vmem:[%s2571] sm:$0xff]
        %v2573 = vld [vmem:[%s2571 + $0x8] sm:$0xff]
        %v2574 = vmul.f32 %v2517, %v2572
        %v2575 = vmul.f32 %v2518, %v2573
        %v2576 = vadd.f32 %v2569, %v2574
        %v2577 = vadd.f32 %v2570, %v2575
        %2578 = vrot.lane.b32.xlu0 %v2517, 127
        %v2579 = vpop.permute.xlu0 %2578
        %2580 = vrot.lane.b32.xlu0 %v2518, 127
        %v2581 = vpop.permute.xlu0 %2580
        %v2582 = vsel %vm697, %v2579, %v2581
        %v2583 = vsel %vm697, %v2581, %v2579
        %s2584 = scalar_lea.vmem [#allocation2], 800
        %v2585 = vld [vmem:[%s2584] sm:$0xff]
        %v2586 = vld [vmem:[%s2584 + $0x8] sm:$0xff]
        %v2587 = vmul.f32 %v2582, %v2585
        %v2588 = vmul.f32 %v2583, %v2586
        %v2589 = vadd.f32 %v2576, %v2587
        %v2590 = vadd.f32 %v2577, %v2588
        %2591 = vrot.lane.b32.xlu0 %v2517, 113
        %v2592 = vpop.permute.xlu0 %2591
        %2593 = vrot.lane.b32.xlu0 %v2518, 113
        %v2594 = vpop.permute.xlu0 %2593
        %v2595 = vsel %vm711, %v2592, %v2594
        %v2596 = vsel %vm711, %v2594, %v2592
        %s2597 = scalar_lea.vmem [#allocation2], 816
        %v2598 = vld [vmem:[%s2597] sm:$0xff]
        %v2599 = vld [vmem:[%s2597 + $0x8] sm:$0xff]
        %v2600 = vmul.f32 %v2595, %v2598
        %v2601 = vmul.f32 %v2596, %v2599
        %v2602 = vadd.f32 %v2589, %v2600
        %v2603 = vadd.f32 %v2590, %v2601
        %2604 = vrot.lane.b32.xlu0 %v2517, 112
        %v2605 = vpop.permute.xlu0 %2604
        %2606 = vrot.lane.b32.xlu0 %v2518, 112
        %v2607 = vpop.permute.xlu0 %2606
        %v2608 = vsel %vm725, %v2605, %v2607
        %v2609 = vsel %vm725, %v2607, %v2605
        %s2610 = scalar_lea.vmem [#allocation2], 832
        %v2611 = vld [vmem:[%s2610] sm:$0xff]
        %v2612 = vld [vmem:[%s2610 + $0x8] sm:$0xff]
        %v2613 = vmul.f32 %v2608, %v2611
        %v2614 = vmul.f32 %v2609, %v2612
        %v2615 = vadd.f32 %v2602, %v2613
        %v2616 = vadd.f32 %v2603, %v2614
        %2617 = vrot.lane.b32.xlu0 %v2517, 111
        %v2618 = vpop.permute.xlu0 %2617
        %2619 = vrot.lane.b32.xlu0 %v2518, 111
        %v2620 = vpop.permute.xlu0 %2619
        %v2621 = vsel %vm739, %v2618, %v2620
        %v2622 = vsel %vm739, %v2620, %v2618
        %s2623 = scalar_lea.vmem [#allocation2], 848
        %v2624 = vld [vmem:[%s2623] sm:$0xff]
        %v2625 = vld [vmem:[%s2623 + $0x8] sm:$0xff]
        %v2626 = vmul.f32 %v2621, %v2624
        %v2627 = vmul.f32 %v2622, %v2625
        %v2628 = vadd.f32 %v2615, %v2626
        %v2629 = vadd.f32 %v2616, %v2627
        %s2630 = scalar_lea.vmem %s6, 40
        %v2631 = vld [vmem:[%s2630] sm:$0xff]
        %2633 = vset.pattern.permute.xlu0 0
        %2634 = vperm.xlu0 %2633, %v2631
        %v2635 = vpop.permute.xlu0 %2634
        %v2637 = vadd.f32 %v2628, %v2635
        %v2638 = vadd.f32 %v2629, %v2635
        %s2639 = scalar_lea.vmem [#allocation4], 40
        %v2640 = vld [vmem:[%s2639] sm:$0xff]
        %s2641 = scalar_lea.vmem %s8, 40
        %v2642 = vld [vmem:[%s2641] sm:$0xff]
        %2644 = vset.pattern.permute.xlu0 0
        %2645 = vperm.xlu0 %2644, %v2642
        %v2646 = vpop.permute.xlu0 %2645
        %v2649 = vsel %vm470, %v2640, 0
        %2651 = vmatprep.subr.mxu0 %v2638
        %2652 = vmatpush1.msra.mxu0 %v2637
        %2653 = vmatprep.subr.mxu0 0.0
        %2654 = vmatpush1.msra.mxu0 0.0
        %2655 = vmatprep.subr.mxu0 0.0
        %2656 = vmatpush1.msra.mxu0 0.0
        %2657 = vmatprep.subr.mxu0 0.0
        %2658 = vmatpush1.msra.mxu0 0.0
        %2659 = vmatprep.subr.mxu0 0.0
        %2660 = vmatpush1.msra.mxu0 0.0
        %2661 = vmatprep.subr.mxu0 0.0
        %2662 = vmatpush1.msra.mxu0 0.0
        %2663 = vmatprep.subr.mxu0 0.0
        %2664 = vmatpush1.msra.mxu0 0.0
        %2665 = vmatprep.subr.mxu0 0.0
        %2666 = vmatpush1.msra.mxu0 0.0
        %2667 = vmatprep.subr.mxu0 0.0
        %2668 = vmatpush1.msra.mxu0 0.0
        %2669 = vmatprep.subr.mxu0 0.0
        %2670 = vmatpush1.msra.mxu0 0.0
        %2671 = vmatprep.subr.mxu0 0.0
        %2672 = vmatpush1.msra.mxu0 0.0
        %2673 = vmatprep.subr.mxu0 0.0
        %2674 = vmatpush1.msra.mxu0 0.0
        %2675 = vmatprep.subr.mxu0 0.0
        %2676 = vmatpush1.msra.mxu0 0.0
        %2677 = vmatprep.subr.mxu0 0.0
        %2678 = vmatpush1.msra.mxu0 0.0
        %2679 = vmatprep.subr.mxu0 0.0
        %2680 = vmatpush1.msra.mxu0 0.0
        %2681 = vmatprep.subr.mxu0 0.0
        %2682 = vmatpush1.msra.mxu0 0.0
        %2683 = vmatprep.subr.mxu0 0.0
        %2684 = vmatpush1.msra.mxu0 0.0
        %2685 = vmatprep.subr.mxu0 0.0
        %2686 = vmatpush1.msra.mxu0 0.0
        %2687 = vmatprep.subr.mxu0 0.0
        %2688 = vmatpush1.msra.mxu0 0.0
        %2689 = vmatprep.subr.mxu0 0.0
        %2690 = vmatpush1.msra.mxu0 0.0
        %2691 = vmatprep.subr.mxu0 0.0
        %2692 = vmatpush1.msra.mxu0 0.0
        %2693 = vmatprep.subr.mxu0 0.0
        %2694 = vmatpush1.msra.mxu0 0.0
        %2695 = vmatprep.subr.mxu0 0.0
        %2696 = vmatpush1.msra.mxu0 0.0
        %2697 = vmatprep.subr.mxu0 0.0
        %2698 = vmatpush1.msra.mxu0 0.0
        %2699 = vmatprep.subr.mxu0 0.0
        %2700 = vmatpush1.msra.mxu0 0.0
        %2701 = vmatprep.subr.mxu0 0.0
        %2702 = vmatpush1.msra.mxu0 0.0
        %2703 = vmatprep.subr.mxu0 0.0
        %2704 = vmatpush1.msra.mxu0 0.0
        %2705 = vmatprep.subr.mxu0 0.0
        %2706 = vmatpush1.msra.mxu0 0.0
        %2707 = vmatprep.subr.mxu0 0.0
        %2708 = vmatpush1.msra.mxu0 0.0
        %2709 = vmatprep.subr.mxu0 0.0
        %2710 = vmatpush1.msra.mxu0 0.0
        %2711 = vmatprep.subr.mxu0 0.0
        %2712 = vmatpush1.msra.mxu0 0.0
        %2713 = vmatprep.subr.mxu0 0.0
        %2714 = vmatpush1.msra.mxu0 0.0
        %2715 = vmatprep.mubr.f32.mxu0 0.0
        %2716 = vmatmul.mubr.f32.gmra.mrb[0].mxu0 %v2649
        %v2717 = vpop.f32.mrb[0].mxu0
        %v2718 = vadd.f32 %v2646, %v2717
        %v2719 = vpop.f32.mrb[0].mxu0
        %v2720 = vadd.f32 %v2646, %v2719
        %2721 = vdwg.mxu0
        %v2722 = vmax.f32 %v2718, 0.0
        %v2723 = vmax.f32 %v2720, 0.0
        %2724 = vrot.lane.b32.xlu0 %v2722, 17
        %v2725 = vpop.permute.xlu0 %2724
        %2726 = vrot.lane.b32.xlu0 %v2723, 17
        %v2727 = vpop.permute.xlu0 %2726
        %v2728 = vsel %vm635, %v2725, %v2727
        %v2729 = vsel %vm635, %v2727, %v2725
        %s2730 = scalar_lea.vmem [#allocation2], 864
        %v2731 = vld [vmem:[%s2730] sm:$0xff]
        %v2732 = vld [vmem:[%s2730 + $0x8] sm:$0xff]
        %v2733 = vmul.f32 %v2729, %v2731
        %v2734 = vmul.f32 %v2728, %v2732
        %v2735 = vadd.f32 %v2733, 0.0
        %v2736 = vadd.f32 %v2734, 0.0
        %2737 = vrot.lane.b32.xlu0 %v2722, 16
        %v2738 = vpop.permute.xlu0 %2737
        %2739 = vrot.lane.b32.xlu0 %v2723, 16
        %v2740 = vpop.permute.xlu0 %2739
        %v2741 = vsel %vm648, %v2738, %v2740
        %v2742 = vsel %vm648, %v2740, %v2738
        %s2743 = scalar_lea.vmem [#allocation2], 880
        %v2744 = vld [vmem:[%s2743] sm:$0xff]
        %v2745 = vld [vmem:[%s2743 + $0x8] sm:$0xff]
        %v2746 = vmul.f32 %v2742, %v2744
        %v2747 = vmul.f32 %v2741, %v2745
        %v2748 = vadd.f32 %v2735, %v2746
        %v2749 = vadd.f32 %v2736, %v2747
        %2750 = vrot.lane.b32.xlu0 %v2722, 15
        %v2751 = vpop.permute.xlu0 %2750
        %2752 = vrot.lane.b32.xlu0 %v2723, 15
        %v2753 = vpop.permute.xlu0 %2752
        %v2754 = vsel %vm662, %v2751, %v2753
        %v2755 = vsel %vm662, %v2753, %v2751
        %s2756 = scalar_lea.vmem [#allocation2], 896
        %v2757 = vld [vmem:[%s2756] sm:$0xff]
        %v2758 = vld [vmem:[%s2756 + $0x8] sm:$0xff]
        %v2759 = vmul.f32 %v2755, %v2757
        %v2760 = vmul.f32 %v2754, %v2758
        %v2761 = vadd.f32 %v2748, %v2759
        %v2762 = vadd.f32 %v2749, %v2760
        %2763 = vrot.lane.b32.xlu0 %v2722, 1
        %v2764 = vpop.permute.xlu0 %2763
        %2765 = vrot.lane.b32.xlu0 %v2723, 1
        %v2766 = vpop.permute.xlu0 %2765
        %v2767 = vsel %vm676, %v2764, %v2766
        %v2768 = vsel %vm676, %v2766, %v2764
        %s2769 = scalar_lea.vmem [#allocation2], 912
        %v2770 = vld [vmem:[%s2769] sm:$0xff]
        %v2771 = vld [vmem:[%s2769 + $0x8] sm:$0xff]
        %v2772 = vmul.f32 %v2768, %v2770
        %v2773 = vmul.f32 %v2767, %v2771
        %v2774 = vadd.f32 %v2761, %v2772
        %v2775 = vadd.f32 %v2762, %v2773
        %s2776 = scalar_lea.vmem [#allocation2], 928
        %v2777 = vld [vmem:[%s2776] sm:$0xff]
        %v2778 = vld [vmem:[%s2776 + $0x8] sm:$0xff]
        %v2779 = vmul.f32 %v2722, %v2777
        %v2780 = vmul.f32 %v2723, %v2778
        %v2781 = vadd.f32 %v2774, %v2779
        %v2782 = vadd.f32 %v2775, %v2780
        %2783 = vrot.lane.b32.xlu0 %v2722, 127
        %v2784 = vpop.permute.xlu0 %2783
        %2785 = vrot.lane.b32.xlu0 %v2723, 127
        %v2786 = vpop.permute.xlu0 %2785
        %v2787 = vsel %vm697, %v2784, %v2786
        %v2788 = vsel %vm697, %v2786, %v2784
        %s2789 = scalar_lea.vmem [#allocation2], 944
        %v2790 = vld [vmem:[%s2789] sm:$0xff]
        %v2791 = vld [vmem:[%s2789 + $0x8] sm:$0xff]
        %v2792 = vmul.f32 %v2787, %v2790
        %v2793 = vmul.f32 %v2788, %v2791
        %v2794 = vadd.f32 %v2781, %v2792
        %v2795 = vadd.f32 %v2782, %v2793
        %2796 = vrot.lane.b32.xlu0 %v2722, 113
        %v2797 = vpop.permute.xlu0 %2796
        %2798 = vrot.lane.b32.xlu0 %v2723, 113
        %v2799 = vpop.permute.xlu0 %2798
        %v2800 = vsel %vm711, %v2797, %v2799
        %v2801 = vsel %vm711, %v2799, %v2797
        %s2802 = scalar_lea.vmem [#allocation2], 960
        %v2803 = vld [vmem:[%s2802] sm:$0xff]
        %v2804 = vld [vmem:[%s2802 + $0x8] sm:$0xff]
        %v2805 = vmul.f32 %v2800, %v2803
        %v2806 = vmul.f32 %v2801, %v2804
        %v2807 = vadd.f32 %v2794, %v2805
        %v2808 = vadd.f32 %v2795, %v2806
        %2809 = vrot.lane.b32.xlu0 %v2722, 112
        %v2810 = vpop.permute.xlu0 %2809
        %2811 = vrot.lane.b32.xlu0 %v2723, 112
        %v2812 = vpop.permute.xlu0 %2811
        %v2813 = vsel %vm725, %v2810, %v2812
        %v2814 = vsel %vm725, %v2812, %v2810
        %s2815 = scalar_lea.vmem [#allocation2], 976
        %v2816 = vld [vmem:[%s2815] sm:$0xff]
        %v2817 = vld [vmem:[%s2815 + $0x8] sm:$0xff]
        %v2818 = vmul.f32 %v2813, %v2816
        %v2819 = vmul.f32 %v2814, %v2817
        %v2820 = vadd.f32 %v2807, %v2818
        %v2821 = vadd.f32 %v2808, %v2819
        %2822 = vrot.lane.b32.xlu0 %v2722, 111
        %v2823 = vpop.permute.xlu0 %2822
        %2824 = vrot.lane.b32.xlu0 %v2723, 111
        %v2825 = vpop.permute.xlu0 %2824
        %v2826 = vsel %vm739, %v2823, %v2825
        %v2827 = vsel %vm739, %v2825, %v2823
        %s2828 = scalar_lea.vmem [#allocation2], 992
        %v2829 = vld [vmem:[%s2828] sm:$0xff]
        %v2830 = vld [vmem:[%s2828 + $0x8] sm:$0xff]
        %v2831 = vmul.f32 %v2826, %v2829
        %v2832 = vmul.f32 %v2827, %v2830
        %v2833 = vadd.f32 %v2820, %v2831
        %v2834 = vadd.f32 %v2821, %v2832
        %s2835 = scalar_lea.vmem %s6, 48
        %v2836 = vld [vmem:[%s2835] sm:$0xff]
        %2838 = vset.pattern.permute.xlu0 0
        %2839 = vperm.xlu0 %2838, %v2836
        %v2840 = vpop.permute.xlu0 %2839
        %v2842 = vadd.f32 %v2833, %v2840
        %v2843 = vadd.f32 %v2834, %v2840
        %s2844 = scalar_lea.vmem [#allocation4], 48
        %v2845 = vld [vmem:[%s2844] sm:$0xff]
        %s2846 = scalar_lea.vmem %s8, 48
        %v2847 = vld [vmem:[%s2846] sm:$0xff]
        %2849 = vset.pattern.permute.xlu0 0
        %2850 = vperm.xlu0 %2849, %v2847
        %v2851 = vpop.permute.xlu0 %2850
        %v2854 = vsel %vm470, %v2845, 0
        %2856 = vmatprep.subr.mxu0 %v2843
        %2857 = vmatpush1.msra.mxu0 %v2842
        %2858 = vmatprep.subr.mxu0 0.0
        %2859 = vmatpush1.msra.mxu0 0.0
        %2860 = vmatprep.subr.mxu0 0.0
        %2861 = vmatpush1.msra.mxu0 0.0
        %2862 = vmatprep.subr.mxu0 0.0
        %2863 = vmatpush1.msra.mxu0 0.0
        %2864 = vmatprep.subr.mxu0 0.0
        %2865 = vmatpush1.msra.mxu0 0.0
        %2866 = vmatprep.subr.mxu0 0.0
        %2867 = vmatpush1.msra.mxu0 0.0
        %2868 = vmatprep.subr.mxu0 0.0
        %2869 = vmatpush1.msra.mxu0 0.0
        %2870 = vmatprep.subr.mxu0 0.0
        %2871 = vmatpush1.msra.mxu0 0.0
        %2872 = vmatprep.subr.mxu0 0.0
        %2873 = vmatpush1.msra.mxu0 0.0
        %2874 = vmatprep.subr.mxu0 0.0
        %2875 = vmatpush1.msra.mxu0 0.0
        %2876 = vmatprep.subr.mxu0 0.0
        %2877 = vmatpush1.msra.mxu0 0.0
        %2878 = vmatprep.subr.mxu0 0.0
        %2879 = vmatpush1.msra.mxu0 0.0
        %2880 = vmatprep.subr.mxu0 0.0
        %2881 = vmatpush1.msra.mxu0 0.0
        %2882 = vmatprep.subr.mxu0 0.0
        %2883 = vmatpush1.msra.mxu0 0.0
        %2884 = vmatprep.subr.mxu0 0.0
        %2885 = vmatpush1.msra.mxu0 0.0
        %2886 = vmatprep.subr.mxu0 0.0
        %2887 = vmatpush1.msra.mxu0 0.0
        %2888 = vmatprep.subr.mxu0 0.0
        %2889 = vmatpush1.msra.mxu0 0.0
        %2890 = vmatprep.subr.mxu0 0.0
        %2891 = vmatpush1.msra.mxu0 0.0
        %2892 = vmatprep.subr.mxu0 0.0
        %2893 = vmatpush1.msra.mxu0 0.0
        %2894 = vmatprep.subr.mxu0 0.0
        %2895 = vmatpush1.msra.mxu0 0.0
        %2896 = vmatprep.subr.mxu0 0.0
        %2897 = vmatpush1.msra.mxu0 0.0
        %2898 = vmatprep.subr.mxu0 0.0
        %2899 = vmatpush1.msra.mxu0 0.0
        %2900 = vmatprep.subr.mxu0 0.0
        %2901 = vmatpush1.msra.mxu0 0.0
        %2902 = vmatprep.subr.mxu0 0.0
        %2903 = vmatpush1.msra.mxu0 0.0
        %2904 = vmatprep.subr.mxu0 0.0
        %2905 = vmatpush1.msra.mxu0 0.0
        %2906 = vmatprep.subr.mxu0 0.0
        %2907 = vmatpush1.msra.mxu0 0.0
        %2908 = vmatprep.subr.mxu0 0.0
        %2909 = vmatpush1.msra.mxu0 0.0
        %2910 = vmatprep.subr.mxu0 0.0
        %2911 = vmatpush1.msra.mxu0 0.0
        %2912 = vmatprep.subr.mxu0 0.0
        %2913 = vmatpush1.msra.mxu0 0.0
        %2914 = vmatprep.subr.mxu0 0.0
        %2915 = vmatpush1.msra.mxu0 0.0
        %2916 = vmatprep.subr.mxu0 0.0
        %2917 = vmatpush1.msra.mxu0 0.0
        %2918 = vmatprep.subr.mxu0 0.0
        %2919 = vmatpush1.msra.mxu0 0.0
        %2920 = vmatprep.mubr.f32.mxu0 0.0
        %2921 = vmatmul.mubr.f32.gmra.mrb[0].mxu0 %v2854
        %v2922 = vpop.f32.mrb[0].mxu0
        %v2923 = vadd.f32 %v2851, %v2922
        %v2924 = vpop.f32.mrb[0].mxu0
        %v2925 = vadd.f32 %v2851, %v2924
        %2926 = vdwg.mxu0
        %v2927 = vadd.f32 %v2923, %v2517
        %v2928 = vadd.f32 %v2925, %v2518
        %v2929 = vmax.f32 %v2927, 0.0
        %v2930 = vmax.f32 %v2928, 0.0
        %v2931 = vadd.f32 %v838, %v2929
        %v2932 = vadd.f32 %v839, %v2930
        %v2933 = vld [vmem:[%s10] sm:$0xff]
        %v2934 = vld [vmem:[%s10 + $0x8] sm:$0xff]
        %v2935 = vld [vmem:[%s10 + $0x10] sm:$0xff]
        %v2936 = vld [vmem:[%s10 + $0x18] sm:$0xff]
        %v2937 = vld [vmem:[%s11] sm:$0xff]
        %v2938 = vld [vmem:[%s11 + $0x8] sm:$0xff]
        %v2939 = vld [vmem:[%s11 + $0x10] sm:$0xff]
        %v2940 = vld [vmem:[%s11 + $0x18] sm:$0xff]
        %2942 = vset.pattern.permute.xlu0 0
        %2943 = vperm.xlu0 %2942, %v2937
        %v2944 = vpop.permute.xlu0 %2943
        %2947 = vset.pattern.permute.xlu0 0
        %2948 = vperm.xlu0 %2947, %v2938
        %v2949 = vpop.permute.xlu0 %2948
        %2952 = vset.pattern.permute.xlu0 0
        %2953 = vperm.xlu0 %2952, %v2939
        %v2954 = vpop.permute.xlu0 %2953
        %2957 = vset.pattern.permute.xlu0 0
        %2958 = vperm.xlu0 %2957, %v2940
        %v2959 = vpop.permute.xlu0 %2958
        %v2962 = vsel %vm470, %v2933, 0
        %v2965 = vsel %vm470, %v2934, 0
        %v2968 = vsel %vm470, %v2935, 0
        %v2971 = vsel %vm470, %v2936, 0
        %2973 = vmatprep.subr.mxu0 %v2932
        %2974 = vmatpush1.msra.mxu0 %v2931
        %2975 = vmatprep.subr.mxu0 0.0
        %2976 = vmatpush1.msra.mxu0 0.0
        %2977 = vmatprep.subr.mxu0 0.0
        %2978 = vmatpush1.msra.mxu0 0.0
        %2979 = vmatprep.subr.mxu0 0.0
        %2980 = vmatpush1.msra.mxu0 0.0
        %2981 = vmatprep.subr.mxu0 0.0
        %2982 = vmatpush1.msra.mxu0 0.0
        %2983 = vmatprep.subr.mxu0 0.0
        %2984 = vmatpush1.msra.mxu0 0.0
        %2985 = vmatprep.subr.mxu0 0.0
        %2986 = vmatpush1.msra.mxu0 0.0
        %2987 = vmatprep.subr.mxu0 0.0
        %2988 = vmatpush1.msra.mxu0 0.0
        %2989 = vmatprep.subr.mxu0 0.0
        %2990 = vmatpush1.msra.mxu0 0.0
        %2991 = vmatprep.subr.mxu0 0.0
        %2992 = vmatpush1.msra.mxu0 0.0
        %2993 = vmatprep.subr.mxu0 0.0
        %2994 = vmatpush1.msra.mxu0 0.0
        %2995 = vmatprep.subr.mxu0 0.0
        %2996 = vmatpush1.msra.mxu0 0.0
        %2997 = vmatprep.subr.mxu0 0.0
        %2998 = vmatpush1.msra.mxu0 0.0
        %2999 = vmatprep.subr.mxu0 0.0
        %3000 = vmatpush1.msra.mxu0 0.0
        %3001 = vmatprep.subr.mxu0 0.0
        %3002 = vmatpush1.msra.mxu0 0.0
        %3003 = vmatprep.subr.mxu0 0.0
        %3004 = vmatpush1.msra.mxu0 0.0
        %3005 = vmatprep.subr.mxu0 0.0
        %3006 = vmatpush1.msra.mxu0 0.0
        %3007 = vmatprep.subr.mxu0 0.0
        %3008 = vmatpush1.msra.mxu0 0.0
        %3009 = vmatprep.subr.mxu0 0.0
        %3010 = vmatpush1.msra.mxu0 0.0
        %3011 = vmatprep.subr.mxu0 0.0
        %3012 = vmatpush1.msra.mxu0 0.0
        %3013 = vmatprep.subr.mxu0 0.0
        %3014 = vmatpush1.msra.mxu0 0.0
        %3015 = vmatprep.subr.mxu0 0.0
        %3016 = vmatpush1.msra.mxu0 0.0
        %3017 = vmatprep.subr.mxu0 0.0
        %3018 = vmatpush1.msra.mxu0 0.0
        %3019 = vmatprep.subr.mxu0 0.0
        %3020 = vmatpush1.msra.mxu0 0.0
        %3021 = vmatprep.subr.mxu0 0.0
        %3022 = vmatpush1.msra.mxu0 0.0
        %3023 = vmatprep.subr.mxu0 0.0
        %3024 = vmatpush1.msra.mxu0 0.0
        %3025 = vmatprep.subr.mxu0 0.0
        %3026 = vmatpush1.msra.mxu0 0.0
        %3027 = vmatprep.subr.mxu0 0.0
        %3028 = vmatpush1.msra.mxu0 0.0
        %3029 = vmatprep.subr.mxu0 0.0
        %3030 = vmatpush1.msra.mxu0 0.0
        %3031 = vmatprep.subr.mxu0 0.0
        %3032 = vmatpush1.msra.mxu0 0.0
        %3033 = vmatprep.subr.mxu0 0.0
        %3034 = vmatpush1.msra.mxu0 0.0
        %3035 = vmatprep.subr.mxu0 0.0
        %3036 = vmatpush1.msra.mxu0 0.0
        %3037 = vmatprep.mubr.f32.mxu0 0.0
        %3038 = vmatmul.mubr.f32.gmra.mrb[0].mxu0 %v2962
        %v3039 = vpop.f32.mrb[0].mxu0
        %v3040 = vadd.f32 %v2944, %v3039
        %v3041 = vpop.f32.mrb[0].mxu0
        %v3042 = vadd.f32 %v2944, %v3041
        %3043 = vmatprep.mubr.f32.mxu0 0.0
        %3044 = vmatmul.mubr.f32.gmra.mrb[0].mxu0 %v2965
        %v3045 = vpop.f32.mrb[0].mxu0
        %v3046 = vadd.f32 %v2949, %v3045
        %v3047 = vpop.f32.mrb[0].mxu0
        %v3048 = vadd.f32 %v2949, %v3047
        %3049 = vmatprep.mubr.f32.mxu0 0.0
        %3050 = vmatmul.mubr.f32.gmra.mrb[0].mxu0 %v2968
        %v3051 = vpop.f32.mrb[0].mxu0
        %v3052 = vadd.f32 %v2954, %v3051
        %v3053 = vpop.f32.mrb[0].mxu0
        %v3054 = vadd.f32 %v2954, %v3053
        %3055 = vmatprep.mubr.f32.mxu0 0.0
        %3056 = vmatmul.mubr.f32.gmra.mrb[0].mxu0 %v2971
        %v3057 = vpop.f32.mrb[0].mxu0
        %v3058 = vadd.f32 %v2959, %v3057
        %v3059 = vpop.f32.mrb[0].mxu0
        %v3060 = vadd.f32 %v2959, %v3059
        %3061 = vdwg.mxu0
        %3062 = vst [vmem:[%s463] sm:$0xff] %v3040
        %3063 = vst [vmem:[%s463 + $0x8] sm:$0xff] %v3042
        %3064 = vst [vmem:[%s463 + $0x10] sm:$0xff] %v3046
        %3065 = vst [vmem:[%s463 + $0x18] sm:$0xff] %v3048
        %3066 = vst [vmem:[%s463 + $0x20] sm:$0xff] %v3052
        %3067 = vst [vmem:[%s463 + $0x28] sm:$0xff] %v3054
        %3068 = vst [vmem:[%s463 + $0x30] sm:$0xff] %v3058
        %3069 = vst [vmem:[%s463 + $0x38] sm:$0xff] %v3060
        %p3070 = scmp.lt.s32.totalorder %s25, 1
        %s3071 = scalar_select %p3070, %s25, 1
        %s3072 = smul.addr %s3071, 8
        %s3073 = smul.addr %s3072, 8
        %s3074 = scalar_lea.vmem %s12, %s3073
        // Predicated region
        $region77: #{cd_block_forward.1} parent=67 // pred_check
          %p3075 = pneg %p305
        $region78: #{cd_block_forward.1} parent=67 // pred_check_branch
          %3077 = sbr.rel (%p3075) target = $region80
        $region79: #{cd_block_forward.1} parent=67 // pred_region
          _
        $region80: #{cd_block_forward.1} parent=67 // pred_fallthru
          _
      $region68: #{cd_block_forward.1} parent=5 // pred_fallthru
        _
      %p3078 = scmp.le.s32.totalorder 2, %s20
      // Predicated region
      $region81: #{cd_block_forward.1} parent=5 // pred_check
        %p3079 = pneg %p3078
      $region82: #{cd_block_forward.1} parent=5 // pred_check_branch
        %3081 = sbr.rel (%p3079) target = $region84
      $region83: #{cd_block_forward.1} parent=5 // pred_region
        %s3082 = ssub.s32 %s20, 2
        // Predicated region
        $region85: #{cd_block_forward.1} parent=83 // pred_check
          %p3083 = pneg %p311
        $region86: #{cd_block_forward.1} parent=83 // pred_check_branch
          %3085 = sbr.rel (%p3083) target = $region88
        $region87: #{cd_block_forward.1} parent=83 // pred_region
          %p3086 = scmp.lt.s32.totalorder %s26, 1
          %s3087 = scalar_select %p3086, %s26, 1
          %s3088 = smul.addr %s3087, 8
          %s3089 = smul.addr %s3088, 8
          %s3090 = scalar_lea.vmem %s12, %s3089
        $region88: #{cd_block_forward.1} parent=83 // pred_fallthru
          _
      $region84: #{cd_block_forward.1} parent=5 // pred_fallthru
        _
    $region6: #{cd_block_forward.1} parent=1 // loop_footer
      %s24 = sadd.s32 1, %s20
    $region7: #{cd_block_forward.1} parent=1 // loop_footer_branch
      %19 = sbr.rel target = $region3
    $region8: #{cd_block_forward.1} parent=1 // loop_exit
      _
    %3091 = vsyncpa [#allocation3], 1
    %s3092 = scalar_lea.sflag [#allocation3], 1
    %3093 = vsyncpa %s3092, 1
    %3094 = vsyncpa [#allocation5], 1

</llo_original>
